<compile_context>
chip_gen: v5e
topology: v5e:2x2
jax: 0.10.0
libtpu: 0.0.40
codegen_flags: <defaults>
</compile_context>

<pallas_src>
import functools

import jax
import jax.numpy as jnp
from jax.experimental import pallas as pl
from jax.experimental.pallas import tpu as pltpu

KH = KW = 5
STRIDE = 2
PAD = 2
EPS = 1e-5


def _dwconv_bn_kernel(x_ref, w_ref, g_ref, b_ref, o_ref, *, inv_count):
    """Fused depthwise 5x5/stride-2 conv + training-mode BatchNorm for one
    channel chunk (whole batch resident in VMEM).

    x_ref: (N, 4, Hh, Wh, Cc)  phase-deinterleaved, spatially padded input;
                               phase p = (h % 2) * 2 + (w % 2)
    w_ref: (KH, KW, Cc)        depthwise filter, channels-last
    g_ref: (1, Cc)             BN gamma
    b_ref: (1, Cc)             BN beta
    o_ref: (N, Ho, Wo, Cc)     normalized output
    """
    N, Ho, Wo, Cc = o_ref.shape

    w = w_ref[...].astype(jnp.float32)               # (KH, KW, Cc)

    acc = jnp.zeros((N, Ho, Wo, Cc), jnp.float32)
    for kh in range(KH):
        for kw in range(KW):
            p = (kh % 2) * 2 + (kw % 2)
            hs = kh // 2
            ws = kw // 2
            # unit-stride static window == stride-2 tap of the padded tile
            tap = x_ref[:, p, hs:hs + Ho, ws:ws + Wo, :].astype(jnp.float32)
            acc = acc + tap * w[kh, kw]

    # Per-channel batch statistics over (N, Ho, Wo).  Biased variance, exactly
    # what torch training-mode BatchNorm uses to normalize.
    s = jnp.sum(acc, axis=(0, 1, 2))                 # (Cc,)
    sq = jnp.sum(acc * acc, axis=(0, 1, 2))          # (Cc,)
    mean = s * inv_count
    var = jnp.maximum(sq * inv_count - mean * mean, 0.0)

    gamma = g_ref[...][0].astype(jnp.float32)
    beta = b_ref[...][0].astype(jnp.float32)
    scale = gamma * jax.lax.rsqrt(var + EPS)
    bias = beta - mean * scale

    o_ref[...] = (acc * scale + bias).astype(o_ref.dtype)


def depthwise_conv_bn(x_nchw, w_oihw, gamma, beta):
    N, C, H, W = x_nchw.shape
    Ho = (H + 2 * PAD - KH) // STRIDE + 1
    Wo = (W + 2 * PAD - KW) // STRIDE + 1
    Hp = H + 2 * PAD
    Wp = W + 2 * PAD
    Hpe = Hp + (Hp % 2)          # make even so the 2x2 phase split is exact
    Wpe = Wp + (Wp % 2)
    Hh, Wh = Hpe // 2, Wpe // 2

    # pad channels to a multiple of 128 for lane-dense tiles
    Cpad = ((C + 127) // 128) * 128
    cc = 256 if Cpad % 256 == 0 else 128     # >=2 chunks -> v7x megacore use
    nc = Cpad // cc

    # ---- glue (layout-only, fuses into one XLA copy): NCHW->NHWC, zero-pad,
    #      2x2 phase deinterleave so every conv tap is a unit-stride window ----
    x = jnp.transpose(x_nchw, (0, 2, 3, 1))                          # (N,H,W,C)
    xpad = jnp.pad(x, ((0, 0),
                       (PAD, PAD + (Hpe - Hp)),
                       (PAD, PAD + (Wpe - Wp)),
                       (0, Cpad - C)))
    xph = xpad.reshape(N, Hh, 2, Wh, 2, Cpad)
    xph = jnp.transpose(xph, (0, 2, 4, 1, 3, 5)).reshape(N, 4, Hh, Wh, Cpad)

    w = jnp.transpose(w_oihw[:, 0, :, :], (1, 2, 0))                 # (KH,KW,C)
    w = jnp.pad(w, ((0, 0), (0, 0), (0, Cpad - C)))
    g = jnp.pad(gamma.reshape(1, C).astype(jnp.float32),
                ((0, 0), (0, Cpad - C)), constant_values=1.0)
    b = jnp.pad(beta.reshape(1, C).astype(jnp.float32),
                ((0, 0), (0, Cpad - C)))

    inv_count = 1.0 / float(N * Ho * Wo)

    out = pl.pallas_call(
        functools.partial(_dwconv_bn_kernel, inv_count=inv_count),
        out_shape=jax.ShapeDtypeStruct((N, Ho, Wo, Cpad), jnp.float32),
        grid=(nc,),
        in_specs=[
            pl.BlockSpec((N, 4, Hh, Wh, cc), lambda c: (0, 0, 0, 0, c)),
            pl.BlockSpec((KH, KW, cc), lambda c: (0, 0, c)),
            pl.BlockSpec((1, cc), lambda c: (0, c)),
            pl.BlockSpec((1, cc), lambda c: (0, c)),
        ],
        out_specs=pl.BlockSpec((N, Ho, Wo, cc), lambda c: (0, 0, 0, c)),
        compiler_params=pltpu.CompilerParams(
            dimension_semantics=("parallel",)),
    )(xph, w, g, b)

    out = out[:, :, :, :C]
    return jnp.transpose(out, (0, 3, 1, 2))                          # NCHW


def reference(x_nchw, w_oihw, gamma, beta):
    C = x_nchw.shape[1]
    conv = jax.lax.conv_general_dilated(
        x_nchw, w_oihw, window_strides=(STRIDE, STRIDE),
        padding=((PAD, PAD), (PAD, PAD)), feature_group_count=C,
        dimension_numbers=('NCHW', 'OIHW', 'NCHW'))
    mean = conv.mean(axis=(0, 2, 3), keepdims=True)
    var = conv.var(axis=(0, 2, 3), keepdims=True)    # biased, training mode
    g = gamma.reshape(1, C, 1, 1)
    b = beta.reshape(1, C, 1, 1)
    return (conv - mean) * jax.lax.rsqrt(var + EPS) * g + b


if __name__ == "__main__":
    key = jax.random.PRNGKey(0)
    k1, k2, k3, k4 = jax.random.split(key, 4)

    # Shapes from the module: (1, 960, 14, 14) input, depthwise 5x5 s2 p2.
    N, C, H, W = 1, 960, 14, 14
    x = jax.random.normal(k1, (N, C, H, W), dtype=jnp.float32)
    # PyTorch depthwise conv weight layout: (C_out=C, C_in/groups=1, KH, KW)
    w = jax.random.normal(k2, (C, 1, KH, KW), dtype=jnp.float32) * 0.1
    gamma = 1.0 + 0.1 * jax.random.normal(k3, (C,), dtype=jnp.float32)
    beta = 0.1 * jax.random.normal(k4, (C,), dtype=jnp.float32)

    out = jax.block_until_ready(depthwise_conv_bn(x, w, gamma, beta))

    ref = reference(x, w, gamma, beta)
    assert out.shape == ref.shape, (out.shape, ref.shape)
    err = float(jnp.max(jnp.abs(out - ref)))
    assert jnp.allclose(out, ref, atol=2e-4, rtol=2e-3), err

    print("KERNEL_OK")
</pallas_src>

<mosaic_0001>
module attributes {stable_mosaic.version = 11 : i64} {
  func.func @_dwconv_bn_kernel(%arg0: i32, %arg1: memref<1x4x9x9x256xf32, #tpu.memory_space<vmem>>, %arg2: memref<5x5x256xf32, #tpu.memory_space<vmem>>, %arg3: memref<1x256xf32, #tpu.memory_space<vmem>>, %arg4: memref<1x256xf32, #tpu.memory_space<vmem>>, %arg5: memref<1x7x7x256xf32, #tpu.memory_space<vmem>>) attributes {dimension_semantics = [#tpu.dimension_semantics<parallel>], iteration_bounds = array<i64: 4>, scalar_prefetch = 0 : i64, scratch_operands = 0 : i64, tpu.core_type = #tpu.core_type<tc>, window_params = [{transform_indices = @transform_0, window_bounds = array<i64: 1, 4, 9, 9, 256>}, {transform_indices = @transform_1, window_bounds = array<i64: 5, 5, 256>}, {transform_indices = @transform_2, window_bounds = array<i64: 1, 256>}, {transform_indices = @transform_3, window_bounds = array<i64: 1, 256>}, {transform_indices = @transform_4, window_bounds = array<i64: 1, 7, 7, 256>}]} {
    %c0 = arith.constant 0 : index
    %c0_0 = arith.constant 0 : index
    %c0_1 = arith.constant 0 : index
    %0 = vector.load %arg2[%c0, %c0_0, %c0_1] : memref<5x5x256xf32, #tpu.memory_space<vmem>>, vector<5x5x256xf32>
    %cst = arith.constant 0.000000e+00 : f32
    %1 = vector.broadcast %cst : f32 to vector<1x7x7x256xf32>
    %c0_2 = arith.constant 0 : index
    %c0_3 = arith.constant 0 : index
    %c0_4 = arith.constant 0 : index
    %c0_5 = arith.constant 0 : index
    %c0_6 = arith.constant 0 : index
    %2 = vector.load %arg1[%c0_2, %c0_3, %c0_4, %c0_5, %c0_6] : memref<1x4x9x9x256xf32, #tpu.memory_space<vmem>>, vector<1x1x7x7x256xf32>
    %3 = vector.shape_cast %2 : vector<1x1x7x7x256xf32> to vector<1x7x7x256xf32>
    %4 = vector.extract_strided_slice %0 {offsets = [0, 0, 0], sizes = [1, 1, 256], strides = [1, 1, 1]} : vector<5x5x256xf32> to vector<1x1x256xf32>
    %5 = vector.shape_cast %4 : vector<1x1x256xf32> to vector<256xf32>
    %6 = vector.shape_cast %5 : vector<256xf32> to vector<1x1x1x256xf32>
    %7 = vector.broadcast %6 : vector<1x1x1x256xf32> to vector<1x7x7x256xf32>
    %8 = arith.mulf %3, %7 : vector<1x7x7x256xf32>
    %9 = arith.addf %1, %8 : vector<1x7x7x256xf32>
    %c0_7 = arith.constant 0 : index
    %c1 = arith.constant 1 : index
    %c0_8 = arith.constant 0 : index
    %c0_9 = arith.constant 0 : index
    %c0_10 = arith.constant 0 : index
    %10 = vector.load %arg1[%c0_7, %c1, %c0_8, %c0_9, %c0_10] : memref<1x4x9x9x256xf32, #tpu.memory_space<vmem>>, vector<1x1x7x7x256xf32>
    %11 = vector.shape_cast %10 : vector<1x1x7x7x256xf32> to vector<1x7x7x256xf32>
    %12 = vector.extract_strided_slice %0 {offsets = [0, 1, 0], sizes = [1, 1, 256], strides = [1, 1, 1]} : vector<5x5x256xf32> to vector<1x1x256xf32>
    %13 = vector.shape_cast %12 : vector<1x1x256xf32> to vector<256xf32>
    %14 = vector.shape_cast %13 : vector<256xf32> to vector<1x1x1x256xf32>
    %15 = vector.broadcast %14 : vector<1x1x1x256xf32> to vector<1x7x7x256xf32>
    %16 = arith.mulf %11, %15 : vector<1x7x7x256xf32>
    %17 = arith.addf %9, %16 : vector<1x7x7x256xf32>
    %c0_11 = arith.constant 0 : index
    %c0_12 = arith.constant 0 : index
    %c0_13 = arith.constant 0 : index
    %c1_14 = arith.constant 1 : index
    %c0_15 = arith.constant 0 : index
    %18 = vector.load %arg1[%c0_11, %c0_12, %c0_13, %c1_14, %c0_15] : memref<1x4x9x9x256xf32, #tpu.memory_space<vmem>>, vector<1x1x7x7x256xf32>
    %19 = vector.shape_cast %18 : vector<1x1x7x7x256xf32> to vector<1x7x7x256xf32>
    %20 = vector.extract_strided_slice %0 {offsets = [0, 2, 0], sizes = [1, 1, 256], strides = [1, 1, 1]} : vector<5x5x256xf32> to vector<1x1x256xf32>
    %21 = vector.shape_cast %20 : vector<1x1x256xf32> to vector<256xf32>
    %22 = vector.shape_cast %21 : vector<256xf32> to vector<1x1x1x256xf32>
    %23 = vector.broadcast %22 : vector<1x1x1x256xf32> to vector<1x7x7x256xf32>
    %24 = arith.mulf %19, %23 : vector<1x7x7x256xf32>
    %25 = arith.addf %17, %24 : vector<1x7x7x256xf32>
    %c0_16 = arith.constant 0 : index
    %c1_17 = arith.constant 1 : index
    %c0_18 = arith.constant 0 : index
    %c1_19 = arith.constant 1 : index
    %c0_20 = arith.constant 0 : index
    %26 = vector.load %arg1[%c0_16, %c1_17, %c0_18, %c1_19, %c0_20] : memref<1x4x9x9x256xf32, #tpu.memory_space<vmem>>, vector<1x1x7x7x256xf32>
    %27 = vector.shape_cast %26 : vector<1x1x7x7x256xf32> to vector<1x7x7x256xf32>
    %28 = vector.extract_strided_slice %0 {offsets = [0, 3, 0], sizes = [1, 1, 256], strides = [1, 1, 1]} : vector<5x5x256xf32> to vector<1x1x256xf32>
    %29 = vector.shape_cast %28 : vector<1x1x256xf32> to vector<256xf32>
    %30 = vector.shape_cast %29 : vector<256xf32> to vector<1x1x1x256xf32>
    %31 = vector.broadcast %30 : vector<1x1x1x256xf32> to vector<1x7x7x256xf32>
    %32 = arith.mulf %27, %31 : vector<1x7x7x256xf32>
    %33 = arith.addf %25, %32 : vector<1x7x7x256xf32>
    %c0_21 = arith.constant 0 : index
    %c0_22 = arith.constant 0 : index
    %c0_23 = arith.constant 0 : index
    %c2 = arith.constant 2 : index
    %c0_24 = arith.constant 0 : index
    %34 = vector.load %arg1[%c0_21, %c0_22, %c0_23, %c2, %c0_24] : memref<1x4x9x9x256xf32, #tpu.memory_space<vmem>>, vector<1x1x7x7x256xf32>
    %35 = vector.shape_cast %34 : vector<1x1x7x7x256xf32> to vector<1x7x7x256xf32>
    %36 = vector.extract_strided_slice %0 {offsets = [0, 4, 0], sizes = [1, 1, 256], strides = [1, 1, 1]} : vector<5x5x256xf32> to vector<1x1x256xf32>
    %37 = vector.shape_cast %36 : vector<1x1x256xf32> to vector<256xf32>
    %38 = vector.shape_cast %37 : vector<256xf32> to vector<1x1x1x256xf32>
    %39 = vector.broadcast %38 : vector<1x1x1x256xf32> to vector<1x7x7x256xf32>
    %40 = arith.mulf %35, %39 : vector<1x7x7x256xf32>
    %41 = arith.addf %33, %40 : vector<1x7x7x256xf32>
    %c0_25 = arith.constant 0 : index
    %c2_26 = arith.constant 2 : index
    %c0_27 = arith.constant 0 : index
    %c0_28 = arith.constant 0 : index
    %c0_29 = arith.constant 0 : index
    %42 = vector.load %arg1[%c0_25, %c2_26, %c0_27, %c0_28, %c0_29] : memref<1x4x9x9x256xf32, #tpu.memory_space<vmem>>, vector<1x1x7x7x256xf32>
    %43 = vector.shape_cast %42 : vector<1x1x7x7x256xf32> to vector<1x7x7x256xf32>
    %44 = vector.extract_strided_slice %0 {offsets = [1, 0, 0], sizes = [1, 1, 256], strides = [1, 1, 1]} : vector<5x5x256xf32> to vector<1x1x256xf32>
    %45 = vector.shape_cast %44 : vector<1x1x256xf32> to vector<256xf32>
    %46 = vector.shape_cast %45 : vector<256xf32> to vector<1x1x1x256xf32>
    %47 = vector.broadcast %46 : vector<1x1x1x256xf32> to vector<1x7x7x256xf32>
    %48 = arith.mulf %43, %47 : vector<1x7x7x256xf32>
    %49 = arith.addf %41, %48 : vector<1x7x7x256xf32>
    %c0_30 = arith.constant 0 : index
    %c3 = arith.constant 3 : index
    %c0_31 = arith.constant 0 : index
    %c0_32 = arith.constant 0 : index
    %c0_33 = arith.constant 0 : index
    %50 = vector.load %arg1[%c0_30, %c3, %c0_31, %c0_32, %c0_33] : memref<1x4x9x9x256xf32, #tpu.memory_space<vmem>>, vector<1x1x7x7x256xf32>
    %51 = vector.shape_cast %50 : vector<1x1x7x7x256xf32> to vector<1x7x7x256xf32>
    %52 = vector.extract_strided_slice %0 {offsets = [1, 1, 0], sizes = [1, 1, 256], strides = [1, 1, 1]} : vector<5x5x256xf32> to vector<1x1x256xf32>
    %53 = vector.shape_cast %52 : vector<1x1x256xf32> to vector<256xf32>
    %54 = vector.shape_cast %53 : vector<256xf32> to vector<1x1x1x256xf32>
    %55 = vector.broadcast %54 : vector<1x1x1x256xf32> to vector<1x7x7x256xf32>
    %56 = arith.mulf %51, %55 : vector<1x7x7x256xf32>
    %57 = arith.addf %49, %56 : vector<1x7x7x256xf32>
    %c0_34 = arith.constant 0 : index
    %c2_35 = arith.constant 2 : index
    %c0_36 = arith.constant 0 : index
    %c1_37 = arith.constant 1 : index
    %c0_38 = arith.constant 0 : index
    %58 = vector.load %arg1[%c0_34, %c2_35, %c0_36, %c1_37, %c0_38] : memref<1x4x9x9x256xf32, #tpu.memory_space<vmem>>, vector<1x1x7x7x256xf32>
    %59 = vector.shape_cast %58 : vector<1x1x7x7x256xf32> to vector<1x7x7x256xf32>
    %60 = vector.extract_strided_slice %0 {offsets = [1, 2, 0], sizes = [1, 1, 256], strides = [1, 1, 1]} : vector<5x5x256xf32> to vector<1x1x256xf32>
    %61 = vector.shape_cast %60 : vector<1x1x256xf32> to vector<256xf32>
    %62 = vector.shape_cast %61 : vector<256xf32> to vector<1x1x1x256xf32>
    %63 = vector.broadcast %62 : vector<1x1x1x256xf32> to vector<1x7x7x256xf32>
    %64 = arith.mulf %59, %63 : vector<1x7x7x256xf32>
    %65 = arith.addf %57, %64 : vector<1x7x7x256xf32>
    %c0_39 = arith.constant 0 : index
    %c3_40 = arith.constant 3 : index
    %c0_41 = arith.constant 0 : index
    %c1_42 = arith.constant 1 : index
    %c0_43 = arith.constant 0 : index
    %66 = vector.load %arg1[%c0_39, %c3_40, %c0_41, %c1_42, %c0_43] : memref<1x4x9x9x256xf32, #tpu.memory_space<vmem>>, vector<1x1x7x7x256xf32>
    %67 = vector.shape_cast %66 : vector<1x1x7x7x256xf32> to vector<1x7x7x256xf32>
    %68 = vector.extract_strided_slice %0 {offsets = [1, 3, 0], sizes = [1, 1, 256], strides = [1, 1, 1]} : vector<5x5x256xf32> to vector<1x1x256xf32>
    %69 = vector.shape_cast %68 : vector<1x1x256xf32> to vector<256xf32>
    %70 = vector.shape_cast %69 : vector<256xf32> to vector<1x1x1x256xf32>
    %71 = vector.broadcast %70 : vector<1x1x1x256xf32> to vector<1x7x7x256xf32>
    %72 = arith.mulf %67, %71 : vector<1x7x7x256xf32>
    %73 = arith.addf %65, %72 : vector<1x7x7x256xf32>
    %c0_44 = arith.constant 0 : index
    %c2_45 = arith.constant 2 : index
    %c0_46 = arith.constant 0 : index
    %c2_47 = arith.constant 2 : index
    %c0_48 = arith.constant 0 : index
    %74 = vector.load %arg1[%c0_44, %c2_45, %c0_46, %c2_47, %c0_48] : memref<1x4x9x9x256xf32, #tpu.memory_space<vmem>>, vector<1x1x7x7x256xf32>
    %75 = vector.shape_cast %74 : vector<1x1x7x7x256xf32> to vector<1x7x7x256xf32>
    %76 = vector.extract_strided_slice %0 {offsets = [1, 4, 0], sizes = [1, 1, 256], strides = [1, 1, 1]} : vector<5x5x256xf32> to vector<1x1x256xf32>
    %77 = vector.shape_cast %76 : vector<1x1x256xf32> to vector<256xf32>
    %78 = vector.shape_cast %77 : vector<256xf32> to vector<1x1x1x256xf32>
    %79 = vector.broadcast %78 : vector<1x1x1x256xf32> to vector<1x7x7x256xf32>
    %80 = arith.mulf %75, %79 : vector<1x7x7x256xf32>
    %81 = arith.addf %73, %80 : vector<1x7x7x256xf32>
    %c0_49 = arith.constant 0 : index
    %c0_50 = arith.constant 0 : index
    %c1_51 = arith.constant 1 : index
    %c0_52 = arith.constant 0 : index
    %c0_53 = arith.constant 0 : index
    %82 = vector.load %arg1[%c0_49, %c0_50, %c1_51, %c0_52, %c0_53] : memref<1x4x9x9x256xf32, #tpu.memory_space<vmem>>, vector<1x1x7x7x256xf32>
    %83 = vector.shape_cast %82 : vector<1x1x7x7x256xf32> to vector<1x7x7x256xf32>
    %84 = vector.extract_strided_slice %0 {offsets = [2, 0, 0], sizes = [1, 1, 256], strides = [1, 1, 1]} : vector<5x5x256xf32> to vector<1x1x256xf32>
    %85 = vector.shape_cast %84 : vector<1x1x256xf32> to vector<256xf32>
    %86 = vector.shape_cast %85 : vector<256xf32> to vector<1x1x1x256xf32>
    %87 = vector.broadcast %86 : vector<1x1x1x256xf32> to vector<1x7x7x256xf32>
    %88 = arith.mulf %83, %87 : vector<1x7x7x256xf32>
    %89 = arith.addf %81, %88 : vector<1x7x7x256xf32>
    %c0_54 = arith.constant 0 : index
    %c1_55 = arith.constant 1 : index
    %c1_56 = arith.constant 1 : index
    %c0_57 = arith.constant 0 : index
    %c0_58 = arith.constant 0 : index
    %90 = vector.load %arg1[%c0_54, %c1_55, %c1_56, %c0_57, %c0_58] : memref<1x4x9x9x256xf32, #tpu.memory_space<vmem>>, vector<1x1x7x7x256xf32>
    %91 = vector.shape_cast %90 : vector<1x1x7x7x256xf32> to vector<1x7x7x256xf32>
    %92 = vector.extract_strided_slice %0 {offsets = [2, 1, 0], sizes = [1, 1, 256], strides = [1, 1, 1]} : vector<5x5x256xf32> to vector<1x1x256xf32>
    %93 = vector.shape_cast %92 : vector<1x1x256xf32> to vector<256xf32>
    %94 = vector.shape_cast %93 : vector<256xf32> to vector<1x1x1x256xf32>
    %95 = vector.broadcast %94 : vector<1x1x1x256xf32> to vector<1x7x7x256xf32>
    %96 = arith.mulf %91, %95 : vector<1x7x7x256xf32>
    %97 = arith.addf %89, %96 : vector<1x7x7x256xf32>
    %c0_59 = arith.constant 0 : index
    %c0_60 = arith.constant 0 : index
    %c1_61 = arith.constant 1 : index
    %c1_62 = arith.constant 1 : index
    %c0_63 = arith.constant 0 : index
    %98 = vector.load %arg1[%c0_59, %c0_60, %c1_61, %c1_62, %c0_63] : memref<1x4x9x9x256xf32, #tpu.memory_space<vmem>>, vector<1x1x7x7x256xf32>
    %99 = vector.shape_cast %98 : vector<1x1x7x7x256xf32> to vector<1x7x7x256xf32>
    %100 = vector.extract_strided_slice %0 {offsets = [2, 2, 0], sizes = [1, 1, 256], strides = [1, 1, 1]} : vector<5x5x256xf32> to vector<1x1x256xf32>
    %101 = vector.shape_cast %100 : vector<1x1x256xf32> to vector<256xf32>
    %102 = vector.shape_cast %101 : vector<256xf32> to vector<1x1x1x256xf32>
    %103 = vector.broadcast %102 : vector<1x1x1x256xf32> to vector<1x7x7x256xf32>
    %104 = arith.mulf %99, %103 : vector<1x7x7x256xf32>
    %105 = arith.addf %97, %104 : vector<1x7x7x256xf32>
    %c0_64 = arith.constant 0 : index
    %c1_65 = arith.constant 1 : index
    %c1_66 = arith.constant 1 : index
    %c1_67 = arith.constant 1 : index
    %c0_68 = arith.constant 0 : index
    %106 = vector.load %arg1[%c0_64, %c1_65, %c1_66, %c1_67, %c0_68] : memref<1x4x9x9x256xf32, #tpu.memory_space<vmem>>, vector<1x1x7x7x256xf32>
    %107 = vector.shape_cast %106 : vector<1x1x7x7x256xf32> to vector<1x7x7x256xf32>
    %108 = vector.extract_strided_slice %0 {offsets = [2, 3, 0], sizes = [1, 1, 256], strides = [1, 1, 1]} : vector<5x5x256xf32> to vector<1x1x256xf32>
    %109 = vector.shape_cast %108 : vector<1x1x256xf32> to vector<256xf32>
    %110 = vector.shape_cast %109 : vector<256xf32> to vector<1x1x1x256xf32>
    %111 = vector.broadcast %110 : vector<1x1x1x256xf32> to vector<1x7x7x256xf32>
    %112 = arith.mulf %107, %111 : vector<1x7x7x256xf32>
    %113 = arith.addf %105, %112 : vector<1x7x7x256xf32>
    %c0_69 = arith.constant 0 : index
    %c0_70 = arith.constant 0 : index
    %c1_71 = arith.constant 1 : index
    %c2_72 = arith.constant 2 : index
    %c0_73 = arith.constant 0 : index
    %114 = vector.load %arg1[%c0_69, %c0_70, %c1_71, %c2_72, %c0_73] : memref<1x4x9x9x256xf32, #tpu.memory_space<vmem>>, vector<1x1x7x7x256xf32>
    %115 = vector.shape_cast %114 : vector<1x1x7x7x256xf32> to vector<1x7x7x256xf32>
    %116 = vector.extract_strided_slice %0 {offsets = [2, 4, 0], sizes = [1, 1, 256], strides = [1, 1, 1]} : vector<5x5x256xf32> to vector<1x1x256xf32>
    %117 = vector.shape_cast %116 : vector<1x1x256xf32> to vector<256xf32>
    %118 = vector.shape_cast %117 : vector<256xf32> to vector<1x1x1x256xf32>
    %119 = vector.broadcast %118 : vector<1x1x1x256xf32> to vector<1x7x7x256xf32>
    %120 = arith.mulf %115, %119 : vector<1x7x7x256xf32>
    %121 = arith.addf %113, %120 : vector<1x7x7x256xf32>
    %c0_74 = arith.constant 0 : index
    %c2_75 = arith.constant 2 : index
    %c1_76 = arith.constant 1 : index
    %c0_77 = arith.constant 0 : index
    %c0_78 = arith.constant 0 : index
    %122 = vector.load %arg1[%c0_74, %c2_75, %c1_76, %c0_77, %c0_78] : memref<1x4x9x9x256xf32, #tpu.memory_space<vmem>>, vector<1x1x7x7x256xf32>
    %123 = vector.shape_cast %122 : vector<1x1x7x7x256xf32> to vector<1x7x7x256xf32>
    %124 = vector.extract_strided_slice %0 {offsets = [3, 0, 0], sizes = [1, 1, 256], strides = [1, 1, 1]} : vector<5x5x256xf32> to vector<1x1x256xf32>
    %125 = vector.shape_cast %124 : vector<1x1x256xf32> to vector<256xf32>
    %126 = vector.shape_cast %125 : vector<256xf32> to vector<1x1x1x256xf32>
    %127 = vector.broadcast %126 : vector<1x1x1x256xf32> to vector<1x7x7x256xf32>
    %128 = arith.mulf %123, %127 : vector<1x7x7x256xf32>
    %129 = arith.addf %121, %128 : vector<1x7x7x256xf32>
    %c0_79 = arith.constant 0 : index
    %c3_80 = arith.constant 3 : index
    %c1_81 = arith.constant 1 : index
    %c0_82 = arith.constant 0 : index
    %c0_83 = arith.constant 0 : index
    %130 = vector.load %arg1[%c0_79, %c3_80, %c1_81, %c0_82, %c0_83] : memref<1x4x9x9x256xf32, #tpu.memory_space<vmem>>, vector<1x1x7x7x256xf32>
    %131 = vector.shape_cast %130 : vector<1x1x7x7x256xf32> to vector<1x7x7x256xf32>
    %132 = vector.extract_strided_slice %0 {offsets = [3, 1, 0], sizes = [1, 1, 256], strides = [1, 1, 1]} : vector<5x5x256xf32> to vector<1x1x256xf32>
    %133 = vector.shape_cast %132 : vector<1x1x256xf32> to vector<256xf32>
    %134 = vector.shape_cast %133 : vector<256xf32> to vector<1x1x1x256xf32>
    %135 = vector.broadcast %134 : vector<1x1x1x256xf32> to vector<1x7x7x256xf32>
    %136 = arith.mulf %131, %135 : vector<1x7x7x256xf32>
    %137 = arith.addf %129, %136 : vector<1x7x7x256xf32>
    %c0_84 = arith.constant 0 : index
    %c2_85 = arith.constant 2 : index
    %c1_86 = arith.constant 1 : index
    %c1_87 = arith.constant 1 : index
    %c0_88 = arith.constant 0 : index
    %138 = vector.load %arg1[%c0_84, %c2_85, %c1_86, %c1_87, %c0_88] : memref<1x4x9x9x256xf32, #tpu.memory_space<vmem>>, vector<1x1x7x7x256xf32>
    %139 = vector.shape_cast %138 : vector<1x1x7x7x256xf32> to vector<1x7x7x256xf32>
    %140 = vector.extract_strided_slice %0 {offsets = [3, 2, 0], sizes = [1, 1, 256], strides = [1, 1, 1]} : vector<5x5x256xf32> to vector<1x1x256xf32>
    %141 = vector.shape_cast %140 : vector<1x1x256xf32> to vector<256xf32>
    %142 = vector.shape_cast %141 : vector<256xf32> to vector<1x1x1x256xf32>
    %143 = vector.broadcast %142 : vector<1x1x1x256xf32> to vector<1x7x7x256xf32>
    %144 = arith.mulf %139, %143 : vector<1x7x7x256xf32>
    %145 = arith.addf %137, %144 : vector<1x7x7x256xf32>
    %c0_89 = arith.constant 0 : index
    %c3_90 = arith.constant 3 : index
    %c1_91 = arith.constant 1 : index
    %c1_92 = arith.constant 1 : index
    %c0_93 = arith.constant 0 : index
    %146 = vector.load %arg1[%c0_89, %c3_90, %c1_91, %c1_92, %c0_93] : memref<1x4x9x9x256xf32, #tpu.memory_space<vmem>>, vector<1x1x7x7x256xf32>
    %147 = vector.shape_cast %146 : vector<1x1x7x7x256xf32> to vector<1x7x7x256xf32>
    %148 = vector.extract_strided_slice %0 {offsets = [3, 3, 0], sizes = [1, 1, 256], strides = [1, 1, 1]} : vector<5x5x256xf32> to vector<1x1x256xf32>
    %149 = vector.shape_cast %148 : vector<1x1x256xf32> to vector<256xf32>
    %150 = vector.shape_cast %149 : vector<256xf32> to vector<1x1x1x256xf32>
    %151 = vector.broadcast %150 : vector<1x1x1x256xf32> to vector<1x7x7x256xf32>
    %152 = arith.mulf %147, %151 : vector<1x7x7x256xf32>
    %153 = arith.addf %145, %152 : vector<1x7x7x256xf32>
    %c0_94 = arith.constant 0 : index
    %c2_95 = arith.constant 2 : index
    %c1_96 = arith.constant 1 : index
    %c2_97 = arith.constant 2 : index
    %c0_98 = arith.constant 0 : index
    %154 = vector.load %arg1[%c0_94, %c2_95, %c1_96, %c2_97, %c0_98] : memref<1x4x9x9x256xf32, #tpu.memory_space<vmem>>, vector<1x1x7x7x256xf32>
    %155 = vector.shape_cast %154 : vector<1x1x7x7x256xf32> to vector<1x7x7x256xf32>
    %156 = vector.extract_strided_slice %0 {offsets = [3, 4, 0], sizes = [1, 1, 256], strides = [1, 1, 1]} : vector<5x5x256xf32> to vector<1x1x256xf32>
    %157 = vector.shape_cast %156 : vector<1x1x256xf32> to vector<256xf32>
    %158 = vector.shape_cast %157 : vector<256xf32> to vector<1x1x1x256xf32>
    %159 = vector.broadcast %158 : vector<1x1x1x256xf32> to vector<1x7x7x256xf32>
    %160 = arith.mulf %155, %159 : vector<1x7x7x256xf32>
    %161 = arith.addf %153, %160 : vector<1x7x7x256xf32>
    %c0_99 = arith.constant 0 : index
    %c0_100 = arith.constant 0 : index
    %c2_101 = arith.constant 2 : index
    %c0_102 = arith.constant 0 : index
    %c0_103 = arith.constant 0 : index
    %162 = vector.load %arg1[%c0_99, %c0_100, %c2_101, %c0_102, %c0_103] : memref<1x4x9x9x256xf32, #tpu.memory_space<vmem>>, vector<1x1x7x7x256xf32>
    %163 = vector.shape_cast %162 : vector<1x1x7x7x256xf32> to vector<1x7x7x256xf32>
    %164 = vector.extract_strided_slice %0 {offsets = [4, 0, 0], sizes = [1, 1, 256], strides = [1, 1, 1]} : vector<5x5x256xf32> to vector<1x1x256xf32>
    %165 = vector.shape_cast %164 : vector<1x1x256xf32> to vector<256xf32>
    %166 = vector.shape_cast %165 : vector<256xf32> to vector<1x1x1x256xf32>
    %167 = vector.broadcast %166 : vector<1x1x1x256xf32> to vector<1x7x7x256xf32>
    %168 = arith.mulf %163, %167 : vector<1x7x7x256xf32>
    %169 = arith.addf %161, %168 : vector<1x7x7x256xf32>
    %c0_104 = arith.constant 0 : index
    %c1_105 = arith.constant 1 : index
    %c2_106 = arith.constant 2 : index
    %c0_107 = arith.constant 0 : index
    %c0_108 = arith.constant 0 : index
    %170 = vector.load %arg1[%c0_104, %c1_105, %c2_106, %c0_107, %c0_108] : memref<1x4x9x9x256xf32, #tpu.memory_space<vmem>>, vector<1x1x7x7x256xf32>
    %171 = vector.shape_cast %170 : vector<1x1x7x7x256xf32> to vector<1x7x7x256xf32>
    %172 = vector.extract_strided_slice %0 {offsets = [4, 1, 0], sizes = [1, 1, 256], strides = [1, 1, 1]} : vector<5x5x256xf32> to vector<1x1x256xf32>
    %173 = vector.shape_cast %172 : vector<1x1x256xf32> to vector<256xf32>
    %174 = vector.shape_cast %173 : vector<256xf32> to vector<1x1x1x256xf32>
    %175 = vector.broadcast %174 : vector<1x1x1x256xf32> to vector<1x7x7x256xf32>
    %176 = arith.mulf %171, %175 : vector<1x7x7x256xf32>
    %177 = arith.addf %169, %176 : vector<1x7x7x256xf32>
    %c0_109 = arith.constant 0 : index
    %c0_110 = arith.constant 0 : index
    %c2_111 = arith.constant 2 : index
    %c1_112 = arith.constant 1 : index
    %c0_113 = arith.constant 0 : index
    %178 = vector.load %arg1[%c0_109, %c0_110, %c2_111, %c1_112, %c0_113] : memref<1x4x9x9x256xf32, #tpu.memory_space<vmem>>, vector<1x1x7x7x256xf32>
    %179 = vector.shape_cast %178 : vector<1x1x7x7x256xf32> to vector<1x7x7x256xf32>
    %180 = vector.extract_strided_slice %0 {offsets = [4, 2, 0], sizes = [1, 1, 256], strides = [1, 1, 1]} : vector<5x5x256xf32> to vector<1x1x256xf32>
    %181 = vector.shape_cast %180 : vector<1x1x256xf32> to vector<256xf32>
    %182 = vector.shape_cast %181 : vector<256xf32> to vector<1x1x1x256xf32>
    %183 = vector.broadcast %182 : vector<1x1x1x256xf32> to vector<1x7x7x256xf32>
    %184 = arith.mulf %179, %183 : vector<1x7x7x256xf32>
    %185 = arith.addf %177, %184 : vector<1x7x7x256xf32>
    %c0_114 = arith.constant 0 : index
    %c1_115 = arith.constant 1 : index
    %c2_116 = arith.constant 2 : index
    %c1_117 = arith.constant 1 : index
    %c0_118 = arith.constant 0 : index
    %186 = vector.load %arg1[%c0_114, %c1_115, %c2_116, %c1_117, %c0_118] : memref<1x4x9x9x256xf32, #tpu.memory_space<vmem>>, vector<1x1x7x7x256xf32>
    %187 = vector.shape_cast %186 : vector<1x1x7x7x256xf32> to vector<1x7x7x256xf32>
    %188 = vector.extract_strided_slice %0 {offsets = [4, 3, 0], sizes = [1, 1, 256], strides = [1, 1, 1]} : vector<5x5x256xf32> to vector<1x1x256xf32>
    %189 = vector.shape_cast %188 : vector<1x1x256xf32> to vector<256xf32>
    %190 = vector.shape_cast %189 : vector<256xf32> to vector<1x1x1x256xf32>
    %191 = vector.broadcast %190 : vector<1x1x1x256xf32> to vector<1x7x7x256xf32>
    %192 = arith.mulf %187, %191 : vector<1x7x7x256xf32>
    %193 = arith.addf %185, %192 : vector<1x7x7x256xf32>
    %c0_119 = arith.constant 0 : index
    %c0_120 = arith.constant 0 : index
    %c2_121 = arith.constant 2 : index
    %c2_122 = arith.constant 2 : index
    %c0_123 = arith.constant 0 : index
    %194 = vector.load %arg1[%c0_119, %c0_120, %c2_121, %c2_122, %c0_123] : memref<1x4x9x9x256xf32, #tpu.memory_space<vmem>>, vector<1x1x7x7x256xf32>
    %195 = vector.shape_cast %194 : vector<1x1x7x7x256xf32> to vector<1x7x7x256xf32>
    %196 = vector.extract_strided_slice %0 {offsets = [4, 4, 0], sizes = [1, 1, 256], strides = [1, 1, 1]} : vector<5x5x256xf32> to vector<1x1x256xf32>
    %197 = vector.shape_cast %196 : vector<1x1x256xf32> to vector<256xf32>
    %198 = vector.shape_cast %197 : vector<256xf32> to vector<1x1x1x256xf32>
    %199 = vector.broadcast %198 : vector<1x1x1x256xf32> to vector<1x7x7x256xf32>
    %200 = arith.mulf %195, %199 : vector<1x7x7x256xf32>
    %201 = arith.addf %193, %200 : vector<1x7x7x256xf32>
    %cst_124 = arith.constant dense<0.000000e+00> : vector<256xf32>
    %202 = vector.multi_reduction <add>, %201, %cst_124 [0, 1, 2] : vector<1x7x7x256xf32> to vector<256xf32>
    %203 = arith.mulf %201, %201 : vector<1x7x7x256xf32>
    %cst_125 = arith.constant dense<0.000000e+00> : vector<256xf32>
    %204 = vector.multi_reduction <add>, %203, %cst_125 [0, 1, 2] : vector<1x7x7x256xf32> to vector<256xf32>
    %cst_126 = arith.constant 0.0204081628 : f32
    %205 = vector.broadcast %cst_126 : f32 to vector<256xf32>
    %206 = arith.mulf %202, %205 : vector<256xf32>
    %cst_127 = arith.constant 0.0204081628 : f32
    %207 = vector.broadcast %cst_127 : f32 to vector<256xf32>
    %208 = arith.mulf %204, %207 : vector<256xf32>
    %209 = arith.mulf %206, %206 : vector<256xf32>
    %210 = arith.subf %208, %209 : vector<256xf32>
    %cst_128 = arith.constant 0.000000e+00 : f32
    %211 = vector.broadcast %cst_128 : f32 to vector<256xf32>
    %212 = arith.maximumf %210, %211 : vector<256xf32>
    %c0_129 = arith.constant 0 : index
    %c0_130 = arith.constant 0 : index
    %213 = vector.load %arg3[%c0_129, %c0_130] : memref<1x256xf32, #tpu.memory_space<vmem>>, vector<1x256xf32>
    %214 = vector.shape_cast %213 : vector<1x256xf32> to vector<256xf32>
    %c0_131 = arith.constant 0 : index
    %c0_132 = arith.constant 0 : index
    %215 = vector.load %arg4[%c0_131, %c0_132] : memref<1x256xf32, #tpu.memory_space<vmem>>, vector<1x256xf32>
    %216 = vector.shape_cast %215 : vector<1x256xf32> to vector<256xf32>
    %cst_133 = arith.constant 9.99999974E-6 : f32
    %217 = vector.broadcast %cst_133 : f32 to vector<256xf32>
    %218 = arith.addf %212, %217 : vector<256xf32>
    %219 = math.rsqrt %218 : vector<256xf32>
    %220 = arith.mulf %214, %219 : vector<256xf32>
    %221 = arith.mulf %206, %220 : vector<256xf32>
    %222 = arith.subf %216, %221 : vector<256xf32>
    %223 = vector.shape_cast %220 : vector<256xf32> to vector<1x1x1x256xf32>
    %224 = vector.broadcast %223 : vector<1x1x1x256xf32> to vector<1x7x7x256xf32>
    %225 = arith.mulf %201, %224 : vector<1x7x7x256xf32>
    %226 = vector.shape_cast %222 : vector<256xf32> to vector<1x1x1x256xf32>
    %227 = vector.broadcast %226 : vector<1x1x1x256xf32> to vector<1x7x7x256xf32>
    %228 = arith.addf %225, %227 : vector<1x7x7x256xf32>
    %c0_134 = arith.constant 0 : index
    %c0_135 = arith.constant 0 : index
    %c0_136 = arith.constant 0 : index
    %c0_137 = arith.constant 0 : index
    %229 = vector.load %arg5[%c0_134, %c0_135, %c0_136, %c0_137] : memref<1x7x7x256xf32, #tpu.memory_space<vmem>>, vector<1x7x7x256xf32>
    tpu.vector_store %arg5[%c0_134, %c0_135, %c0_136, %c0_137], %228 {strides = array<i32>} : memref<1x7x7x256xf32, #tpu.memory_space<vmem>>, vector<1x7x7x256xf32>,
    return
  }
  func.func @transform_0(%arg0: i32) -> (i32, i32, i32, i32, i32) {
    %c0_i32 = arith.constant 0 : i32
    %c0_i32_0 = arith.constant 0 : i32
    %c0_i32_1 = arith.constant 0 : i32
    %c0_i32_2 = arith.constant 0 : i32
    %c0_i32_3 = arith.constant 0 : i32
    return %c0_i32, %c0_i32_0, %c0_i32_1, %c0_i32_2, %arg0 : i32, i32, i32, i32, i32
  }
  func.func @transform_1(%arg0: i32) -> (i32, i32, i32) {
    %c0_i32 = arith.constant 0 : i32
    %c0_i32_0 = arith.constant 0 : i32
    %c0_i32_1 = arith.constant 0 : i32
    return %c0_i32, %c0_i32_0, %arg0 : i32, i32, i32
  }
  func.func @transform_2(%arg0: i32) -> (i32, i32) {
    %c0_i32 = arith.constant 0 : i32
    %c0_i32_0 = arith.constant 0 : i32
    return %c0_i32, %arg0 : i32, i32
  }
  func.func @transform_3(%arg0: i32) -> (i32, i32) {
    %c0_i32 = arith.constant 0 : i32
    %c0_i32_0 = arith.constant 0 : i32
    return %c0_i32, %arg0 : i32, i32
  }
  func.func @transform_4(%arg0: i32) -> (i32, i32, i32, i32) {
    %c0_i32 = arith.constant 0 : i32
    %c0_i32_0 = arith.constant 0 : i32
    %c0_i32_1 = arith.constant 0 : i32
    %c0_i32_2 = arith.constant 0 : i32
    return %c0_i32, %c0_i32_0, %c0_i32_1, %arg0 : i32, i32, i32, i32
  }
}

</mosaic_0001>

<llo_original>
// kernel: tpu_custom_call.1
$region0: #{tpu_custom_call.1}
  #allocation0 [shape = 'u32[]', space=smem, size = 0x4, offset = 0x4, fixed_abs, tag = 'smem constant byte address 0x4 - core index']
  #allocation1 [shape = 'u32[72,128]{1,0:T(1,128)}', space=vmem, size = 0x9000, scoped, tag = 'internal scratch']
  %s0 = inlined_call_operand.vmem [shape: f32[1,4,9,9,1024], index: 0, kind: input, shape index: {}]
  %s1 = inlined_call_operand.vmem [shape: f32[5,5,1024], index: 1, kind: input, shape index: {}]
  %s2 = inlined_call_operand.vmem [shape: f32[1,1024], index: 2, kind: input, shape index: {}]
  %s3 = inlined_call_operand.vmem [shape: f32[1,1024], index: 3, kind: input, shape index: {}]
  %s4 = inlined_call_operand.vmem [shape: f32[1,7,7,1024], index: 4, kind: output, shape index: {}]
  %s5 = sld [smem:[#allocation0]]
  $region114: #{tpu_custom_call.1} parent=0
    _
  %s7 = ssub.s32 1, %s5
  %s8 = scalar_select 0, %s7, %s5
  $region1: #{tpu_custom_call.1} parent=0
    #allocation2 [shape = 'u8[1179648]{0}', space=vmem, size = 0x120000, scoped, tag = 'input window, operand 0']
    #allocation3 [shape = 'u8[81920]{0}', space=vmem, size = 0x14000, scoped, tag = 'input window, operand 1']
    #allocation4 [shape = 'u8[114688]{0}', space=vmem, size = 0x1c000, scoped, tag = 'output window, operand 0']
    loop: start=0, step=1, limit=6
    $region2: #{tpu_custom_call.1} parent=1 // loop_pre_header
      _
    $region3: #{tpu_custom_call.1} parent=1 // loop_header
      %s10 = sphi 0, %s14
      %p11 = scmp.ge.s32.totalorder %s10, 6
      %s20 = sphi 0, %s22
      %s23 = sphi 0, %s20
      %s24 = sphi 0, %s23
      %s40 = sphi 0, %s24
      %s46 = sphi 0, %s48
      %s49 = sphi 0, %s46
      %s50 = sphi 0, %s49
      %s66 = sphi 0, %s50
      %s72 = sphi 0, %s74
      %s75 = sphi 0, %s72
      %s76 = sphi 0, %s75
      %s92 = sphi 0, %s76
      %s98 = sphi 0, %s100
      %s101 = sphi 0, %s98
      %s102 = sphi 0, %s101
      %s118 = sphi 0, %s102
      %s124 = sphi 0, %s126
      %s127 = sphi 0, %s124
      %s128 = sphi 0, %s127
      %s144 = sphi 0, %s128
    $region4: #{tpu_custom_call.1} parent=1 // loop_header_branch
      %13 = sbr.rel (%p11) target = $region8
    $region5: #{tpu_custom_call.1} parent=1 // loop_body
      %s15 = ssub.s32 %s10, 1
      %s16 = ssub.s32 %s10, 2
      %s17 = sadd.s32 %s10, 1
      %s18 = ssub.s32 %s10, %s17
      %p19 = scmp.eq.s32.totalorder %s18, 0
      %s21 = sadd.s32 %s20, 1
      %s22 = scalar_select %p19, %s20, %s21
      %p25 = pneg %p19
      %p26 = scmp.eq.s32.totalorder %s10, 3
      %p27 = por %p25, %p26
      %p28 = scmp.ne.s32.totalorder %s20, %s23
      %p29 = scmp.eq.s32.totalorder %s10, 0
      %p30 = por %p28, %p29
      %p31 = scmp.ne.s32.totalorder %s20, %s23
      %p32 = scmp.eq.s32.totalorder %s15, 3
      %p33 = por %p31, %p32
      %p34 = scmp.ne.s32.totalorder %s23, %s24
      %p35 = scmp.eq.s32.totalorder %s15, 0
      %p36 = por %p34, %p35
      %p37 = scmp.ne.s32.totalorder %s23, %s24
      %p38 = scmp.eq.s32.totalorder %s16, 3
      %p39 = por %p37, %p38
      %p41 = scmp.ne.s32.totalorder %s24, %s40
      %p42 = scmp.eq.s32.totalorder %s16, 0
      %p43 = por %p41, %p42
      %s44 = ssub.s32 %s10, %s17
      %p45 = scmp.eq.s32.totalorder %s44, 0
      %s47 = sadd.s32 %s46, 1
      %s48 = scalar_select %p45, %s46, %s47
      %p51 = pneg %p45
      %p52 = scmp.eq.s32.totalorder %s10, 3
      %p53 = por %p51, %p52
      %p54 = scmp.ne.s32.totalorder %s46, %s49
      %p55 = scmp.eq.s32.totalorder %s10, 0
      %p56 = por %p54, %p55
      %p57 = scmp.ne.s32.totalorder %s46, %s49
      %p58 = scmp.eq.s32.totalorder %s15, 3
      %p59 = por %p57, %p58
      %p60 = scmp.ne.s32.totalorder %s49, %s50
      %p61 = scmp.eq.s32.totalorder %s15, 0
      %p62 = por %p60, %p61
      %p63 = scmp.ne.s32.totalorder %s49, %s50
      %p64 = scmp.eq.s32.totalorder %s16, 3
      %p65 = por %p63, %p64
      %p67 = scmp.ne.s32.totalorder %s50, %s66
      %p68 = scmp.eq.s32.totalorder %s16, 0
      %p69 = por %p67, %p68
      %s70 = ssub.s32 %s10, %s17
      %p71 = scmp.eq.s32.totalorder %s70, 0
      %s73 = sadd.s32 %s72, 1
      %s74 = scalar_select %p71, %s72, %s73
      %p77 = pneg %p71
      %p78 = scmp.eq.s32.totalorder %s10, 3
      %p79 = por %p77, %p78
      %p80 = scmp.ne.s32.totalorder %s72, %s75
      %p81 = scmp.eq.s32.totalorder %s10, 0
      %p82 = por %p80, %p81
      %p83 = scmp.ne.s32.totalorder %s72, %s75
      %p84 = scmp.eq.s32.totalorder %s15, 3
      %p85 = por %p83, %p84
      %p86 = scmp.ne.s32.totalorder %s75, %s76
      %p87 = scmp.eq.s32.totalorder %s15, 0
      %p88 = por %p86, %p87
      %p89 = scmp.ne.s32.totalorder %s75, %s76
      %p90 = scmp.eq.s32.totalorder %s16, 3
      %p91 = por %p89, %p90
      %p93 = scmp.ne.s32.totalorder %s76, %s92
      %p94 = scmp.eq.s32.totalorder %s16, 0
      %p95 = por %p93, %p94
      %s96 = ssub.s32 %s10, %s17
      %p97 = scmp.eq.s32.totalorder %s96, 0
      %s99 = sadd.s32 %s98, 1
      %s100 = scalar_select %p97, %s98, %s99
      %p103 = pneg %p97
      %p104 = scmp.eq.s32.totalorder %s10, 3
      %p105 = por %p103, %p104
      %p106 = scmp.ne.s32.totalorder %s98, %s101
      %p107 = scmp.eq.s32.totalorder %s10, 0
      %p108 = por %p106, %p107
      %p109 = scmp.ne.s32.totalorder %s98, %s101
      %p110 = scmp.eq.s32.totalorder %s15, 3
      %p111 = por %p109, %p110
      %p112 = scmp.ne.s32.totalorder %s101, %s102
      %p113 = scmp.eq.s32.totalorder %s15, 0
      %p114 = por %p112, %p113
      %p115 = scmp.ne.s32.totalorder %s101, %s102
      %p116 = scmp.eq.s32.totalorder %s16, 3
      %p117 = por %p115, %p116
      %p119 = scmp.ne.s32.totalorder %s102, %s118
      %p120 = scmp.eq.s32.totalorder %s16, 0
      %p121 = por %p119, %p120
      %s122 = ssub.s32 %s10, %s17
      %p123 = scmp.eq.s32.totalorder %s122, 0
      %s125 = sadd.s32 %s124, 1
      %s126 = scalar_select %p123, %s124, %s125
      %p129 = pneg %p123
      %p130 = scmp.eq.s32.totalorder %s10, 3
      %p131 = por %p129, %p130
      %p132 = scmp.ne.s32.totalorder %s124, %s127
      %p133 = scmp.eq.s32.totalorder %s10, 0
      %p134 = por %p132, %p133
      %p135 = scmp.ne.s32.totalorder %s124, %s127
      %p136 = scmp.eq.s32.totalorder %s15, 3
      %p137 = por %p135, %p136
      %p138 = scmp.ne.s32.totalorder %s127, %s128
      %p139 = scmp.eq.s32.totalorder %s15, 0
      %p140 = por %p138, %p139
      %p141 = scmp.ne.s32.totalorder %s127, %s128
      %p142 = scmp.eq.s32.totalorder %s16, 3
      %p143 = por %p141, %p142
      %p145 = scmp.ne.s32.totalorder %s128, %s144
      %p146 = scmp.eq.s32.totalorder %s16, 0
      %p147 = por %p145, %p146
      %p148 = scmp.le.s32.totalorder 1, %s10
      %p149 = scmp.lt.s32.totalorder %s10, 5
      %p150 = pnand %p148, %p149
      %p151 = pneg %p150
      // Predicated region
      $region9: #{tpu_custom_call.1} parent=5 // pred_check
        _
      $region10: #{tpu_custom_call.1} parent=5 // pred_check_branch
        %153 = sbr.rel (%p150) target = $region12
      $region11: #{tpu_custom_call.1} parent=5 // pred_region
        %s154 = ssub.s32 %s10, 1
      $region12: #{tpu_custom_call.1} parent=5 // pred_fallthru
        _
      %p155 = scmp.lt.s32.totalorder %s10, 4
      // Predicated region
      $region13: #{tpu_custom_call.1} parent=5 // pred_check
        %p156 = pneg %p155
      $region14: #{tpu_custom_call.1} parent=5 // pred_check_branch
        %158 = sbr.rel (%p156) target = $region16
      $region15: #{tpu_custom_call.1} parent=5 // pred_region
        // Predicated region
        $region17: #{tpu_custom_call.1} parent=15 // pred_check
          %p159 = pneg %p30
        $region18: #{tpu_custom_call.1} parent=15 // pred_check_branch
          %161 = sbr.rel (%p159) target = $region20
        $region19: #{tpu_custom_call.1} parent=15 // pred_region
          %s162 = sand.u32 %s20, 1
          %s163 = sand.u32 %s20, 1
          %s164 = smul.addr %s163, 1152
          %s165 = scalar_lea.vmem [#allocation2], %s164
          %s166 = smul.u32 2, %s10
          %s167 = smul.addr %s166, 8
          %s168 = scalar_lea.vmem %s0, %s167
          // Predicated region
          $region21: #{tpu_custom_call.1} parent=19 // pred_check
            _
          $region22: #{tpu_custom_call.1} parent=19 // pred_check_branch
            %170 = sbr.rel (0) target = $region24
          $region23: #{tpu_custom_call.1} parent=19 // pred_region
            // Predicated region
            $region25: #{tpu_custom_call.1} parent=23 // pred_check
              _
            $region26: #{tpu_custom_call.1} parent=23 // pred_check_branch
              %172 = sbr.rel (0) target = $region28
            $region27: #{tpu_custom_call.1} parent=23 // pred_region
              loop: start=0, step=1, limit=1
              $region29: #{tpu_custom_call.1} parent=27 // loop_pre_header
                _
              $region30: #{tpu_custom_call.1} parent=27 // loop_header
                %s174 = sphi 0, %s178
                %p175 = scmp.ge.s32.totalorder %s174, 1
                %s179 = sphi %s168, %s168
                %s180 = sphi %s165, %s165
              $region31: #{tpu_custom_call.1} parent=27 // loop_header_branch
                %177 = sbr.rel (%p175) target = $region35
              $region32: #{tpu_custom_call.1} parent=27 // loop_body
                %v181 = vld [vmem:[%s179] sm:$0xff]
                %182 = vst [vmem:[%s180] sm:$0xff] %v181
                %v183 = vld [vmem:[%s179 + $0x8] sm:$0xff]
                %184 = vst [vmem:[%s180 + $0x8] sm:$0xff] %v183
                %v185 = vld [vmem:[%s179 + $0x40] sm:$0xff]
                %186 = vst [vmem:[%s180 + $0x10] sm:$0xff] %v185
                %v187 = vld [vmem:[%s179 + $0x48] sm:$0xff]
                %188 = vst [vmem:[%s180 + $0x18] sm:$0xff] %v187
                %v189 = vld [vmem:[%s179 + $0x80] sm:$0xff]
                %190 = vst [vmem:[%s180 + $0x20] sm:$0xff] %v189
                %v191 = vld [vmem:[%s179 + $0x88] sm:$0xff]
                %192 = vst [vmem:[%s180 + $0x28] sm:$0xff] %v191
                %v193 = vld [vmem:[%s179 + $0xc0] sm:$0xff]
                %194 = vst [vmem:[%s180 + $0x30] sm:$0xff] %v193
                %v195 = vld [vmem:[%s179 + $0xc8] sm:$0xff]
                %196 = vst [vmem:[%s180 + $0x38] sm:$0xff] %v195
                %v197 = vld [vmem:[%s179 + $0x100] sm:$0xff]
                %198 = vst [vmem:[%s180 + $0x40] sm:$0xff] %v197
                %v199 = vld [vmem:[%s179 + $0x108] sm:$0xff]
                %200 = vst [vmem:[%s180 + $0x48] sm:$0xff] %v199
                %v201 = vld [vmem:[%s179 + $0x140] sm:$0xff]
                %202 = vst [vmem:[%s180 + $0x50] sm:$0xff] %v201
                %v203 = vld [vmem:[%s179 + $0x148] sm:$0xff]
                %204 = vst [vmem:[%s180 + $0x58] sm:$0xff] %v203
                %v205 = vld [vmem:[%s179 + $0x180] sm:$0xff]
                %206 = vst [vmem:[%s180 + $0x60] sm:$0xff] %v205
                %v207 = vld [vmem:[%s179 + $0x188] sm:$0xff]
                %208 = vst [vmem:[%s180 + $0x68] sm:$0xff] %v207
                %v209 = vld [vmem:[%s179 + $0x1c0] sm:$0xff]
                %210 = vst [vmem:[%s180 + $0x70] sm:$0xff] %v209
                %v211 = vld [vmem:[%s179 + $0x1c8] sm:$0xff]
                %212 = vst [vmem:[%s180 + $0x78] sm:$0xff] %v211
                %v213 = vld [vmem:[%s179 + $0x200] sm:$0xff]
                %214 = vst [vmem:[%s180 + $0x80] sm:$0xff] %v213
                %v215 = vld [vmem:[%s179 + $0x208] sm:$0xff]
                %216 = vst [vmem:[%s180 + $0x88] sm:$0xff] %v215
                %v217 = vld [vmem:[%s179 + $0x240] sm:$0xff]
                %218 = vst [vmem:[%s180 + $0x90] sm:$0xff] %v217
                %v219 = vld [vmem:[%s179 + $0x248] sm:$0xff]
                %220 = vst [vmem:[%s180 + $0x98] sm:$0xff] %v219
                %v221 = vld [vmem:[%s179 + $0x280] sm:$0xff]
                %222 = vst [vmem:[%s180 + $0xa0] sm:$0xff] %v221
                %v223 = vld [vmem:[%s179 + $0x288] sm:$0xff]
                %224 = vst [vmem:[%s180 + $0xa8] sm:$0xff] %v223
                %v225 = vld [vmem:[%s179 + $0x2c0] sm:$0xff]
                %226 = vst [vmem:[%s180 + $0xb0] sm:$0xff] %v225
                %v227 = vld [vmem:[%s179 + $0x2c8] sm:$0xff]
                %228 = vst [vmem:[%s180 + $0xb8] sm:$0xff] %v227
                %v229 = vld [vmem:[%s179 + $0x300] sm:$0xff]
                %230 = vst [vmem:[%s180 + $0xc0] sm:$0xff] %v229
                %v231 = vld [vmem:[%s179 + $0x308] sm:$0xff]
                %232 = vst [vmem:[%s180 + $0xc8] sm:$0xff] %v231
                %v233 = vld [vmem:[%s179 + $0x340] sm:$0xff]
                %234 = vst [vmem:[%s180 + $0xd0] sm:$0xff] %v233
                %v235 = vld [vmem:[%s179 + $0x348] sm:$0xff]
                %236 = vst [vmem:[%s180 + $0xd8] sm:$0xff] %v235
                %v237 = vld [vmem:[%s179 + $0x380] sm:$0xff]
                %238 = vst [vmem:[%s180 + $0xe0] sm:$0xff] %v237
                %v239 = vld [vmem:[%s179 + $0x388] sm:$0xff]
                %240 = vst [vmem:[%s180 + $0xe8] sm:$0xff] %v239
                %v241 = vld [vmem:[%s179 + $0x3c0] sm:$0xff]
                %242 = vst [vmem:[%s180 + $0xf0] sm:$0xff] %v241
                %v243 = vld [vmem:[%s179 + $0x3c8] sm:$0xff]
                %244 = vst [vmem:[%s180 + $0xf8] sm:$0xff] %v243
                %v245 = vld [vmem:[%s179 + $0x400] sm:$0xff]
                %246 = vst [vmem:[%s180 + $0x100] sm:$0xff] %v245
                %v247 = vld [vmem:[%s179 + $0x408] sm:$0xff]
                %248 = vst [vmem:[%s180 + $0x108] sm:$0xff] %v247
                %v249 = vld [vmem:[%s179 + $0x440] sm:$0xff]
                %250 = vst [vmem:[%s180 + $0x110] sm:$0xff] %v249
                %v251 = vld [vmem:[%s179 + $0x448] sm:$0xff]
                %252 = vst [vmem:[%s180 + $0x118] sm:$0xff] %v251
                %v253 = vld [vmem:[%s179 + $0x480] sm:$0xff]
                %254 = vst [vmem:[%s180 + $0x120] sm:$0xff] %v253
                %v255 = vld [vmem:[%s179 + $0x488] sm:$0xff]
                %256 = vst [vmem:[%s180 + $0x128] sm:$0xff] %v255
                %v257 = vld [vmem:[%s179 + $0x4c0] sm:$0xff]
                %258 = vst [vmem:[%s180 + $0x130] sm:$0xff] %v257
                %v259 = vld [vmem:[%s179 + $0x4c8] sm:$0xff]
                %260 = vst [vmem:[%s180 + $0x138] sm:$0xff] %v259
                %v261 = vld [vmem:[%s179 + $0x500] sm:$0xff]
                %262 = vst [vmem:[%s180 + $0x140] sm:$0xff] %v261
                %v263 = vld [vmem:[%s179 + $0x508] sm:$0xff]
                %264 = vst [vmem:[%s180 + $0x148] sm:$0xff] %v263
                %v265 = vld [vmem:[%s179 + $0x540] sm:$0xff]
                %266 = vst [vmem:[%s180 + $0x150] sm:$0xff] %v265
                %v267 = vld [vmem:[%s179 + $0x548] sm:$0xff]
                %268 = vst [vmem:[%s180 + $0x158] sm:$0xff] %v267
                %v269 = vld [vmem:[%s179 + $0x580] sm:$0xff]
                %270 = vst [vmem:[%s180 + $0x160] sm:$0xff] %v269
                %v271 = vld [vmem:[%s179 + $0x588] sm:$0xff]
                %272 = vst [vmem:[%s180 + $0x168] sm:$0xff] %v271
                %v273 = vld [vmem:[%s179 + $0x5c0] sm:$0xff]
                %274 = vst [vmem:[%s180 + $0x170] sm:$0xff] %v273
                %v275 = vld [vmem:[%s179 + $0x5c8] sm:$0xff]
                %276 = vst [vmem:[%s180 + $0x178] sm:$0xff] %v275
                %v277 = vld [vmem:[%s179 + $0x600] sm:$0xff]
                %278 = vst [vmem:[%s180 + $0x180] sm:$0xff] %v277
                %v279 = vld [vmem:[%s179 + $0x608] sm:$0xff]
                %280 = vst [vmem:[%s180 + $0x188] sm:$0xff] %v279
                %v281 = vld [vmem:[%s179 + $0x640] sm:$0xff]
                %282 = vst [vmem:[%s180 + $0x190] sm:$0xff] %v281
                %v283 = vld [vmem:[%s179 + $0x648] sm:$0xff]
                %284 = vst [vmem:[%s180 + $0x198] sm:$0xff] %v283
                %v285 = vld [vmem:[%s179 + $0x680] sm:$0xff]
                %286 = vst [vmem:[%s180 + $0x1a0] sm:$0xff] %v285
                %v287 = vld [vmem:[%s179 + $0x688] sm:$0xff]
                %288 = vst [vmem:[%s180 + $0x1a8] sm:$0xff] %v287
                %v289 = vld [vmem:[%s179 + $0x6c0] sm:$0xff]
                %290 = vst [vmem:[%s180 + $0x1b0] sm:$0xff] %v289
                %v291 = vld [vmem:[%s179 + $0x6c8] sm:$0xff]
                %292 = vst [vmem:[%s180 + $0x1b8] sm:$0xff] %v291
                %v293 = vld [vmem:[%s179 + $0x700] sm:$0xff]
                %294 = vst [vmem:[%s180 + $0x1c0] sm:$0xff] %v293
                %v295 = vld [vmem:[%s179 + $0x708] sm:$0xff]
                %296 = vst [vmem:[%s180 + $0x1c8] sm:$0xff] %v295
                %v297 = vld [vmem:[%s179 + $0x740] sm:$0xff]
                %298 = vst [vmem:[%s180 + $0x1d0] sm:$0xff] %v297
                %v299 = vld [vmem:[%s179 + $0x748] sm:$0xff]
                %300 = vst [vmem:[%s180 + $0x1d8] sm:$0xff] %v299
                %v301 = vld [vmem:[%s179 + $0x780] sm:$0xff]
                %302 = vst [vmem:[%s180 + $0x1e0] sm:$0xff] %v301
                %v303 = vld [vmem:[%s179 + $0x788] sm:$0xff]
                %304 = vst [vmem:[%s180 + $0x1e8] sm:$0xff] %v303
                %v305 = vld [vmem:[%s179 + $0x7c0] sm:$0xff]
                %306 = vst [vmem:[%s180 + $0x1f0] sm:$0xff] %v305
                %v307 = vld [vmem:[%s179 + $0x7c8] sm:$0xff]
                %308 = vst [vmem:[%s180 + $0x1f8] sm:$0xff] %v307
                %v309 = vld [vmem:[%s179 + $0x800] sm:$0xff]
                %310 = vst [vmem:[%s180 + $0x200] sm:$0xff] %v309
                %v311 = vld [vmem:[%s179 + $0x808] sm:$0xff]
                %312 = vst [vmem:[%s180 + $0x208] sm:$0xff] %v311
                %v313 = vld [vmem:[%s179 + $0x840] sm:$0xff]
                %314 = vst [vmem:[%s180 + $0x210] sm:$0xff] %v313
                %v315 = vld [vmem:[%s179 + $0x848] sm:$0xff]
                %316 = vst [vmem:[%s180 + $0x218] sm:$0xff] %v315
                %v317 = vld [vmem:[%s179 + $0x880] sm:$0xff]
                %318 = vst [vmem:[%s180 + $0x220] sm:$0xff] %v317
                %v319 = vld [vmem:[%s179 + $0x888] sm:$0xff]
                %320 = vst [vmem:[%s180 + $0x228] sm:$0xff] %v319
                %v321 = vld [vmem:[%s179 + $0x8c0] sm:$0xff]
                %322 = vst [vmem:[%s180 + $0x230] sm:$0xff] %v321
                %v323 = vld [vmem:[%s179 + $0x8c8] sm:$0xff]
                %324 = vst [vmem:[%s180 + $0x238] sm:$0xff] %v323
                %v325 = vld [vmem:[%s179 + $0x900] sm:$0xff]
                %326 = vst [vmem:[%s180 + $0x240] sm:$0xff] %v325
                %v327 = vld [vmem:[%s179 + $0x908] sm:$0xff]
                %328 = vst [vmem:[%s180 + $0x248] sm:$0xff] %v327
                %v329 = vld [vmem:[%s179 + $0x940] sm:$0xff]
                %330 = vst [vmem:[%s180 + $0x250] sm:$0xff] %v329
                %v331 = vld [vmem:[%s179 + $0x948] sm:$0xff]
                %332 = vst [vmem:[%s180 + $0x258] sm:$0xff] %v331
                %v333 = vld [vmem:[%s179 + $0x980] sm:$0xff]
                %334 = vst [vmem:[%s180 + $0x260] sm:$0xff] %v333
                %v335 = vld [vmem:[%s179 + $0x988] sm:$0xff]
                %336 = vst [vmem:[%s180 + $0x268] sm:$0xff] %v335
                %v337 = vld [vmem:[%s179 + $0x9c0] sm:$0xff]
                %338 = vst [vmem:[%s180 + $0x270] sm:$0xff] %v337
                %v339 = vld [vmem:[%s179 + $0x9c8] sm:$0xff]
                %340 = vst [vmem:[%s180 + $0x278] sm:$0xff] %v339
                %v341 = vld [vmem:[%s179 + $0xa00] sm:$0xff]
                %342 = vst [vmem:[%s180 + $0x280] sm:$0xff] %v341
                %v343 = vld [vmem:[%s179 + $0xa08] sm:$0xff]
                %344 = vst [vmem:[%s180 + $0x288] sm:$0xff] %v343
                %v345 = vld [vmem:[%s179 + $0xa40] sm:$0xff]
                %346 = vst [vmem:[%s180 + $0x290] sm:$0xff] %v345
                %v347 = vld [vmem:[%s179 + $0xa48] sm:$0xff]
                %348 = vst [vmem:[%s180 + $0x298] sm:$0xff] %v347
                %v349 = vld [vmem:[%s179 + $0xa80] sm:$0xff]
                %350 = vst [vmem:[%s180 + $0x2a0] sm:$0xff] %v349
                %v351 = vld [vmem:[%s179 + $0xa88] sm:$0xff]
                %352 = vst [vmem:[%s180 + $0x2a8] sm:$0xff] %v351
                %v353 = vld [vmem:[%s179 + $0xac0] sm:$0xff]
                %354 = vst [vmem:[%s180 + $0x2b0] sm:$0xff] %v353
                %v355 = vld [vmem:[%s179 + $0xac8] sm:$0xff]
                %356 = vst [vmem:[%s180 + $0x2b8] sm:$0xff] %v355
                %v357 = vld [vmem:[%s179 + $0xb00] sm:$0xff]
                %358 = vst [vmem:[%s180 + $0x2c0] sm:$0xff] %v357
                %v359 = vld [vmem:[%s179 + $0xb08] sm:$0xff]
                %360 = vst [vmem:[%s180 + $0x2c8] sm:$0xff] %v359
                %v361 = vld [vmem:[%s179 + $0xb40] sm:$0xff]
                %362 = vst [vmem:[%s180 + $0x2d0] sm:$0xff] %v361
                %v363 = vld [vmem:[%s179 + $0xb48] sm:$0xff]
                %364 = vst [vmem:[%s180 + $0x2d8] sm:$0xff] %v363
                %v365 = vld [vmem:[%s179 + $0xb80] sm:$0xff]
                %366 = vst [vmem:[%s180 + $0x2e0] sm:$0xff] %v365
                %v367 = vld [vmem:[%s179 + $0xb88] sm:$0xff]
                %368 = vst [vmem:[%s180 + $0x2e8] sm:$0xff] %v367
                %v369 = vld [vmem:[%s179 + $0xbc0] sm:$0xff]
                %370 = vst [vmem:[%s180 + $0x2f0] sm:$0xff] %v369
                %v371 = vld [vmem:[%s179 + $0xbc8] sm:$0xff]
                %372 = vst [vmem:[%s180 + $0x2f8] sm:$0xff] %v371
                %v373 = vld [vmem:[%s179 + $0xc00] sm:$0xff]
                %374 = vst [vmem:[%s180 + $0x300] sm:$0xff] %v373
                %v375 = vld [vmem:[%s179 + $0xc08] sm:$0xff]
                %376 = vst [vmem:[%s180 + $0x308] sm:$0xff] %v375
                %v377 = vld [vmem:[%s179 + $0xc40] sm:$0xff]
                %378 = vst [vmem:[%s180 + $0x310] sm:$0xff] %v377
                %v379 = vld [vmem:[%s179 + $0xc48] sm:$0xff]
                %380 = vst [vmem:[%s180 + $0x318] sm:$0xff] %v379
                %v381 = vld [vmem:[%s179 + $0xc80] sm:$0xff]
                %382 = vst [vmem:[%s180 + $0x320] sm:$0xff] %v381
                %v383 = vld [vmem:[%s179 + $0xc88] sm:$0xff]
                %384 = vst [vmem:[%s180 + $0x328] sm:$0xff] %v383
                %v385 = vld [vmem:[%s179 + $0xcc0] sm:$0xff]
                %386 = vst [vmem:[%s180 + $0x330] sm:$0xff] %v385
                %v387 = vld [vmem:[%s179 + $0xcc8] sm:$0xff]
                %388 = vst [vmem:[%s180 + $0x338] sm:$0xff] %v387
                %v389 = vld [vmem:[%s179 + $0xd00] sm:$0xff]
                %390 = vst [vmem:[%s180 + $0x340] sm:$0xff] %v389
                %v391 = vld [vmem:[%s179 + $0xd08] sm:$0xff]
                %392 = vst [vmem:[%s180 + $0x348] sm:$0xff] %v391
                %v393 = vld [vmem:[%s179 + $0xd40] sm:$0xff]
                %394 = vst [vmem:[%s180 + $0x350] sm:$0xff] %v393
                %v395 = vld [vmem:[%s179 + $0xd48] sm:$0xff]
                %396 = vst [vmem:[%s180 + $0x358] sm:$0xff] %v395
                %v397 = vld [vmem:[%s179 + $0xd80] sm:$0xff]
                %398 = vst [vmem:[%s180 + $0x360] sm:$0xff] %v397
                %v399 = vld [vmem:[%s179 + $0xd88] sm:$0xff]
                %400 = vst [vmem:[%s180 + $0x368] sm:$0xff] %v399
                %v401 = vld [vmem:[%s179 + $0xdc0] sm:$0xff]
                %402 = vst [vmem:[%s180 + $0x370] sm:$0xff] %v401
                %v403 = vld [vmem:[%s179 + $0xdc8] sm:$0xff]
                %404 = vst [vmem:[%s180 + $0x378] sm:$0xff] %v403
                %v405 = vld [vmem:[%s179 + $0xe00] sm:$0xff]
                %406 = vst [vmem:[%s180 + $0x380] sm:$0xff] %v405
                %v407 = vld [vmem:[%s179 + $0xe08] sm:$0xff]
                %408 = vst [vmem:[%s180 + $0x388] sm:$0xff] %v407
                %v409 = vld [vmem:[%s179 + $0xe40] sm:$0xff]
                %410 = vst [vmem:[%s180 + $0x390] sm:$0xff] %v409
                %v411 = vld [vmem:[%s179 + $0xe48] sm:$0xff]
                %412 = vst [vmem:[%s180 + $0x398] sm:$0xff] %v411
                %v413 = vld [vmem:[%s179 + $0xe80] sm:$0xff]
                %414 = vst [vmem:[%s180 + $0x3a0] sm:$0xff] %v413
                %v415 = vld [vmem:[%s179 + $0xe88] sm:$0xff]
                %416 = vst [vmem:[%s180 + $0x3a8] sm:$0xff] %v415
                %v417 = vld [vmem:[%s179 + $0xec0] sm:$0xff]
                %418 = vst [vmem:[%s180 + $0x3b0] sm:$0xff] %v417
                %v419 = vld [vmem:[%s179 + $0xec8] sm:$0xff]
                %420 = vst [vmem:[%s180 + $0x3b8] sm:$0xff] %v419
                %v421 = vld [vmem:[%s179 + $0xf00] sm:$0xff]
                %422 = vst [vmem:[%s180 + $0x3c0] sm:$0xff] %v421
                %v423 = vld [vmem:[%s179 + $0xf08] sm:$0xff]
                %424 = vst [vmem:[%s180 + $0x3c8] sm:$0xff] %v423
                %v425 = vld [vmem:[%s179 + $0xf40] sm:$0xff]
                %426 = vst [vmem:[%s180 + $0x3d0] sm:$0xff] %v425
                %v427 = vld [vmem:[%s179 + $0xf48] sm:$0xff]
                %428 = vst [vmem:[%s180 + $0x3d8] sm:$0xff] %v427
                %v429 = vld [vmem:[%s179 + $0xf80] sm:$0xff]
                %430 = vst [vmem:[%s180 + $0x3e0] sm:$0xff] %v429
                %v431 = vld [vmem:[%s179 + $0xf88] sm:$0xff]
                %432 = vst [vmem:[%s180 + $0x3e8] sm:$0xff] %v431
                %v433 = vld [vmem:[%s179 + $0xfc0] sm:$0xff]
                %434 = vst [vmem:[%s180 + $0x3f0] sm:$0xff] %v433
                %v435 = vld [vmem:[%s179 + $0xfc8] sm:$0xff]
                %436 = vst [vmem:[%s180 + $0x3f8] sm:$0xff] %v435
                %v437 = vld [vmem:[%s179 + $0x1000] sm:$0xff]
                %438 = vst [vmem:[%s180 + $0x400] sm:$0xff] %v437
                %v439 = vld [vmem:[%s179 + $0x1008] sm:$0xff]
                %440 = vst [vmem:[%s180 + $0x408] sm:$0xff] %v439
                %v441 = vld [vmem:[%s179 + $0x1040] sm:$0xff]
                %442 = vst [vmem:[%s180 + $0x410] sm:$0xff] %v441
                %v443 = vld [vmem:[%s179 + $0x1048] sm:$0xff]
                %444 = vst [vmem:[%s180 + $0x418] sm:$0xff] %v443
                %v445 = vld [vmem:[%s179 + $0x1080] sm:$0xff]
                %446 = vst [vmem:[%s180 + $0x420] sm:$0xff] %v445
                %v447 = vld [vmem:[%s179 + $0x1088] sm:$0xff]
                %448 = vst [vmem:[%s180 + $0x428] sm:$0xff] %v447
                %v449 = vld [vmem:[%s179 + $0x10c0] sm:$0xff]
                %450 = vst [vmem:[%s180 + $0x430] sm:$0xff] %v449
                %v451 = vld [vmem:[%s179 + $0x10c8] sm:$0xff]
                %452 = vst [vmem:[%s180 + $0x438] sm:$0xff] %v451
                %v453 = vld [vmem:[%s179 + $0x1100] sm:$0xff]
                %454 = vst [vmem:[%s180 + $0x440] sm:$0xff] %v453
                %v455 = vld [vmem:[%s179 + $0x1108] sm:$0xff]
                %456 = vst [vmem:[%s180 + $0x448] sm:$0xff] %v455
                %v457 = vld [vmem:[%s179 + $0x1140] sm:$0xff]
                %458 = vst [vmem:[%s180 + $0x450] sm:$0xff] %v457
                %v459 = vld [vmem:[%s179 + $0x1148] sm:$0xff]
                %460 = vst [vmem:[%s180 + $0x458] sm:$0xff] %v459
                %v461 = vld [vmem:[%s179 + $0x1180] sm:$0xff]
                %462 = vst [vmem:[%s180 + $0x460] sm:$0xff] %v461
                %v463 = vld [vmem:[%s179 + $0x1188] sm:$0xff]
                %464 = vst [vmem:[%s180 + $0x468] sm:$0xff] %v463
                %v465 = vld [vmem:[%s179 + $0x11c0] sm:$0xff]
                %466 = vst [vmem:[%s180 + $0x470] sm:$0xff] %v465
                %v467 = vld [vmem:[%s179 + $0x11c8] sm:$0xff]
                %468 = vst [vmem:[%s180 + $0x478] sm:$0xff] %v467
              $region33: #{tpu_custom_call.1} parent=27 // loop_footer
                %s178 = sadd.s32 1, %s174
              $region34: #{tpu_custom_call.1} parent=27 // loop_footer_branch
                %173 = sbr.rel target = $region30
              $region35: #{tpu_custom_call.1} parent=27 // loop_exit
                _
            $region28: #{tpu_custom_call.1} parent=23 // pred_fallthru
              _
            // Predicated region
            $region36: #{tpu_custom_call.1} parent=23 // pred_check
              _
            $region37: #{tpu_custom_call.1} parent=23 // pred_check_branch
              %470 = sbr.rel target = $region39
            $region38: #{tpu_custom_call.1} parent=23 // pred_region
              _
            $region39: #{tpu_custom_call.1} parent=23 // pred_fallthru
              _
          $region24: #{tpu_custom_call.1} parent=19 // pred_fallthru
            _
          %471 = vnop
        $region20: #{tpu_custom_call.1} parent=15 // pred_fallthru
          _
        // Predicated region
        $region40: #{tpu_custom_call.1} parent=15 // pred_check
          %p472 = pneg %p56
        $region41: #{tpu_custom_call.1} parent=15 // pred_check_branch
          %474 = sbr.rel (%p472) target = $region43
        $region42: #{tpu_custom_call.1} parent=15 // pred_region
          %s475 = sand.u32 %s46, 1
          %s476 = sand.u32 %s46, 1
          %s477 = smul.addr %s476, 80
          %s478 = scalar_lea.vmem [#allocation3], %s477
          %s479 = smul.u32 2, %s10
          %s480 = smul.addr %s479, 8
          %s481 = scalar_lea.vmem %s1, %s480
          // Predicated region
          $region44: #{tpu_custom_call.1} parent=42 // pred_check
            _
          $region45: #{tpu_custom_call.1} parent=42 // pred_check_branch
            %483 = sbr.rel (0) target = $region47
          $region46: #{tpu_custom_call.1} parent=42 // pred_region
            // Predicated region
            $region48: #{tpu_custom_call.1} parent=46 // pred_check
              _
            $region49: #{tpu_custom_call.1} parent=46 // pred_check_branch
              %485 = sbr.rel (0) target = $region51
            $region50: #{tpu_custom_call.1} parent=46 // pred_region
              loop: start=0, step=1, limit=1
              $region52: #{tpu_custom_call.1} parent=50 // loop_pre_header
                _
              $region53: #{tpu_custom_call.1} parent=50 // loop_header
                %s487 = sphi 0, %s491
                %p488 = scmp.ge.s32.totalorder %s487, 1
                %s492 = sphi %s481, %s481
                %s493 = sphi %s478, %s478
              $region54: #{tpu_custom_call.1} parent=50 // loop_header_branch
                %490 = sbr.rel (%p488) target = $region58
              $region55: #{tpu_custom_call.1} parent=50 // loop_body
                %v494 = vld [vmem:[%s492] sm:$0xff]
                %495 = vst [vmem:[%s493] sm:$0xff] %v494
                %v496 = vld [vmem:[%s492 + $0x8] sm:$0xff]
                %497 = vst [vmem:[%s493 + $0x8] sm:$0xff] %v496
                %v498 = vld [vmem:[%s492 + $0x40] sm:$0xff]
                %499 = vst [vmem:[%s493 + $0x10] sm:$0xff] %v498
                %v500 = vld [vmem:[%s492 + $0x48] sm:$0xff]
                %501 = vst [vmem:[%s493 + $0x18] sm:$0xff] %v500
                %v502 = vld [vmem:[%s492 + $0x80] sm:$0xff]
                %503 = vst [vmem:[%s493 + $0x20] sm:$0xff] %v502
                %v504 = vld [vmem:[%s492 + $0x88] sm:$0xff]
                %505 = vst [vmem:[%s493 + $0x28] sm:$0xff] %v504
                %v506 = vld [vmem:[%s492 + $0xc0] sm:$0xff]
                %507 = vst [vmem:[%s493 + $0x30] sm:$0xff] %v506
                %v508 = vld [vmem:[%s492 + $0xc8] sm:$0xff]
                %509 = vst [vmem:[%s493 + $0x38] sm:$0xff] %v508
                %v510 = vld [vmem:[%s492 + $0x100] sm:$0xff]
                %511 = vst [vmem:[%s493 + $0x40] sm:$0xff] %v510
                %v512 = vld [vmem:[%s492 + $0x108] sm:$0xff]
                %513 = vst [vmem:[%s493 + $0x48] sm:$0xff] %v512
              $region56: #{tpu_custom_call.1} parent=50 // loop_footer
                %s491 = sadd.s32 1, %s487
              $region57: #{tpu_custom_call.1} parent=50 // loop_footer_branch
                %486 = sbr.rel target = $region53
              $region58: #{tpu_custom_call.1} parent=50 // loop_exit
                _
            $region51: #{tpu_custom_call.1} parent=46 // pred_fallthru
              _
            // Predicated region
            $region59: #{tpu_custom_call.1} parent=46 // pred_check
              _
            $region60: #{tpu_custom_call.1} parent=46 // pred_check_branch
              %515 = sbr.rel target = $region62
            $region61: #{tpu_custom_call.1} parent=46 // pred_region
              _
            $region62: #{tpu_custom_call.1} parent=46 // pred_fallthru
              _
          $region47: #{tpu_custom_call.1} parent=42 // pred_fallthru
            _
          %516 = vnop
        $region43: #{tpu_custom_call.1} parent=15 // pred_fallthru
          _
        // Predicated region
        $region63: #{tpu_custom_call.1} parent=15 // pred_check
          %p517 = pneg %p82
        $region64: #{tpu_custom_call.1} parent=15 // pred_check_branch
          %519 = sbr.rel (%p517) target = $region66
        $region65: #{tpu_custom_call.1} parent=15 // pred_region
          %s520 = smul.u32 2, %s10
          %p521 = scmp.lt.s32.totalorder %s520, 7
          %s522 = scalar_select %p521, %s520, 7
          %s523 = scalar_lea.vmem %s2, %s522
          %s524 = smul.u32 2, %s10
        $region66: #{tpu_custom_call.1} parent=15 // pred_fallthru
          _
        // Predicated region
        $region67: #{tpu_custom_call.1} parent=15 // pred_check
          %p525 = pneg %p108
        $region68: #{tpu_custom_call.1} parent=15 // pred_check_branch
          %527 = sbr.rel (%p525) target = $region70
        $region69: #{tpu_custom_call.1} parent=15 // pred_region
          %s528 = smul.u32 2, %s10
          %p529 = scmp.lt.s32.totalorder %s528, 7
          %s530 = scalar_select %p529, %s528, 7
          %s531 = scalar_lea.vmem %s3, %s530
          %s532 = smul.u32 2, %s10
        $region70: #{tpu_custom_call.1} parent=15 // pred_fallthru
          _
      $region16: #{tpu_custom_call.1} parent=5 // pred_fallthru
        _
      %p533 = scmp.le.s32.totalorder 1, %s10
      %p534 = scmp.lt.s32.totalorder %s10, 5
      %p535 = pnand %p533, %p534
      %p536 = pneg %p535
      // Predicated region
      $region71: #{tpu_custom_call.1} parent=5 // pred_check
        _
      $region72: #{tpu_custom_call.1} parent=5 // pred_check_branch
        %538 = sbr.rel (%p535) target = $region74
      $region73: #{tpu_custom_call.1} parent=5 // pred_region
        %s539 = ssub.s32 %s10, 1
        %s540 = sand.u32 %s23, 1
        %s541 = sand.u32 %s23, 1
        %s542 = smul.addr %s541, 1152
        %s543 = scalar_lea.vmem [#allocation2], %s542
        // Predicated region
        $region75: #{tpu_custom_call.1} parent=73 // pred_check
          %p544 = pneg %p36
        $region76: #{tpu_custom_call.1} parent=73 // pred_check_branch
          %546 = sbr.rel (%p544) target = $region78
        $region77: #{tpu_custom_call.1} parent=73 // pred_region
          _
        $region78: #{tpu_custom_call.1} parent=73 // pred_fallthru
          _
        %s547 = sand.u32 %s49, 1
        %s548 = sand.u32 %s49, 1
        %s549 = smul.addr %s548, 80
        %s550 = scalar_lea.vmem [#allocation3], %s549
        // Predicated region
        $region79: #{tpu_custom_call.1} parent=73 // pred_check
          %p551 = pneg %p62
        $region80: #{tpu_custom_call.1} parent=73 // pred_check_branch
          %553 = sbr.rel (%p551) target = $region82
        $region81: #{tpu_custom_call.1} parent=73 // pred_region
          _
        $region82: #{tpu_custom_call.1} parent=73 // pred_fallthru
          _
        %s554 = sand.u32 %s23, 1
        %s555 = sand.u32 %s23, 1
        %s556 = smul.addr %s555, 1152
        %s557 = scalar_lea.vmem [#allocation2], %s556
        %p558 = pneg %p36
        %p559 = pneg %p33
        %s560 = sand.u32 %s49, 1
        %s561 = sand.u32 %s49, 1
        %s562 = smul.addr %s561, 80
        %s563 = scalar_lea.vmem [#allocation3], %s562
        %p564 = pneg %p62
        %p565 = pneg %p59
        %s566 = smul.u32 2, %s15
        %p567 = scmp.lt.s32.totalorder %s566, 7
        %s568 = scalar_select %p567, %s566, 7
        %s569 = scalar_lea.vmem %s2, %s568
        %p570 = pneg %p88
        %p571 = pneg %p85
        %s572 = smul.u32 2, %s15
        %p573 = scmp.lt.s32.totalorder %s572, 7
        %s574 = scalar_select %p573, %s572, 7
        %s575 = scalar_lea.vmem %s3, %s574
        %p576 = pneg %p114
        %p577 = pneg %p111
        %p578 = pneg %p140
        %p579 = pneg %p137
        %s580 = sand.u32 %s127, 1
        %s581 = sand.u32 %s127, 1
        %s582 = smul.addr %s581, 112
        %s583 = scalar_lea.vmem [#allocation4], %s582
        %s584 = smul.u32 2, %s15
        %s585 = smul.u32 2, %s15
        %s586 = smul.u32 2, %s15
        %p587 = scmp.lt.s32.totalorder %s586, 7
        %s588 = scalar_select %p587, %s586, 7
        %s589 = scalar_lea.vmem %s2, %s588
        %s590 = smul.u32 2, %s15
        %s591 = smul.u32 2, %s15
        %p592 = scmp.lt.s32.totalorder %s591, 7
        %s593 = scalar_select %p592, %s591, 7
        %s594 = scalar_lea.vmem %s3, %s593
        %s595 = smul.u32 2, %s15
        %s596 = smul.u32 2, %s15
        %v597 = vld [vmem:[%s550] sm:$0x1f]
        %v598 = vld [vmem:[%s550 + $0x8] sm:$0x1f]
        %v599 = vld [vmem:[%s550 + $0x10] sm:$0x1f]
        %v600 = vld [vmem:[%s550 + $0x18] sm:$0x1f]
        %v601 = vld [vmem:[%s550 + $0x20] sm:$0x1f]
        %v602 = vld [vmem:[%s550 + $0x28] sm:$0x1f]
        %v603 = vld [vmem:[%s550 + $0x30] sm:$0x1f]
        %v604 = vld [vmem:[%s550 + $0x38] sm:$0x1f]
        %v605 = vld [vmem:[%s550 + $0x40] sm:$0x1f]
        %v606 = vld [vmem:[%s550 + $0x48] sm:$0x1f]
        %v607 = vld [vmem:[%s543] sm:$0x7f]
        %v608 = vld [vmem:[%s543 + $0x8] sm:$0x7f]
        %v609 = vld [vmem:[%s543 + $0x20] sm:$0x7f]
        %v610 = vld [vmem:[%s543 + $0x28] sm:$0x7f]
        %v611 = vld [vmem:[%s543 + $0x40] sm:$0x7f]
        %v612 = vld [vmem:[%s543 + $0x48] sm:$0x7f]
        %v613 = vld [vmem:[%s543 + $0x60] sm:$0x7f]
        %v614 = vld [vmem:[%s543 + $0x68] sm:$0x7f]
        %v615 = vld [vmem:[%s543 + $0x80] sm:$0x7f]
        %v616 = vld [vmem:[%s543 + $0x88] sm:$0x7f]
        %v617 = vld [vmem:[%s543 + $0xa0] sm:$0x7f]
        %v618 = vld [vmem:[%s543 + $0xa8] sm:$0x7f]
        %v619 = vld [vmem:[%s543 + $0xc0] sm:$0x7f]
        %v620 = vld [vmem:[%s543 + $0xc8] sm:$0x7f]
        %v621 = vperm.slane %v597, 0
        %v622 = vperm.slane %v598, 0
        %v623 = vmul.f32 %v607, %v621
        %v624 = vmul.f32 %v608, %v622
        %v625 = vmul.f32 %v609, %v621
        %v626 = vmul.f32 %v610, %v622
        %v627 = vmul.f32 %v611, %v621
        %v628 = vmul.f32 %v612, %v622
        %v629 = vmul.f32 %v613, %v621
        %v630 = vmul.f32 %v614, %v622
        %v631 = vmul.f32 %v615, %v621
        %v632 = vmul.f32 %v616, %v622
        %v633 = vmul.f32 %v617, %v621
        %v634 = vmul.f32 %v618, %v622
        %v635 = vmul.f32 %v619, %v621
        %v636 = vmul.f32 %v620, %v622
        %v637 = vadd.f32 %v623, 0.0
        %v638 = vadd.f32 %v624, 0.0
        %v639 = vadd.f32 %v625, 0.0
        %v640 = vadd.f32 %v626, 0.0
        %v641 = vadd.f32 %v627, 0.0
        %v642 = vadd.f32 %v628, 0.0
        %v643 = vadd.f32 %v629, 0.0
        %v644 = vadd.f32 %v630, 0.0
        %v645 = vadd.f32 %v631, 0.0
        %v646 = vadd.f32 %v632, 0.0
        %v647 = vadd.f32 %v633, 0.0
        %v648 = vadd.f32 %v634, 0.0
        %v649 = vadd.f32 %v635, 0.0
        %v650 = vadd.f32 %v636, 0.0
        %s651 = scalar_lea.vmem %s543, 288 [#allocation2]
        %v652 = vld [vmem:[%s651] sm:$0x7f]
        %v653 = vld [vmem:[%s651 + $0x8] sm:$0x7f]
        %v654 = vld [vmem:[%s651 + $0x20] sm:$0x7f]
        %v655 = vld [vmem:[%s651 + $0x28] sm:$0x7f]
        %v656 = vld [vmem:[%s651 + $0x40] sm:$0x7f]
        %v657 = vld [vmem:[%s651 + $0x48] sm:$0x7f]
        %v658 = vld [vmem:[%s651 + $0x60] sm:$0x7f]
        %v659 = vld [vmem:[%s651 + $0x68] sm:$0x7f]
        %v660 = vld [vmem:[%s651 + $0x80] sm:$0x7f]
        %v661 = vld [vmem:[%s651 + $0x88] sm:$0x7f]
        %v662 = vld [vmem:[%s651 + $0xa0] sm:$0x7f]
        %v663 = vld [vmem:[%s651 + $0xa8] sm:$0x7f]
        %v664 = vld [vmem:[%s651 + $0xc0] sm:$0x7f]
        %v665 = vld [vmem:[%s651 + $0xc8] sm:$0x7f]
        %v666 = vperm.slane %v597, 1
        %v667 = vperm.slane %v598, 1
        %v668 = vmul.f32 %v652, %v666
        %v669 = vmul.f32 %v653, %v667
        %v670 = vmul.f32 %v654, %v666
        %v671 = vmul.f32 %v655, %v667
        %v672 = vmul.f32 %v656, %v666
        %v673 = vmul.f32 %v657, %v667
        %v674 = vmul.f32 %v658, %v666
        %v675 = vmul.f32 %v659, %v667
        %v676 = vmul.f32 %v660, %v666
        %v677 = vmul.f32 %v661, %v667
        %v678 = vmul.f32 %v662, %v666
        %v679 = vmul.f32 %v663, %v667
        %v680 = vmul.f32 %v664, %v666
        %v681 = vmul.f32 %v665, %v667
        %v682 = vadd.f32 %v637, %v668
        %v683 = vadd.f32 %v638, %v669
        %v684 = vadd.f32 %v639, %v670
        %v685 = vadd.f32 %v640, %v671
        %v686 = vadd.f32 %v641, %v672
        %v687 = vadd.f32 %v642, %v673
        %v688 = vadd.f32 %v643, %v674
        %v689 = vadd.f32 %v644, %v675
        %v690 = vadd.f32 %v645, %v676
        %v691 = vadd.f32 %v646, %v677
        %v692 = vadd.f32 %v647, %v678
        %v693 = vadd.f32 %v648, %v679
        %v694 = vadd.f32 %v649, %v680
        %v695 = vadd.f32 %v650, %v681
        %v696 = vld [vmem:[%s543] sm:$0xfe]
        %v697 = vld [vmem:[%s543 + $0x8] sm:$0xfe]
        %v698 = vld [vmem:[%s543 + $0x20] sm:$0xfe]
        %v699 = vld [vmem:[%s543 + $0x28] sm:$0xfe]
        %v700 = vld [vmem:[%s543 + $0x40] sm:$0xfe]
        %v701 = vld [vmem:[%s543 + $0x48] sm:$0xfe]
        %v702 = vld [vmem:[%s543 + $0x60] sm:$0xfe]
        %v703 = vld [vmem:[%s543 + $0x68] sm:$0xfe]
        %v704 = vld [vmem:[%s543 + $0x80] sm:$0xfe]
        %v705 = vld [vmem:[%s543 + $0x88] sm:$0xfe]
        %v706 = vld [vmem:[%s543 + $0xa0] sm:$0xfe]
        %v707 = vld [vmem:[%s543 + $0xa8] sm:$0xfe]
        %v708 = vld [vmem:[%s543 + $0xc0] sm:$0xfe]
        %v709 = vld [vmem:[%s543 + $0xc8] sm:$0xfe]
        %v710 = vperm.slane %v597, 2
        %v711 = vperm.slane %v598, 2
        %v712 = vmul.f32 %v696, %v710
        %v713 = vmul.f32 %v697, %v711
        %v714 = vmul.f32 %v698, %v710
        %v715 = vmul.f32 %v699, %v711
        %v716 = vmul.f32 %v700, %v710
        %v717 = vmul.f32 %v701, %v711
        %v718 = vmul.f32 %v702, %v710
        %v719 = vmul.f32 %v703, %v711
        %v720 = vmul.f32 %v704, %v710
        %v721 = vmul.f32 %v705, %v711
        %v722 = vmul.f32 %v706, %v710
        %v723 = vmul.f32 %v707, %v711
        %v724 = vmul.f32 %v708, %v710
        %v725 = vmul.f32 %v709, %v711
        %v740 = vrot.slane %v712, 1
        %v741 = vrot.slane %v713, 1
        %v742 = vrot.slane %v714, 1
        %v743 = vrot.slane %v715, 1
        %v744 = vrot.slane %v716, 1
        %v745 = vrot.slane %v717, 1
        %v746 = vrot.slane %v718, 1
        %v747 = vrot.slane %v719, 1
        %v748 = vrot.slane %v720, 1
        %v749 = vrot.slane %v721, 1
        %v750 = vrot.slane %v722, 1
        %v751 = vrot.slane %v723, 1
        %v752 = vrot.slane %v724, 1
        %v753 = vrot.slane %v725, 1
        %v768 = vadd.f32 %v682, %v740
        %v769 = vadd.f32 %v683, %v741
        %v770 = vadd.f32 %v684, %v742
        %v771 = vadd.f32 %v685, %v743
        %v772 = vadd.f32 %v686, %v744
        %v773 = vadd.f32 %v687, %v745
        %v774 = vadd.f32 %v688, %v746
        %v775 = vadd.f32 %v689, %v747
        %v776 = vadd.f32 %v690, %v748
        %v777 = vadd.f32 %v691, %v749
        %v778 = vadd.f32 %v692, %v750
        %v779 = vadd.f32 %v693, %v751
        %v780 = vadd.f32 %v694, %v752
        %v781 = vadd.f32 %v695, %v753
        %v782 = vld [vmem:[%s651] sm:$0xfe]
        %v783 = vld [vmem:[%s651 + $0x8] sm:$0xfe]
        %v784 = vld [vmem:[%s651 + $0x20] sm:$0xfe]
        %v785 = vld [vmem:[%s651 + $0x28] sm:$0xfe]
        %v786 = vld [vmem:[%s651 + $0x40] sm:$0xfe]
        %v787 = vld [vmem:[%s651 + $0x48] sm:$0xfe]
        %v788 = vld [vmem:[%s651 + $0x60] sm:$0xfe]
        %v789 = vld [vmem:[%s651 + $0x68] sm:$0xfe]
        %v790 = vld [vmem:[%s651 + $0x80] sm:$0xfe]
        %v791 = vld [vmem:[%s651 + $0x88] sm:$0xfe]
        %v792 = vld [vmem:[%s651 + $0xa0] sm:$0xfe]
        %v793 = vld [vmem:[%s651 + $0xa8] sm:$0xfe]
        %v794 = vld [vmem:[%s651 + $0xc0] sm:$0xfe]
        %v795 = vld [vmem:[%s651 + $0xc8] sm:$0xfe]
        %v796 = vperm.slane %v597, 3
        %v797 = vperm.slane %v598, 3
        %v798 = vmul.f32 %v782, %v796
        %v799 = vmul.f32 %v783, %v797
        %v800 = vmul.f32 %v784, %v796
        %v801 = vmul.f32 %v785, %v797
        %v802 = vmul.f32 %v786, %v796
        %v803 = vmul.f32 %v787, %v797
        %v804 = vmul.f32 %v788, %v796
        %v805 = vmul.f32 %v789, %v797
        %v806 = vmul.f32 %v790, %v796
        %v807 = vmul.f32 %v791, %v797
        %v808 = vmul.f32 %v792, %v796
        %v809 = vmul.f32 %v793, %v797
        %v810 = vmul.f32 %v794, %v796
        %v811 = vmul.f32 %v795, %v797
        %v826 = vrot.slane %v798, 1
        %v827 = vrot.slane %v799, 1
        %v828 = vrot.slane %v800, 1
        %v829 = vrot.slane %v801, 1
        %v830 = vrot.slane %v802, 1
        %v831 = vrot.slane %v803, 1
        %v832 = vrot.slane %v804, 1
        %v833 = vrot.slane %v805, 1
        %v834 = vrot.slane %v806, 1
        %v835 = vrot.slane %v807, 1
        %v836 = vrot.slane %v808, 1
        %v837 = vrot.slane %v809, 1
        %v838 = vrot.slane %v810, 1
        %v839 = vrot.slane %v811, 1
        %v854 = vadd.f32 %v768, %v826
        %v855 = vadd.f32 %v769, %v827
        %v856 = vadd.f32 %v770, %v828
        %v857 = vadd.f32 %v771, %v829
        %v858 = vadd.f32 %v772, %v830
        %v859 = vadd.f32 %v773, %v831
        %v860 = vadd.f32 %v774, %v832
        %v861 = vadd.f32 %v775, %v833
        %v862 = vadd.f32 %v776, %v834
        %v863 = vadd.f32 %v777, %v835
        %v864 = vadd.f32 %v778, %v836
        %v865 = vadd.f32 %v779, %v837
        %v866 = vadd.f32 %v780, %v838
        %v867 = vadd.f32 %v781, %v839
        %v868 = vld [vmem:[%s543] sm:$0xfc]
        %v869 = vld [vmem:[%s543 + $0x8] sm:$0xfc]
        %v870 = vld [vmem:[%s543 + $0x10] sm:$0x1]
        %v871 = vld [vmem:[%s543 + $0x18] sm:$0x1]
        %v872 = vld [vmem:[%s543 + $0x20] sm:$0xfc]
        %v873 = vld [vmem:[%s543 + $0x28] sm:$0xfc]
        %v874 = vld [vmem:[%s543 + $0x30] sm:$0x1]
        %v875 = vld [vmem:[%s543 + $0x38] sm:$0x1]
        %v876 = vld [vmem:[%s543 + $0x40] sm:$0xfc]
        %v877 = vld [vmem:[%s543 + $0x48] sm:$0xfc]
        %v878 = vld [vmem:[%s543 + $0x50] sm:$0x1]
        %v879 = vld [vmem:[%s543 + $0x58] sm:$0x1]
        %v880 = vld [vmem:[%s543 + $0x60] sm:$0xfc]
        %v881 = vld [vmem:[%s543 + $0x68] sm:$0xfc]
        %v882 = vld [vmem:[%s543 + $0x70] sm:$0x1]
        %v883 = vld [vmem:[%s543 + $0x78] sm:$0x1]
        %v884 = vld [vmem:[%s543 + $0x80] sm:$0xfc]
        %v885 = vld [vmem:[%s543 + $0x88] sm:$0xfc]
        %v886 = vld [vmem:[%s543 + $0x90] sm:$0x1]
        %v887 = vld [vmem:[%s543 + $0x98] sm:$0x1]
        %v888 = vld [vmem:[%s543 + $0xa0] sm:$0xfc]
        %v889 = vld [vmem:[%s543 + $0xa8] sm:$0xfc]
        %v890 = vld [vmem:[%s543 + $0xb0] sm:$0x1]
        %v891 = vld [vmem:[%s543 + $0xb8] sm:$0x1]
        %v892 = vld [vmem:[%s543 + $0xc0] sm:$0xfc]
        %v893 = vld [vmem:[%s543 + $0xc8] sm:$0xfc]
        %v894 = vld [vmem:[%s543 + $0xd0] sm:$0x1]
        %v895 = vld [vmem:[%s543 + $0xd8] sm:$0x1]
        %v896 = vperm.slane %v597, 4
        %v897 = vperm.slane %v598, 4
        %v898 = vmul.f32 %v868, %v896
        %v899 = vmul.f32 %v869, %v897
        %v900 = vmul.f32 %v870, %v896
        %v901 = vmul.f32 %v871, %v897
        %v902 = vmul.f32 %v872, %v896
        %v903 = vmul.f32 %v873, %v897
        %v904 = vmul.f32 %v874, %v896
        %v905 = vmul.f32 %v875, %v897
        %v906 = vmul.f32 %v876, %v896
        %v907 = vmul.f32 %v877, %v897
        %v908 = vmul.f32 %v878, %v896
        %v909 = vmul.f32 %v879, %v897
        %v910 = vmul.f32 %v880, %v896
        %v911 = vmul.f32 %v881, %v897
        %v912 = vmul.f32 %v882, %v896
        %v913 = vmul.f32 %v883, %v897
        %v914 = vmul.f32 %v884, %v896
        %v915 = vmul.f32 %v885, %v897
        %v916 = vmul.f32 %v886, %v896
        %v917 = vmul.f32 %v887, %v897
        %v918 = vmul.f32 %v888, %v896
        %v919 = vmul.f32 %v889, %v897
        %v920 = vmul.f32 %v890, %v896
        %v921 = vmul.f32 %v891, %v897
        %v922 = vmul.f32 %v892, %v896
        %v923 = vmul.f32 %v893, %v897
        %v924 = vmul.f32 %v894, %v896
        %v925 = vmul.f32 %v895, %v897
        %vm954 = vcmask 1045504
        %v955 = vrot.slane %v898, 2
        %v956 = vrot.slane %v900, 2
        %v957 = vsel %vm954, %v955, %v956
        %v958 = vrot.slane %v899, 2
        %v959 = vrot.slane %v901, 2
        %v960 = vsel %vm954, %v958, %v959
        %v961 = vrot.slane %v902, 2
        %v962 = vrot.slane %v904, 2
        %v963 = vsel %vm954, %v961, %v962
        %v964 = vrot.slane %v903, 2
        %v965 = vrot.slane %v905, 2
        %v966 = vsel %vm954, %v964, %v965
        %v967 = vrot.slane %v906, 2
        %v968 = vrot.slane %v908, 2
        %v969 = vsel %vm954, %v967, %v968
        %v970 = vrot.slane %v907, 2
        %v971 = vrot.slane %v909, 2
        %v972 = vsel %vm954, %v970, %v971
        %v973 = vrot.slane %v910, 2
        %v974 = vrot.slane %v912, 2
        %v975 = vsel %vm954, %v973, %v974
        %v976 = vrot.slane %v911, 2
        %v977 = vrot.slane %v913, 2
        %v978 = vsel %vm954, %v976, %v977
        %v979 = vrot.slane %v914, 2
        %v980 = vrot.slane %v916, 2
        %v981 = vsel %vm954, %v979, %v980
        %v982 = vrot.slane %v915, 2
        %v983 = vrot.slane %v917, 2
        %v984 = vsel %vm954, %v982, %v983
        %v985 = vrot.slane %v918, 2
        %v986 = vrot.slane %v920, 2
        %v987 = vsel %vm954, %v985, %v986
        %v988 = vrot.slane %v919, 2
        %v989 = vrot.slane %v921, 2
        %v990 = vsel %vm954, %v988, %v989
        %v991 = vrot.slane %v922, 2
        %v992 = vrot.slane %v924, 2
        %v993 = vsel %vm954, %v991, %v992
        %v994 = vrot.slane %v923, 2
        %v995 = vrot.slane %v925, 2
        %v996 = vsel %vm954, %v994, %v995
        %v1011 = vadd.f32 %v854, %v957
        %v1012 = vadd.f32 %v855, %v960
        %v1013 = vadd.f32 %v856, %v963
        %v1014 = vadd.f32 %v857, %v966
        %v1015 = vadd.f32 %v858, %v969
        %v1016 = vadd.f32 %v859, %v972
        %v1017 = vadd.f32 %v860, %v975
        %v1018 = vadd.f32 %v861, %v978
        %v1019 = vadd.f32 %v862, %v981
        %v1020 = vadd.f32 %v863, %v984
        %v1021 = vadd.f32 %v864, %v987
        %v1022 = vadd.f32 %v865, %v990
        %v1023 = vadd.f32 %v866, %v993
        %v1024 = vadd.f32 %v867, %v996
        %s1025 = scalar_lea.vmem %s543, 576 [#allocation2]
        %v1026 = vld [vmem:[%s1025] sm:$0x7f]
        %v1027 = vld [vmem:[%s1025 + $0x8] sm:$0x7f]
        %v1028 = vld [vmem:[%s1025 + $0x20] sm:$0x7f]
        %v1029 = vld [vmem:[%s1025 + $0x28] sm:$0x7f]
        %v1030 = vld [vmem:[%s1025 + $0x40] sm:$0x7f]
        %v1031 = vld [vmem:[%s1025 + $0x48] sm:$0x7f]
        %v1032 = vld [vmem:[%s1025 + $0x60] sm:$0x7f]
        %v1033 = vld [vmem:[%s1025 + $0x68] sm:$0x7f]
        %v1034 = vld [vmem:[%s1025 + $0x80] sm:$0x7f]
        %v1035 = vld [vmem:[%s1025 + $0x88] sm:$0x7f]
        %v1036 = vld [vmem:[%s1025 + $0xa0] sm:$0x7f]
        %v1037 = vld [vmem:[%s1025 + $0xa8] sm:$0x7f]
        %v1038 = vld [vmem:[%s1025 + $0xc0] sm:$0x7f]
        %v1039 = vld [vmem:[%s1025 + $0xc8] sm:$0x7f]
        %v1040 = vperm.slane %v599, 0
        %v1041 = vperm.slane %v600, 0
        %v1042 = vmul.f32 %v1026, %v1040
        %v1043 = vmul.f32 %v1027, %v1041
        %v1044 = vmul.f32 %v1028, %v1040
        %v1045 = vmul.f32 %v1029, %v1041
        %v1046 = vmul.f32 %v1030, %v1040
        %v1047 = vmul.f32 %v1031, %v1041
        %v1048 = vmul.f32 %v1032, %v1040
        %v1049 = vmul.f32 %v1033, %v1041
        %v1050 = vmul.f32 %v1034, %v1040
        %v1051 = vmul.f32 %v1035, %v1041
        %v1052 = vmul.f32 %v1036, %v1040
        %v1053 = vmul.f32 %v1037, %v1041
        %v1054 = vmul.f32 %v1038, %v1040
        %v1055 = vmul.f32 %v1039, %v1041
        %v1056 = vadd.f32 %v1011, %v1042
        %v1057 = vadd.f32 %v1012, %v1043
        %v1058 = vadd.f32 %v1013, %v1044
        %v1059 = vadd.f32 %v1014, %v1045
        %v1060 = vadd.f32 %v1015, %v1046
        %v1061 = vadd.f32 %v1016, %v1047
        %v1062 = vadd.f32 %v1017, %v1048
        %v1063 = vadd.f32 %v1018, %v1049
        %v1064 = vadd.f32 %v1019, %v1050
        %v1065 = vadd.f32 %v1020, %v1051
        %v1066 = vadd.f32 %v1021, %v1052
        %v1067 = vadd.f32 %v1022, %v1053
        %v1068 = vadd.f32 %v1023, %v1054
        %v1069 = vadd.f32 %v1024, %v1055
        %s1070 = scalar_lea.vmem %s543, 864 [#allocation2]
        %v1071 = vld [vmem:[%s1070] sm:$0x7f]
        %v1072 = vld [vmem:[%s1070 + $0x8] sm:$0x7f]
        %v1073 = vld [vmem:[%s1070 + $0x20] sm:$0x7f]
        %v1074 = vld [vmem:[%s1070 + $0x28] sm:$0x7f]
        %v1075 = vld [vmem:[%s1070 + $0x40] sm:$0x7f]
        %v1076 = vld [vmem:[%s1070 + $0x48] sm:$0x7f]
        %v1077 = vld [vmem:[%s1070 + $0x60] sm:$0x7f]
        %v1078 = vld [vmem:[%s1070 + $0x68] sm:$0x7f]
        %v1079 = vld [vmem:[%s1070 + $0x80] sm:$0x7f]
        %v1080 = vld [vmem:[%s1070 + $0x88] sm:$0x7f]
        %v1081 = vld [vmem:[%s1070 + $0xa0] sm:$0x7f]
        %v1082 = vld [vmem:[%s1070 + $0xa8] sm:$0x7f]
        %v1083 = vld [vmem:[%s1070 + $0xc0] sm:$0x7f]
        %v1084 = vld [vmem:[%s1070 + $0xc8] sm:$0x7f]
        %v1085 = vperm.slane %v599, 1
        %v1086 = vperm.slane %v600, 1
        %v1087 = vmul.f32 %v1071, %v1085
        %v1088 = vmul.f32 %v1072, %v1086
        %v1089 = vmul.f32 %v1073, %v1085
        %v1090 = vmul.f32 %v1074, %v1086
        %v1091 = vmul.f32 %v1075, %v1085
        %v1092 = vmul.f32 %v1076, %v1086
        %v1093 = vmul.f32 %v1077, %v1085
        %v1094 = vmul.f32 %v1078, %v1086
        %v1095 = vmul.f32 %v1079, %v1085
        %v1096 = vmul.f32 %v1080, %v1086
        %v1097 = vmul.f32 %v1081, %v1085
        %v1098 = vmul.f32 %v1082, %v1086
        %v1099 = vmul.f32 %v1083, %v1085
        %v1100 = vmul.f32 %v1084, %v1086
        %v1101 = vadd.f32 %v1056, %v1087
        %v1102 = vadd.f32 %v1057, %v1088
        %v1103 = vadd.f32 %v1058, %v1089
        %v1104 = vadd.f32 %v1059, %v1090
        %v1105 = vadd.f32 %v1060, %v1091
        %v1106 = vadd.f32 %v1061, %v1092
        %v1107 = vadd.f32 %v1062, %v1093
        %v1108 = vadd.f32 %v1063, %v1094
        %v1109 = vadd.f32 %v1064, %v1095
        %v1110 = vadd.f32 %v1065, %v1096
        %v1111 = vadd.f32 %v1066, %v1097
        %v1112 = vadd.f32 %v1067, %v1098
        %v1113 = vadd.f32 %v1068, %v1099
        %v1114 = vadd.f32 %v1069, %v1100
        %v1115 = vld [vmem:[%s1025] sm:$0xfe]
        %v1116 = vld [vmem:[%s1025 + $0x8] sm:$0xfe]
        %v1117 = vld [vmem:[%s1025 + $0x20] sm:$0xfe]
        %v1118 = vld [vmem:[%s1025 + $0x28] sm:$0xfe]
        %v1119 = vld [vmem:[%s1025 + $0x40] sm:$0xfe]
        %v1120 = vld [vmem:[%s1025 + $0x48] sm:$0xfe]
        %v1121 = vld [vmem:[%s1025 + $0x60] sm:$0xfe]
        %v1122 = vld [vmem:[%s1025 + $0x68] sm:$0xfe]
        %v1123 = vld [vmem:[%s1025 + $0x80] sm:$0xfe]
        %v1124 = vld [vmem:[%s1025 + $0x88] sm:$0xfe]
        %v1125 = vld [vmem:[%s1025 + $0xa0] sm:$0xfe]
        %v1126 = vld [vmem:[%s1025 + $0xa8] sm:$0xfe]
        %v1127 = vld [vmem:[%s1025 + $0xc0] sm:$0xfe]
        %v1128 = vld [vmem:[%s1025 + $0xc8] sm:$0xfe]
        %v1129 = vperm.slane %v599, 2
        %v1130 = vperm.slane %v600, 2
        %v1131 = vmul.f32 %v1115, %v1129
        %v1132 = vmul.f32 %v1116, %v1130
        %v1133 = vmul.f32 %v1117, %v1129
        %v1134 = vmul.f32 %v1118, %v1130
        %v1135 = vmul.f32 %v1119, %v1129
        %v1136 = vmul.f32 %v1120, %v1130
        %v1137 = vmul.f32 %v1121, %v1129
        %v1138 = vmul.f32 %v1122, %v1130
        %v1139 = vmul.f32 %v1123, %v1129
        %v1140 = vmul.f32 %v1124, %v1130
        %v1141 = vmul.f32 %v1125, %v1129
        %v1142 = vmul.f32 %v1126, %v1130
        %v1143 = vmul.f32 %v1127, %v1129
        %v1144 = vmul.f32 %v1128, %v1130
        %v1159 = vrot.slane %v1131, 1
        %v1160 = vrot.slane %v1132, 1
        %v1161 = vrot.slane %v1133, 1
        %v1162 = vrot.slane %v1134, 1
        %v1163 = vrot.slane %v1135, 1
        %v1164 = vrot.slane %v1136, 1
        %v1165 = vrot.slane %v1137, 1
        %v1166 = vrot.slane %v1138, 1
        %v1167 = vrot.slane %v1139, 1
        %v1168 = vrot.slane %v1140, 1
        %v1169 = vrot.slane %v1141, 1
        %v1170 = vrot.slane %v1142, 1
        %v1171 = vrot.slane %v1143, 1
        %v1172 = vrot.slane %v1144, 1
        %v1187 = vadd.f32 %v1101, %v1159
        %v1188 = vadd.f32 %v1102, %v1160
        %v1189 = vadd.f32 %v1103, %v1161
        %v1190 = vadd.f32 %v1104, %v1162
        %v1191 = vadd.f32 %v1105, %v1163
        %v1192 = vadd.f32 %v1106, %v1164
        %v1193 = vadd.f32 %v1107, %v1165
        %v1194 = vadd.f32 %v1108, %v1166
        %v1195 = vadd.f32 %v1109, %v1167
        %v1196 = vadd.f32 %v1110, %v1168
        %v1197 = vadd.f32 %v1111, %v1169
        %v1198 = vadd.f32 %v1112, %v1170
        %v1199 = vadd.f32 %v1113, %v1171
        %v1200 = vadd.f32 %v1114, %v1172
        %v1201 = vld [vmem:[%s1070] sm:$0xfe]
        %v1202 = vld [vmem:[%s1070 + $0x8] sm:$0xfe]
        %v1203 = vld [vmem:[%s1070 + $0x20] sm:$0xfe]
        %v1204 = vld [vmem:[%s1070 + $0x28] sm:$0xfe]
        %v1205 = vld [vmem:[%s1070 + $0x40] sm:$0xfe]
        %v1206 = vld [vmem:[%s1070 + $0x48] sm:$0xfe]
        %v1207 = vld [vmem:[%s1070 + $0x60] sm:$0xfe]
        %v1208 = vld [vmem:[%s1070 + $0x68] sm:$0xfe]
        %v1209 = vld [vmem:[%s1070 + $0x80] sm:$0xfe]
        %v1210 = vld [vmem:[%s1070 + $0x88] sm:$0xfe]
        %v1211 = vld [vmem:[%s1070 + $0xa0] sm:$0xfe]
        %v1212 = vld [vmem:[%s1070 + $0xa8] sm:$0xfe]
        %v1213 = vld [vmem:[%s1070 + $0xc0] sm:$0xfe]
        %v1214 = vld [vmem:[%s1070 + $0xc8] sm:$0xfe]
        %v1215 = vperm.slane %v599, 3
        %v1216 = vperm.slane %v600, 3
        %v1217 = vmul.f32 %v1201, %v1215
        %v1218 = vmul.f32 %v1202, %v1216
        %v1219 = vmul.f32 %v1203, %v1215
        %v1220 = vmul.f32 %v1204, %v1216
        %v1221 = vmul.f32 %v1205, %v1215
        %v1222 = vmul.f32 %v1206, %v1216
        %v1223 = vmul.f32 %v1207, %v1215
        %v1224 = vmul.f32 %v1208, %v1216
        %v1225 = vmul.f32 %v1209, %v1215
        %v1226 = vmul.f32 %v1210, %v1216
        %v1227 = vmul.f32 %v1211, %v1215
        %v1228 = vmul.f32 %v1212, %v1216
        %v1229 = vmul.f32 %v1213, %v1215
        %v1230 = vmul.f32 %v1214, %v1216
        %v1245 = vrot.slane %v1217, 1
        %v1246 = vrot.slane %v1218, 1
        %v1247 = vrot.slane %v1219, 1
        %v1248 = vrot.slane %v1220, 1
        %v1249 = vrot.slane %v1221, 1
        %v1250 = vrot.slane %v1222, 1
        %v1251 = vrot.slane %v1223, 1
        %v1252 = vrot.slane %v1224, 1
        %v1253 = vrot.slane %v1225, 1
        %v1254 = vrot.slane %v1226, 1
        %v1255 = vrot.slane %v1227, 1
        %v1256 = vrot.slane %v1228, 1
        %v1257 = vrot.slane %v1229, 1
        %v1258 = vrot.slane %v1230, 1
        %v1273 = vadd.f32 %v1187, %v1245
        %v1274 = vadd.f32 %v1188, %v1246
        %v1275 = vadd.f32 %v1189, %v1247
        %v1276 = vadd.f32 %v1190, %v1248
        %v1277 = vadd.f32 %v1191, %v1249
        %v1278 = vadd.f32 %v1192, %v1250
        %v1279 = vadd.f32 %v1193, %v1251
        %v1280 = vadd.f32 %v1194, %v1252
        %v1281 = vadd.f32 %v1195, %v1253
        %v1282 = vadd.f32 %v1196, %v1254
        %v1283 = vadd.f32 %v1197, %v1255
        %v1284 = vadd.f32 %v1198, %v1256
        %v1285 = vadd.f32 %v1199, %v1257
        %v1286 = vadd.f32 %v1200, %v1258
        %v1287 = vld [vmem:[%s1025] sm:$0xfc]
        %v1288 = vld [vmem:[%s1025 + $0x8] sm:$0xfc]
        %v1289 = vld [vmem:[%s1025 + $0x10] sm:$0x1]
        %v1290 = vld [vmem:[%s1025 + $0x18] sm:$0x1]
        %v1291 = vld [vmem:[%s1025 + $0x20] sm:$0xfc]
        %v1292 = vld [vmem:[%s1025 + $0x28] sm:$0xfc]
        %v1293 = vld [vmem:[%s1025 + $0x30] sm:$0x1]
        %v1294 = vld [vmem:[%s1025 + $0x38] sm:$0x1]
        %v1295 = vld [vmem:[%s1025 + $0x40] sm:$0xfc]
        %v1296 = vld [vmem:[%s1025 + $0x48] sm:$0xfc]
        %v1297 = vld [vmem:[%s1025 + $0x50] sm:$0x1]
        %v1298 = vld [vmem:[%s1025 + $0x58] sm:$0x1]
        %v1299 = vld [vmem:[%s1025 + $0x60] sm:$0xfc]
        %v1300 = vld [vmem:[%s1025 + $0x68] sm:$0xfc]
        %v1301 = vld [vmem:[%s1025 + $0x70] sm:$0x1]
        %v1302 = vld [vmem:[%s1025 + $0x78] sm:$0x1]
        %v1303 = vld [vmem:[%s1025 + $0x80] sm:$0xfc]
        %v1304 = vld [vmem:[%s1025 + $0x88] sm:$0xfc]
        %v1305 = vld [vmem:[%s1025 + $0x90] sm:$0x1]
        %v1306 = vld [vmem:[%s1025 + $0x98] sm:$0x1]
        %v1307 = vld [vmem:[%s1025 + $0xa0] sm:$0xfc]
        %v1308 = vld [vmem:[%s1025 + $0xa8] sm:$0xfc]
        %v1309 = vld [vmem:[%s1025 + $0xb0] sm:$0x1]
        %v1310 = vld [vmem:[%s1025 + $0xb8] sm:$0x1]
        %v1311 = vld [vmem:[%s1025 + $0xc0] sm:$0xfc]
        %v1312 = vld [vmem:[%s1025 + $0xc8] sm:$0xfc]
        %v1313 = vld [vmem:[%s1025 + $0xd0] sm:$0x1]
        %v1314 = vld [vmem:[%s1025 + $0xd8] sm:$0x1]
        %v1315 = vperm.slane %v599, 4
        %v1316 = vperm.slane %v600, 4
        %v1317 = vmul.f32 %v1287, %v1315
        %v1318 = vmul.f32 %v1288, %v1316
        %v1319 = vmul.f32 %v1289, %v1315
        %v1320 = vmul.f32 %v1290, %v1316
        %v1321 = vmul.f32 %v1291, %v1315
        %v1322 = vmul.f32 %v1292, %v1316
        %v1323 = vmul.f32 %v1293, %v1315
        %v1324 = vmul.f32 %v1294, %v1316
        %v1325 = vmul.f32 %v1295, %v1315
        %v1326 = vmul.f32 %v1296, %v1316
        %v1327 = vmul.f32 %v1297, %v1315
        %v1328 = vmul.f32 %v1298, %v1316
        %v1329 = vmul.f32 %v1299, %v1315
        %v1330 = vmul.f32 %v1300, %v1316
        %v1331 = vmul.f32 %v1301, %v1315
        %v1332 = vmul.f32 %v1302, %v1316
        %v1333 = vmul.f32 %v1303, %v1315
        %v1334 = vmul.f32 %v1304, %v1316
        %v1335 = vmul.f32 %v1305, %v1315
        %v1336 = vmul.f32 %v1306, %v1316
        %v1337 = vmul.f32 %v1307, %v1315
        %v1338 = vmul.f32 %v1308, %v1316
        %v1339 = vmul.f32 %v1309, %v1315
        %v1340 = vmul.f32 %v1310, %v1316
        %v1341 = vmul.f32 %v1311, %v1315
        %v1342 = vmul.f32 %v1312, %v1316
        %v1343 = vmul.f32 %v1313, %v1315
        %v1344 = vmul.f32 %v1314, %v1316
        %v1373 = vrot.slane %v1317, 2
        %v1374 = vrot.slane %v1319, 2
        %v1375 = vsel %vm954, %v1373, %v1374
        %v1376 = vrot.slane %v1318, 2
        %v1377 = vrot.slane %v1320, 2
        %v1378 = vsel %vm954, %v1376, %v1377
        %v1379 = vrot.slane %v1321, 2
        %v1380 = vrot.slane %v1323, 2
        %v1381 = vsel %vm954, %v1379, %v1380
        %v1382 = vrot.slane %v1322, 2
        %v1383 = vrot.slane %v1324, 2
        %v1384 = vsel %vm954, %v1382, %v1383
        %v1385 = vrot.slane %v1325, 2
        %v1386 = vrot.slane %v1327, 2
        %v1387 = vsel %vm954, %v1385, %v1386
        %v1388 = vrot.slane %v1326, 2
        %v1389 = vrot.slane %v1328, 2
        %v1390 = vsel %vm954, %v1388, %v1389
        %v1391 = vrot.slane %v1329, 2
        %v1392 = vrot.slane %v1331, 2
        %v1393 = vsel %vm954, %v1391, %v1392
        %v1394 = vrot.slane %v1330, 2
        %v1395 = vrot.slane %v1332, 2
        %v1396 = vsel %vm954, %v1394, %v1395
        %v1397 = vrot.slane %v1333, 2
        %v1398 = vrot.slane %v1335, 2
        %v1399 = vsel %vm954, %v1397, %v1398
        %v1400 = vrot.slane %v1334, 2
        %v1401 = vrot.slane %v1336, 2
        %v1402 = vsel %vm954, %v1400, %v1401
        %v1403 = vrot.slane %v1337, 2
        %v1404 = vrot.slane %v1339, 2
        %v1405 = vsel %vm954, %v1403, %v1404
        %v1406 = vrot.slane %v1338, 2
        %v1407 = vrot.slane %v1340, 2
        %v1408 = vsel %vm954, %v1406, %v1407
        %v1409 = vrot.slane %v1341, 2
        %v1410 = vrot.slane %v1343, 2
        %v1411 = vsel %vm954, %v1409, %v1410
        %v1412 = vrot.slane %v1342, 2
        %v1413 = vrot.slane %v1344, 2
        %v1414 = vsel %vm954, %v1412, %v1413
        %v1429 = vadd.f32 %v1273, %v1375
        %v1430 = vadd.f32 %v1274, %v1378
        %v1431 = vadd.f32 %v1275, %v1381
        %v1432 = vadd.f32 %v1276, %v1384
        %v1433 = vadd.f32 %v1277, %v1387
        %v1434 = vadd.f32 %v1278, %v1390
        %v1435 = vadd.f32 %v1279, %v1393
        %v1436 = vadd.f32 %v1280, %v1396
        %v1437 = vadd.f32 %v1281, %v1399
        %v1438 = vadd.f32 %v1282, %v1402
        %v1439 = vadd.f32 %v1283, %v1405
        %v1440 = vadd.f32 %v1284, %v1408
        %v1441 = vadd.f32 %v1285, %v1411
        %v1442 = vadd.f32 %v1286, %v1414
        %s1443 = scalar_lea.vmem %s543, 32 [#allocation2]
        %v1444 = vld [vmem:[%s1443] sm:$0x7f]
        %v1445 = vld [vmem:[%s1443 + $0x8] sm:$0x7f]
        %v1446 = vld [vmem:[%s1443 + $0x20] sm:$0x7f]
        %v1447 = vld [vmem:[%s1443 + $0x28] sm:$0x7f]
        %v1448 = vld [vmem:[%s1443 + $0x40] sm:$0x7f]
        %v1449 = vld [vmem:[%s1443 + $0x48] sm:$0x7f]
        %v1450 = vld [vmem:[%s1443 + $0x60] sm:$0x7f]
        %v1451 = vld [vmem:[%s1443 + $0x68] sm:$0x7f]
        %v1452 = vld [vmem:[%s1443 + $0x80] sm:$0x7f]
        %v1453 = vld [vmem:[%s1443 + $0x88] sm:$0x7f]
        %v1454 = vld [vmem:[%s1443 + $0xa0] sm:$0x7f]
        %v1455 = vld [vmem:[%s1443 + $0xa8] sm:$0x7f]
        %v1456 = vld [vmem:[%s1443 + $0xc0] sm:$0x7f]
        %v1457 = vld [vmem:[%s1443 + $0xc8] sm:$0x7f]
        %v1458 = vperm.slane %v601, 0
        %v1459 = vperm.slane %v602, 0
        %v1460 = vmul.f32 %v1444, %v1458
        %v1461 = vmul.f32 %v1445, %v1459
        %v1462 = vmul.f32 %v1446, %v1458
        %v1463 = vmul.f32 %v1447, %v1459
        %v1464 = vmul.f32 %v1448, %v1458
        %v1465 = vmul.f32 %v1449, %v1459
        %v1466 = vmul.f32 %v1450, %v1458
        %v1467 = vmul.f32 %v1451, %v1459
        %v1468 = vmul.f32 %v1452, %v1458
        %v1469 = vmul.f32 %v1453, %v1459
        %v1470 = vmul.f32 %v1454, %v1458
        %v1471 = vmul.f32 %v1455, %v1459
        %v1472 = vmul.f32 %v1456, %v1458
        %v1473 = vmul.f32 %v1457, %v1459
        %v1474 = vadd.f32 %v1429, %v1460
        %v1475 = vadd.f32 %v1430, %v1461
        %v1476 = vadd.f32 %v1431, %v1462
        %v1477 = vadd.f32 %v1432, %v1463
        %v1478 = vadd.f32 %v1433, %v1464
        %v1479 = vadd.f32 %v1434, %v1465
        %v1480 = vadd.f32 %v1435, %v1466
        %v1481 = vadd.f32 %v1436, %v1467
        %v1482 = vadd.f32 %v1437, %v1468
        %v1483 = vadd.f32 %v1438, %v1469
        %v1484 = vadd.f32 %v1439, %v1470
        %v1485 = vadd.f32 %v1440, %v1471
        %v1486 = vadd.f32 %v1441, %v1472
        %v1487 = vadd.f32 %v1442, %v1473
        %s1488 = scalar_lea.vmem %s543, 320 [#allocation2]
        %v1489 = vld [vmem:[%s1488] sm:$0x7f]
        %v1490 = vld [vmem:[%s1488 + $0x8] sm:$0x7f]
        %v1491 = vld [vmem:[%s1488 + $0x20] sm:$0x7f]
        %v1492 = vld [vmem:[%s1488 + $0x28] sm:$0x7f]
        %v1493 = vld [vmem:[%s1488 + $0x40] sm:$0x7f]
        %v1494 = vld [vmem:[%s1488 + $0x48] sm:$0x7f]
        %v1495 = vld [vmem:[%s1488 + $0x60] sm:$0x7f]
        %v1496 = vld [vmem:[%s1488 + $0x68] sm:$0x7f]
        %v1497 = vld [vmem:[%s1488 + $0x80] sm:$0x7f]
        %v1498 = vld [vmem:[%s1488 + $0x88] sm:$0x7f]
        %v1499 = vld [vmem:[%s1488 + $0xa0] sm:$0x7f]
        %v1500 = vld [vmem:[%s1488 + $0xa8] sm:$0x7f]
        %v1501 = vld [vmem:[%s1488 + $0xc0] sm:$0x7f]
        %v1502 = vld [vmem:[%s1488 + $0xc8] sm:$0x7f]
        %v1503 = vperm.slane %v601, 1
        %v1504 = vperm.slane %v602, 1
        %v1505 = vmul.f32 %v1489, %v1503
        %v1506 = vmul.f32 %v1490, %v1504
        %v1507 = vmul.f32 %v1491, %v1503
        %v1508 = vmul.f32 %v1492, %v1504
        %v1509 = vmul.f32 %v1493, %v1503
        %v1510 = vmul.f32 %v1494, %v1504
        %v1511 = vmul.f32 %v1495, %v1503
        %v1512 = vmul.f32 %v1496, %v1504
        %v1513 = vmul.f32 %v1497, %v1503
        %v1514 = vmul.f32 %v1498, %v1504
        %v1515 = vmul.f32 %v1499, %v1503
        %v1516 = vmul.f32 %v1500, %v1504
        %v1517 = vmul.f32 %v1501, %v1503
        %v1518 = vmul.f32 %v1502, %v1504
        %v1519 = vadd.f32 %v1474, %v1505
        %v1520 = vadd.f32 %v1475, %v1506
        %v1521 = vadd.f32 %v1476, %v1507
        %v1522 = vadd.f32 %v1477, %v1508
        %v1523 = vadd.f32 %v1478, %v1509
        %v1524 = vadd.f32 %v1479, %v1510
        %v1525 = vadd.f32 %v1480, %v1511
        %v1526 = vadd.f32 %v1481, %v1512
        %v1527 = vadd.f32 %v1482, %v1513
        %v1528 = vadd.f32 %v1483, %v1514
        %v1529 = vadd.f32 %v1484, %v1515
        %v1530 = vadd.f32 %v1485, %v1516
        %v1531 = vadd.f32 %v1486, %v1517
        %v1532 = vadd.f32 %v1487, %v1518
        %v1533 = vld [vmem:[%s1443] sm:$0xfe]
        %v1534 = vld [vmem:[%s1443 + $0x8] sm:$0xfe]
        %v1535 = vld [vmem:[%s1443 + $0x20] sm:$0xfe]
        %v1536 = vld [vmem:[%s1443 + $0x28] sm:$0xfe]
        %v1537 = vld [vmem:[%s1443 + $0x40] sm:$0xfe]
        %v1538 = vld [vmem:[%s1443 + $0x48] sm:$0xfe]
        %v1539 = vld [vmem:[%s1443 + $0x60] sm:$0xfe]
        %v1540 = vld [vmem:[%s1443 + $0x68] sm:$0xfe]
        %v1541 = vld [vmem:[%s1443 + $0x80] sm:$0xfe]
        %v1542 = vld [vmem:[%s1443 + $0x88] sm:$0xfe]
        %v1543 = vld [vmem:[%s1443 + $0xa0] sm:$0xfe]
        %v1544 = vld [vmem:[%s1443 + $0xa8] sm:$0xfe]
        %v1545 = vld [vmem:[%s1443 + $0xc0] sm:$0xfe]
        %v1546 = vld [vmem:[%s1443 + $0xc8] sm:$0xfe]
        %v1547 = vperm.slane %v601, 2
        %v1548 = vperm.slane %v602, 2
        %v1549 = vmul.f32 %v1533, %v1547
        %v1550 = vmul.f32 %v1534, %v1548
        %v1551 = vmul.f32 %v1535, %v1547
        %v1552 = vmul.f32 %v1536, %v1548
        %v1553 = vmul.f32 %v1537, %v1547
        %v1554 = vmul.f32 %v1538, %v1548
        %v1555 = vmul.f32 %v1539, %v1547
        %v1556 = vmul.f32 %v1540, %v1548
        %v1557 = vmul.f32 %v1541, %v1547
        %v1558 = vmul.f32 %v1542, %v1548
        %v1559 = vmul.f32 %v1543, %v1547
        %v1560 = vmul.f32 %v1544, %v1548
        %v1561 = vmul.f32 %v1545, %v1547
        %v1562 = vmul.f32 %v1546, %v1548
        %v1577 = vrot.slane %v1549, 1
        %v1578 = vrot.slane %v1550, 1
        %v1579 = vrot.slane %v1551, 1
        %v1580 = vrot.slane %v1552, 1
        %v1581 = vrot.slane %v1553, 1
        %v1582 = vrot.slane %v1554, 1
        %v1583 = vrot.slane %v1555, 1
        %v1584 = vrot.slane %v1556, 1
        %v1585 = vrot.slane %v1557, 1
        %v1586 = vrot.slane %v1558, 1
        %v1587 = vrot.slane %v1559, 1
        %v1588 = vrot.slane %v1560, 1
        %v1589 = vrot.slane %v1561, 1
        %v1590 = vrot.slane %v1562, 1
        %v1605 = vadd.f32 %v1519, %v1577
        %v1606 = vadd.f32 %v1520, %v1578
        %v1607 = vadd.f32 %v1521, %v1579
        %v1608 = vadd.f32 %v1522, %v1580
        %v1609 = vadd.f32 %v1523, %v1581
        %v1610 = vadd.f32 %v1524, %v1582
        %v1611 = vadd.f32 %v1525, %v1583
        %v1612 = vadd.f32 %v1526, %v1584
        %v1613 = vadd.f32 %v1527, %v1585
        %v1614 = vadd.f32 %v1528, %v1586
        %v1615 = vadd.f32 %v1529, %v1587
        %v1616 = vadd.f32 %v1530, %v1588
        %v1617 = vadd.f32 %v1531, %v1589
        %v1618 = vadd.f32 %v1532, %v1590
        %v1619 = vld [vmem:[%s1488] sm:$0xfe]
        %v1620 = vld [vmem:[%s1488 + $0x8] sm:$0xfe]
        %v1621 = vld [vmem:[%s1488 + $0x20] sm:$0xfe]
        %v1622 = vld [vmem:[%s1488 + $0x28] sm:$0xfe]
        %v1623 = vld [vmem:[%s1488 + $0x40] sm:$0xfe]
        %v1624 = vld [vmem:[%s1488 + $0x48] sm:$0xfe]
        %v1625 = vld [vmem:[%s1488 + $0x60] sm:$0xfe]
        %v1626 = vld [vmem:[%s1488 + $0x68] sm:$0xfe]
        %v1627 = vld [vmem:[%s1488 + $0x80] sm:$0xfe]
        %v1628 = vld [vmem:[%s1488 + $0x88] sm:$0xfe]
        %v1629 = vld [vmem:[%s1488 + $0xa0] sm:$0xfe]
        %v1630 = vld [vmem:[%s1488 + $0xa8] sm:$0xfe]
        %v1631 = vld [vmem:[%s1488 + $0xc0] sm:$0xfe]
        %v1632 = vld [vmem:[%s1488 + $0xc8] sm:$0xfe]
        %v1633 = vperm.slane %v601, 3
        %v1634 = vperm.slane %v602, 3
        %v1635 = vmul.f32 %v1619, %v1633
        %v1636 = vmul.f32 %v1620, %v1634
        %v1637 = vmul.f32 %v1621, %v1633
        %v1638 = vmul.f32 %v1622, %v1634
        %v1639 = vmul.f32 %v1623, %v1633
        %v1640 = vmul.f32 %v1624, %v1634
        %v1641 = vmul.f32 %v1625, %v1633
        %v1642 = vmul.f32 %v1626, %v1634
        %v1643 = vmul.f32 %v1627, %v1633
        %v1644 = vmul.f32 %v1628, %v1634
        %v1645 = vmul.f32 %v1629, %v1633
        %v1646 = vmul.f32 %v1630, %v1634
        %v1647 = vmul.f32 %v1631, %v1633
        %v1648 = vmul.f32 %v1632, %v1634
        %v1663 = vrot.slane %v1635, 1
        %v1664 = vrot.slane %v1636, 1
        %v1665 = vrot.slane %v1637, 1
        %v1666 = vrot.slane %v1638, 1
        %v1667 = vrot.slane %v1639, 1
        %v1668 = vrot.slane %v1640, 1
        %v1669 = vrot.slane %v1641, 1
        %v1670 = vrot.slane %v1642, 1
        %v1671 = vrot.slane %v1643, 1
        %v1672 = vrot.slane %v1644, 1
        %v1673 = vrot.slane %v1645, 1
        %v1674 = vrot.slane %v1646, 1
        %v1675 = vrot.slane %v1647, 1
        %v1676 = vrot.slane %v1648, 1
        %v1691 = vadd.f32 %v1605, %v1663
        %v1692 = vadd.f32 %v1606, %v1664
        %v1693 = vadd.f32 %v1607, %v1665
        %v1694 = vadd.f32 %v1608, %v1666
        %v1695 = vadd.f32 %v1609, %v1667
        %v1696 = vadd.f32 %v1610, %v1668
        %v1697 = vadd.f32 %v1611, %v1669
        %v1698 = vadd.f32 %v1612, %v1670
        %v1699 = vadd.f32 %v1613, %v1671
        %v1700 = vadd.f32 %v1614, %v1672
        %v1701 = vadd.f32 %v1615, %v1673
        %v1702 = vadd.f32 %v1616, %v1674
        %v1703 = vadd.f32 %v1617, %v1675
        %v1704 = vadd.f32 %v1618, %v1676
        %v1705 = vld [vmem:[%s1443] sm:$0xfc]
        %v1706 = vld [vmem:[%s1443 + $0x8] sm:$0xfc]
        %v1707 = vld [vmem:[%s1443 + $0x10] sm:$0x1]
        %v1708 = vld [vmem:[%s1443 + $0x18] sm:$0x1]
        %v1709 = vld [vmem:[%s1443 + $0x20] sm:$0xfc]
        %v1710 = vld [vmem:[%s1443 + $0x28] sm:$0xfc]
        %v1711 = vld [vmem:[%s1443 + $0x30] sm:$0x1]
        %v1712 = vld [vmem:[%s1443 + $0x38] sm:$0x1]
        %v1713 = vld [vmem:[%s1443 + $0x40] sm:$0xfc]
        %v1714 = vld [vmem:[%s1443 + $0x48] sm:$0xfc]
        %v1715 = vld [vmem:[%s1443 + $0x50] sm:$0x1]
        %v1716 = vld [vmem:[%s1443 + $0x58] sm:$0x1]
        %v1717 = vld [vmem:[%s1443 + $0x60] sm:$0xfc]
        %v1718 = vld [vmem:[%s1443 + $0x68] sm:$0xfc]
        %v1719 = vld [vmem:[%s1443 + $0x70] sm:$0x1]
        %v1720 = vld [vmem:[%s1443 + $0x78] sm:$0x1]
        %v1721 = vld [vmem:[%s1443 + $0x80] sm:$0xfc]
        %v1722 = vld [vmem:[%s1443 + $0x88] sm:$0xfc]
        %v1723 = vld [vmem:[%s1443 + $0x90] sm:$0x1]
        %v1724 = vld [vmem:[%s1443 + $0x98] sm:$0x1]
        %v1725 = vld [vmem:[%s1443 + $0xa0] sm:$0xfc]
        %v1726 = vld [vmem:[%s1443 + $0xa8] sm:$0xfc]
        %v1727 = vld [vmem:[%s1443 + $0xb0] sm:$0x1]
        %v1728 = vld [vmem:[%s1443 + $0xb8] sm:$0x1]
        %v1729 = vld [vmem:[%s1443 + $0xc0] sm:$0xfc]
        %v1730 = vld [vmem:[%s1443 + $0xc8] sm:$0xfc]
        %v1731 = vld [vmem:[%s1443 + $0xd0] sm:$0x1]
        %v1732 = vld [vmem:[%s1443 + $0xd8] sm:$0x1]
        %v1733 = vperm.slane %v601, 4
        %v1734 = vperm.slane %v602, 4
        %v1735 = vmul.f32 %v1705, %v1733
        %v1736 = vmul.f32 %v1706, %v1734
        %v1737 = vmul.f32 %v1707, %v1733
        %v1738 = vmul.f32 %v1708, %v1734
        %v1739 = vmul.f32 %v1709, %v1733
        %v1740 = vmul.f32 %v1710, %v1734
        %v1741 = vmul.f32 %v1711, %v1733
        %v1742 = vmul.f32 %v1712, %v1734
        %v1743 = vmul.f32 %v1713, %v1733
        %v1744 = vmul.f32 %v1714, %v1734
        %v1745 = vmul.f32 %v1715, %v1733
        %v1746 = vmul.f32 %v1716, %v1734
        %v1747 = vmul.f32 %v1717, %v1733
        %v1748 = vmul.f32 %v1718, %v1734
        %v1749 = vmul.f32 %v1719, %v1733
        %v1750 = vmul.f32 %v1720, %v1734
        %v1751 = vmul.f32 %v1721, %v1733
        %v1752 = vmul.f32 %v1722, %v1734
        %v1753 = vmul.f32 %v1723, %v1733
        %v1754 = vmul.f32 %v1724, %v1734
        %v1755 = vmul.f32 %v1725, %v1733
        %v1756 = vmul.f32 %v1726, %v1734
        %v1757 = vmul.f32 %v1727, %v1733
        %v1758 = vmul.f32 %v1728, %v1734
        %v1759 = vmul.f32 %v1729, %v1733
        %v1760 = vmul.f32 %v1730, %v1734
        %v1761 = vmul.f32 %v1731, %v1733
        %v1762 = vmul.f32 %v1732, %v1734
        %v1791 = vrot.slane %v1735, 2
        %v1792 = vrot.slane %v1737, 2
        %v1793 = vsel %vm954, %v1791, %v1792
        %v1794 = vrot.slane %v1736, 2
        %v1795 = vrot.slane %v1738, 2
        %v1796 = vsel %vm954, %v1794, %v1795
        %v1797 = vrot.slane %v1739, 2
        %v1798 = vrot.slane %v1741, 2
        %v1799 = vsel %vm954, %v1797, %v1798
        %v1800 = vrot.slane %v1740, 2
        %v1801 = vrot.slane %v1742, 2
        %v1802 = vsel %vm954, %v1800, %v1801
        %v1803 = vrot.slane %v1743, 2
        %v1804 = vrot.slane %v1745, 2
        %v1805 = vsel %vm954, %v1803, %v1804
        %v1806 = vrot.slane %v1744, 2
        %v1807 = vrot.slane %v1746, 2
        %v1808 = vsel %vm954, %v1806, %v1807
        %v1809 = vrot.slane %v1747, 2
        %v1810 = vrot.slane %v1749, 2
        %v1811 = vsel %vm954, %v1809, %v1810
        %v1812 = vrot.slane %v1748, 2
        %v1813 = vrot.slane %v1750, 2
        %v1814 = vsel %vm954, %v1812, %v1813
        %v1815 = vrot.slane %v1751, 2
        %v1816 = vrot.slane %v1753, 2
        %v1817 = vsel %vm954, %v1815, %v1816
        %v1818 = vrot.slane %v1752, 2
        %v1819 = vrot.slane %v1754, 2
        %v1820 = vsel %vm954, %v1818, %v1819
        %v1821 = vrot.slane %v1755, 2
        %v1822 = vrot.slane %v1757, 2
        %v1823 = vsel %vm954, %v1821, %v1822
        %v1824 = vrot.slane %v1756, 2
        %v1825 = vrot.slane %v1758, 2
        %v1826 = vsel %vm954, %v1824, %v1825
        %v1827 = vrot.slane %v1759, 2
        %v1828 = vrot.slane %v1761, 2
        %v1829 = vsel %vm954, %v1827, %v1828
        %v1830 = vrot.slane %v1760, 2
        %v1831 = vrot.slane %v1762, 2
        %v1832 = vsel %vm954, %v1830, %v1831
        %v1847 = vadd.f32 %v1691, %v1793
        %v1848 = vadd.f32 %v1692, %v1796
        %v1849 = vadd.f32 %v1693, %v1799
        %v1850 = vadd.f32 %v1694, %v1802
        %v1851 = vadd.f32 %v1695, %v1805
        %v1852 = vadd.f32 %v1696, %v1808
        %v1853 = vadd.f32 %v1697, %v1811
        %v1854 = vadd.f32 %v1698, %v1814
        %v1855 = vadd.f32 %v1699, %v1817
        %v1856 = vadd.f32 %v1700, %v1820
        %v1857 = vadd.f32 %v1701, %v1823
        %v1858 = vadd.f32 %v1702, %v1826
        %v1859 = vadd.f32 %v1703, %v1829
        %v1860 = vadd.f32 %v1704, %v1832
        %s1861 = scalar_lea.vmem %s543, 608 [#allocation2]
        %v1862 = vld [vmem:[%s1861] sm:$0x7f]
        %v1863 = vld [vmem:[%s1861 + $0x8] sm:$0x7f]
        %v1864 = vld [vmem:[%s1861 + $0x20] sm:$0x7f]
        %v1865 = vld [vmem:[%s1861 + $0x28] sm:$0x7f]
        %v1866 = vld [vmem:[%s1861 + $0x40] sm:$0x7f]
        %v1867 = vld [vmem:[%s1861 + $0x48] sm:$0x7f]
        %v1868 = vld [vmem:[%s1861 + $0x60] sm:$0x7f]
        %v1869 = vld [vmem:[%s1861 + $0x68] sm:$0x7f]
        %v1870 = vld [vmem:[%s1861 + $0x80] sm:$0x7f]
        %v1871 = vld [vmem:[%s1861 + $0x88] sm:$0x7f]
        %v1872 = vld [vmem:[%s1861 + $0xa0] sm:$0x7f]
        %v1873 = vld [vmem:[%s1861 + $0xa8] sm:$0x7f]
        %v1874 = vld [vmem:[%s1861 + $0xc0] sm:$0x7f]
        %v1875 = vld [vmem:[%s1861 + $0xc8] sm:$0x7f]
        %v1876 = vperm.slane %v603, 0
        %v1877 = vperm.slane %v604, 0
        %v1878 = vmul.f32 %v1862, %v1876
        %v1879 = vmul.f32 %v1863, %v1877
        %v1880 = vmul.f32 %v1864, %v1876
        %v1881 = vmul.f32 %v1865, %v1877
        %v1882 = vmul.f32 %v1866, %v1876
        %v1883 = vmul.f32 %v1867, %v1877
        %v1884 = vmul.f32 %v1868, %v1876
        %v1885 = vmul.f32 %v1869, %v1877
        %v1886 = vmul.f32 %v1870, %v1876
        %v1887 = vmul.f32 %v1871, %v1877
        %v1888 = vmul.f32 %v1872, %v1876
        %v1889 = vmul.f32 %v1873, %v1877
        %v1890 = vmul.f32 %v1874, %v1876
        %v1891 = vmul.f32 %v1875, %v1877
        %v1892 = vadd.f32 %v1847, %v1878
        %v1893 = vadd.f32 %v1848, %v1879
        %v1894 = vadd.f32 %v1849, %v1880
        %v1895 = vadd.f32 %v1850, %v1881
        %v1896 = vadd.f32 %v1851, %v1882
        %v1897 = vadd.f32 %v1852, %v1883
        %v1898 = vadd.f32 %v1853, %v1884
        %v1899 = vadd.f32 %v1854, %v1885
        %v1900 = vadd.f32 %v1855, %v1886
        %v1901 = vadd.f32 %v1856, %v1887
        %v1902 = vadd.f32 %v1857, %v1888
        %v1903 = vadd.f32 %v1858, %v1889
        %v1904 = vadd.f32 %v1859, %v1890
        %v1905 = vadd.f32 %v1860, %v1891
        %s1906 = scalar_lea.vmem %s543, 896 [#allocation2]
        %v1907 = vld [vmem:[%s1906] sm:$0x7f]
        %v1908 = vld [vmem:[%s1906 + $0x8] sm:$0x7f]
        %v1909 = vld [vmem:[%s1906 + $0x20] sm:$0x7f]
        %v1910 = vld [vmem:[%s1906 + $0x28] sm:$0x7f]
        %v1911 = vld [vmem:[%s1906 + $0x40] sm:$0x7f]
        %v1912 = vld [vmem:[%s1906 + $0x48] sm:$0x7f]
        %v1913 = vld [vmem:[%s1906 + $0x60] sm:$0x7f]
        %v1914 = vld [vmem:[%s1906 + $0x68] sm:$0x7f]
        %v1915 = vld [vmem:[%s1906 + $0x80] sm:$0x7f]
        %v1916 = vld [vmem:[%s1906 + $0x88] sm:$0x7f]
        %v1917 = vld [vmem:[%s1906 + $0xa0] sm:$0x7f]
        %v1918 = vld [vmem:[%s1906 + $0xa8] sm:$0x7f]
        %v1919 = vld [vmem:[%s1906 + $0xc0] sm:$0x7f]
        %v1920 = vld [vmem:[%s1906 + $0xc8] sm:$0x7f]
        %v1921 = vperm.slane %v603, 1
        %v1922 = vperm.slane %v604, 1
        %v1923 = vmul.f32 %v1907, %v1921
        %v1924 = vmul.f32 %v1908, %v1922
        %v1925 = vmul.f32 %v1909, %v1921
        %v1926 = vmul.f32 %v1910, %v1922
        %v1927 = vmul.f32 %v1911, %v1921
        %v1928 = vmul.f32 %v1912, %v1922
        %v1929 = vmul.f32 %v1913, %v1921
        %v1930 = vmul.f32 %v1914, %v1922
        %v1931 = vmul.f32 %v1915, %v1921
        %v1932 = vmul.f32 %v1916, %v1922
        %v1933 = vmul.f32 %v1917, %v1921
        %v1934 = vmul.f32 %v1918, %v1922
        %v1935 = vmul.f32 %v1919, %v1921
        %v1936 = vmul.f32 %v1920, %v1922
        %v1937 = vadd.f32 %v1892, %v1923
        %v1938 = vadd.f32 %v1893, %v1924
        %v1939 = vadd.f32 %v1894, %v1925
        %v1940 = vadd.f32 %v1895, %v1926
        %v1941 = vadd.f32 %v1896, %v1927
        %v1942 = vadd.f32 %v1897, %v1928
        %v1943 = vadd.f32 %v1898, %v1929
        %v1944 = vadd.f32 %v1899, %v1930
        %v1945 = vadd.f32 %v1900, %v1931
        %v1946 = vadd.f32 %v1901, %v1932
        %v1947 = vadd.f32 %v1902, %v1933
        %v1948 = vadd.f32 %v1903, %v1934
        %v1949 = vadd.f32 %v1904, %v1935
        %v1950 = vadd.f32 %v1905, %v1936
        %v1951 = vld [vmem:[%s1861] sm:$0xfe]
        %v1952 = vld [vmem:[%s1861 + $0x8] sm:$0xfe]
        %v1953 = vld [vmem:[%s1861 + $0x20] sm:$0xfe]
        %v1954 = vld [vmem:[%s1861 + $0x28] sm:$0xfe]
        %v1955 = vld [vmem:[%s1861 + $0x40] sm:$0xfe]
        %v1956 = vld [vmem:[%s1861 + $0x48] sm:$0xfe]
        %v1957 = vld [vmem:[%s1861 + $0x60] sm:$0xfe]
        %v1958 = vld [vmem:[%s1861 + $0x68] sm:$0xfe]
        %v1959 = vld [vmem:[%s1861 + $0x80] sm:$0xfe]
        %v1960 = vld [vmem:[%s1861 + $0x88] sm:$0xfe]
        %v1961 = vld [vmem:[%s1861 + $0xa0] sm:$0xfe]
        %v1962 = vld [vmem:[%s1861 + $0xa8] sm:$0xfe]
        %v1963 = vld [vmem:[%s1861 + $0xc0] sm:$0xfe]
        %v1964 = vld [vmem:[%s1861 + $0xc8] sm:$0xfe]
        %v1965 = vperm.slane %v603, 2
        %v1966 = vperm.slane %v604, 2
        %v1967 = vmul.f32 %v1951, %v1965
        %v1968 = vmul.f32 %v1952, %v1966
        %v1969 = vmul.f32 %v1953, %v1965
        %v1970 = vmul.f32 %v1954, %v1966
        %v1971 = vmul.f32 %v1955, %v1965
        %v1972 = vmul.f32 %v1956, %v1966
        %v1973 = vmul.f32 %v1957, %v1965
        %v1974 = vmul.f32 %v1958, %v1966
        %v1975 = vmul.f32 %v1959, %v1965
        %v1976 = vmul.f32 %v1960, %v1966
        %v1977 = vmul.f32 %v1961, %v1965
        %v1978 = vmul.f32 %v1962, %v1966
        %v1979 = vmul.f32 %v1963, %v1965
        %v1980 = vmul.f32 %v1964, %v1966
        %v1995 = vrot.slane %v1967, 1
        %v1996 = vrot.slane %v1968, 1
        %v1997 = vrot.slane %v1969, 1
        %v1998 = vrot.slane %v1970, 1
        %v1999 = vrot.slane %v1971, 1
        %v2000 = vrot.slane %v1972, 1
        %v2001 = vrot.slane %v1973, 1
        %v2002 = vrot.slane %v1974, 1
        %v2003 = vrot.slane %v1975, 1
        %v2004 = vrot.slane %v1976, 1
        %v2005 = vrot.slane %v1977, 1
        %v2006 = vrot.slane %v1978, 1
        %v2007 = vrot.slane %v1979, 1
        %v2008 = vrot.slane %v1980, 1
        %v2023 = vadd.f32 %v1937, %v1995
        %v2024 = vadd.f32 %v1938, %v1996
        %v2025 = vadd.f32 %v1939, %v1997
        %v2026 = vadd.f32 %v1940, %v1998
        %v2027 = vadd.f32 %v1941, %v1999
        %v2028 = vadd.f32 %v1942, %v2000
        %v2029 = vadd.f32 %v1943, %v2001
        %v2030 = vadd.f32 %v1944, %v2002
        %v2031 = vadd.f32 %v1945, %v2003
        %v2032 = vadd.f32 %v1946, %v2004
        %v2033 = vadd.f32 %v1947, %v2005
        %v2034 = vadd.f32 %v1948, %v2006
        %v2035 = vadd.f32 %v1949, %v2007
        %v2036 = vadd.f32 %v1950, %v2008
        %v2037 = vld [vmem:[%s1906] sm:$0xfe]
        %v2038 = vld [vmem:[%s1906 + $0x8] sm:$0xfe]
        %v2039 = vld [vmem:[%s1906 + $0x20] sm:$0xfe]
        %v2040 = vld [vmem:[%s1906 + $0x28] sm:$0xfe]
        %v2041 = vld [vmem:[%s1906 + $0x40] sm:$0xfe]
        %v2042 = vld [vmem:[%s1906 + $0x48] sm:$0xfe]
        %v2043 = vld [vmem:[%s1906 + $0x60] sm:$0xfe]
        %v2044 = vld [vmem:[%s1906 + $0x68] sm:$0xfe]
        %v2045 = vld [vmem:[%s1906 + $0x80] sm:$0xfe]
        %v2046 = vld [vmem:[%s1906 + $0x88] sm:$0xfe]
        %v2047 = vld [vmem:[%s1906 + $0xa0] sm:$0xfe]
        %v2048 = vld [vmem:[%s1906 + $0xa8] sm:$0xfe]
        %v2049 = vld [vmem:[%s1906 + $0xc0] sm:$0xfe]
        %v2050 = vld [vmem:[%s1906 + $0xc8] sm:$0xfe]
        %v2051 = vperm.slane %v603, 3
        %v2052 = vperm.slane %v604, 3
        %v2053 = vmul.f32 %v2037, %v2051
        %v2054 = vmul.f32 %v2038, %v2052
        %v2055 = vmul.f32 %v2039, %v2051
        %v2056 = vmul.f32 %v2040, %v2052
        %v2057 = vmul.f32 %v2041, %v2051
        %v2058 = vmul.f32 %v2042, %v2052
        %v2059 = vmul.f32 %v2043, %v2051
        %v2060 = vmul.f32 %v2044, %v2052
        %v2061 = vmul.f32 %v2045, %v2051
        %v2062 = vmul.f32 %v2046, %v2052
        %v2063 = vmul.f32 %v2047, %v2051
        %v2064 = vmul.f32 %v2048, %v2052
        %v2065 = vmul.f32 %v2049, %v2051
        %v2066 = vmul.f32 %v2050, %v2052
        %v2081 = vrot.slane %v2053, 1
        %v2082 = vrot.slane %v2054, 1
        %v2083 = vrot.slane %v2055, 1
        %v2084 = vrot.slane %v2056, 1
        %v2085 = vrot.slane %v2057, 1
        %v2086 = vrot.slane %v2058, 1
        %v2087 = vrot.slane %v2059, 1
        %v2088 = vrot.slane %v2060, 1
        %v2089 = vrot.slane %v2061, 1
        %v2090 = vrot.slane %v2062, 1
        %v2091 = vrot.slane %v2063, 1
        %v2092 = vrot.slane %v2064, 1
        %v2093 = vrot.slane %v2065, 1
        %v2094 = vrot.slane %v2066, 1
        %v2109 = vadd.f32 %v2023, %v2081
        %v2110 = vadd.f32 %v2024, %v2082
        %v2111 = vadd.f32 %v2025, %v2083
        %v2112 = vadd.f32 %v2026, %v2084
        %v2113 = vadd.f32 %v2027, %v2085
        %v2114 = vadd.f32 %v2028, %v2086
        %v2115 = vadd.f32 %v2029, %v2087
        %v2116 = vadd.f32 %v2030, %v2088
        %v2117 = vadd.f32 %v2031, %v2089
        %v2118 = vadd.f32 %v2032, %v2090
        %v2119 = vadd.f32 %v2033, %v2091
        %v2120 = vadd.f32 %v2034, %v2092
        %v2121 = vadd.f32 %v2035, %v2093
        %v2122 = vadd.f32 %v2036, %v2094
        %v2123 = vld [vmem:[%s1861] sm:$0xfc]
        %v2124 = vld [vmem:[%s1861 + $0x8] sm:$0xfc]
        %v2125 = vld [vmem:[%s1861 + $0x10] sm:$0x1]
        %v2126 = vld [vmem:[%s1861 + $0x18] sm:$0x1]
        %v2127 = vld [vmem:[%s1861 + $0x20] sm:$0xfc]
        %v2128 = vld [vmem:[%s1861 + $0x28] sm:$0xfc]
        %v2129 = vld [vmem:[%s1861 + $0x30] sm:$0x1]
        %v2130 = vld [vmem:[%s1861 + $0x38] sm:$0x1]
        %v2131 = vld [vmem:[%s1861 + $0x40] sm:$0xfc]
        %v2132 = vld [vmem:[%s1861 + $0x48] sm:$0xfc]
        %v2133 = vld [vmem:[%s1861 + $0x50] sm:$0x1]
        %v2134 = vld [vmem:[%s1861 + $0x58] sm:$0x1]
        %v2135 = vld [vmem:[%s1861 + $0x60] sm:$0xfc]
        %v2136 = vld [vmem:[%s1861 + $0x68] sm:$0xfc]
        %v2137 = vld [vmem:[%s1861 + $0x70] sm:$0x1]
        %v2138 = vld [vmem:[%s1861 + $0x78] sm:$0x1]
        %v2139 = vld [vmem:[%s1861 + $0x80] sm:$0xfc]
        %v2140 = vld [vmem:[%s1861 + $0x88] sm:$0xfc]
        %v2141 = vld [vmem:[%s1861 + $0x90] sm:$0x1]
        %v2142 = vld [vmem:[%s1861 + $0x98] sm:$0x1]
        %v2143 = vld [vmem:[%s1861 + $0xa0] sm:$0xfc]
        %v2144 = vld [vmem:[%s1861 + $0xa8] sm:$0xfc]
        %v2145 = vld [vmem:[%s1861 + $0xb0] sm:$0x1]
        %v2146 = vld [vmem:[%s1861 + $0xb8] sm:$0x1]
        %v2147 = vld [vmem:[%s1861 + $0xc0] sm:$0xfc]
        %v2148 = vld [vmem:[%s1861 + $0xc8] sm:$0xfc]
        %v2149 = vld [vmem:[%s1861 + $0xd0] sm:$0x1]
        %v2150 = vld [vmem:[%s1861 + $0xd8] sm:$0x1]
        %v2151 = vperm.slane %v603, 4
        %v2152 = vperm.slane %v604, 4
        %v2153 = vmul.f32 %v2123, %v2151
        %v2154 = vmul.f32 %v2124, %v2152
        %v2155 = vmul.f32 %v2125, %v2151
        %v2156 = vmul.f32 %v2126, %v2152
        %v2157 = vmul.f32 %v2127, %v2151
        %v2158 = vmul.f32 %v2128, %v2152
        %v2159 = vmul.f32 %v2129, %v2151
        %v2160 = vmul.f32 %v2130, %v2152
        %v2161 = vmul.f32 %v2131, %v2151
        %v2162 = vmul.f32 %v2132, %v2152
        %v2163 = vmul.f32 %v2133, %v2151
        %v2164 = vmul.f32 %v2134, %v2152
        %v2165 = vmul.f32 %v2135, %v2151
        %v2166 = vmul.f32 %v2136, %v2152
        %v2167 = vmul.f32 %v2137, %v2151
        %v2168 = vmul.f32 %v2138, %v2152
        %v2169 = vmul.f32 %v2139, %v2151
        %v2170 = vmul.f32 %v2140, %v2152
        %v2171 = vmul.f32 %v2141, %v2151
        %v2172 = vmul.f32 %v2142, %v2152
        %v2173 = vmul.f32 %v2143, %v2151
        %v2174 = vmul.f32 %v2144, %v2152
        %v2175 = vmul.f32 %v2145, %v2151
        %v2176 = vmul.f32 %v2146, %v2152
        %v2177 = vmul.f32 %v2147, %v2151
        %v2178 = vmul.f32 %v2148, %v2152
        %v2179 = vmul.f32 %v2149, %v2151
        %v2180 = vmul.f32 %v2150, %v2152
        %v2209 = vrot.slane %v2153, 2
        %v2210 = vrot.slane %v2155, 2
        %v2211 = vsel %vm954, %v2209, %v2210
        %v2212 = vrot.slane %v2154, 2
        %v2213 = vrot.slane %v2156, 2
        %v2214 = vsel %vm954, %v2212, %v2213
        %v2215 = vrot.slane %v2157, 2
        %v2216 = vrot.slane %v2159, 2
        %v2217 = vsel %vm954, %v2215, %v2216
        %v2218 = vrot.slane %v2158, 2
        %v2219 = vrot.slane %v2160, 2
        %v2220 = vsel %vm954, %v2218, %v2219
        %v2221 = vrot.slane %v2161, 2
        %v2222 = vrot.slane %v2163, 2
        %v2223 = vsel %vm954, %v2221, %v2222
        %v2224 = vrot.slane %v2162, 2
        %v2225 = vrot.slane %v2164, 2
        %v2226 = vsel %vm954, %v2224, %v2225
        %v2227 = vrot.slane %v2165, 2
        %v2228 = vrot.slane %v2167, 2
        %v2229 = vsel %vm954, %v2227, %v2228
        %v2230 = vrot.slane %v2166, 2
        %v2231 = vrot.slane %v2168, 2
        %v2232 = vsel %vm954, %v2230, %v2231
        %v2233 = vrot.slane %v2169, 2
        %v2234 = vrot.slane %v2171, 2
        %v2235 = vsel %vm954, %v2233, %v2234
        %v2236 = vrot.slane %v2170, 2
        %v2237 = vrot.slane %v2172, 2
        %v2238 = vsel %vm954, %v2236, %v2237
        %v2239 = vrot.slane %v2173, 2
        %v2240 = vrot.slane %v2175, 2
        %v2241 = vsel %vm954, %v2239, %v2240
        %v2242 = vrot.slane %v2174, 2
        %v2243 = vrot.slane %v2176, 2
        %v2244 = vsel %vm954, %v2242, %v2243
        %v2245 = vrot.slane %v2177, 2
        %v2246 = vrot.slane %v2179, 2
        %v2247 = vsel %vm954, %v2245, %v2246
        %v2248 = vrot.slane %v2178, 2
        %v2249 = vrot.slane %v2180, 2
        %v2250 = vsel %vm954, %v2248, %v2249
        %v2265 = vadd.f32 %v2109, %v2211
        %v2266 = vadd.f32 %v2110, %v2214
        %v2267 = vadd.f32 %v2111, %v2217
        %v2268 = vadd.f32 %v2112, %v2220
        %v2269 = vadd.f32 %v2113, %v2223
        %v2270 = vadd.f32 %v2114, %v2226
        %v2271 = vadd.f32 %v2115, %v2229
        %v2272 = vadd.f32 %v2116, %v2232
        %v2273 = vadd.f32 %v2117, %v2235
        %v2274 = vadd.f32 %v2118, %v2238
        %v2275 = vadd.f32 %v2119, %v2241
        %v2276 = vadd.f32 %v2120, %v2244
        %v2277 = vadd.f32 %v2121, %v2247
        %v2278 = vadd.f32 %v2122, %v2250
        %s2279 = scalar_lea.vmem %s543, 64 [#allocation2]
        %v2280 = vld [vmem:[%s2279] sm:$0x7f]
        %v2281 = vld [vmem:[%s2279 + $0x8] sm:$0x7f]
        %v2282 = vld [vmem:[%s2279 + $0x20] sm:$0x7f]
        %v2283 = vld [vmem:[%s2279 + $0x28] sm:$0x7f]
        %v2284 = vld [vmem:[%s2279 + $0x40] sm:$0x7f]
        %v2285 = vld [vmem:[%s2279 + $0x48] sm:$0x7f]
        %v2286 = vld [vmem:[%s2279 + $0x60] sm:$0x7f]
        %v2287 = vld [vmem:[%s2279 + $0x68] sm:$0x7f]
        %v2288 = vld [vmem:[%s2279 + $0x80] sm:$0x7f]
        %v2289 = vld [vmem:[%s2279 + $0x88] sm:$0x7f]
        %v2290 = vld [vmem:[%s2279 + $0xa0] sm:$0x7f]
        %v2291 = vld [vmem:[%s2279 + $0xa8] sm:$0x7f]
        %v2292 = vld [vmem:[%s2279 + $0xc0] sm:$0x7f]
        %v2293 = vld [vmem:[%s2279 + $0xc8] sm:$0x7f]
        %v2294 = vperm.slane %v605, 0
        %v2295 = vperm.slane %v606, 0
        %v2296 = vmul.f32 %v2280, %v2294
        %v2297 = vmul.f32 %v2281, %v2295
        %v2298 = vmul.f32 %v2282, %v2294
        %v2299 = vmul.f32 %v2283, %v2295
        %v2300 = vmul.f32 %v2284, %v2294
        %v2301 = vmul.f32 %v2285, %v2295
        %v2302 = vmul.f32 %v2286, %v2294
        %v2303 = vmul.f32 %v2287, %v2295
        %v2304 = vmul.f32 %v2288, %v2294
        %v2305 = vmul.f32 %v2289, %v2295
        %v2306 = vmul.f32 %v2290, %v2294
        %v2307 = vmul.f32 %v2291, %v2295
        %v2308 = vmul.f32 %v2292, %v2294
        %v2309 = vmul.f32 %v2293, %v2295
        %v2310 = vadd.f32 %v2265, %v2296
        %v2311 = vadd.f32 %v2266, %v2297
        %v2312 = vadd.f32 %v2267, %v2298
        %v2313 = vadd.f32 %v2268, %v2299
        %v2314 = vadd.f32 %v2269, %v2300
        %v2315 = vadd.f32 %v2270, %v2301
        %v2316 = vadd.f32 %v2271, %v2302
        %v2317 = vadd.f32 %v2272, %v2303
        %v2318 = vadd.f32 %v2273, %v2304
        %v2319 = vadd.f32 %v2274, %v2305
        %v2320 = vadd.f32 %v2275, %v2306
        %v2321 = vadd.f32 %v2276, %v2307
        %v2322 = vadd.f32 %v2277, %v2308
        %v2323 = vadd.f32 %v2278, %v2309
        %s2324 = scalar_lea.vmem %s543, 352 [#allocation2]
        %v2325 = vld [vmem:[%s2324] sm:$0x7f]
        %v2326 = vld [vmem:[%s2324 + $0x8] sm:$0x7f]
        %v2327 = vld [vmem:[%s2324 + $0x20] sm:$0x7f]
        %v2328 = vld [vmem:[%s2324 + $0x28] sm:$0x7f]
        %v2329 = vld [vmem:[%s2324 + $0x40] sm:$0x7f]
        %v2330 = vld [vmem:[%s2324 + $0x48] sm:$0x7f]
        %v2331 = vld [vmem:[%s2324 + $0x60] sm:$0x7f]
        %v2332 = vld [vmem:[%s2324 + $0x68] sm:$0x7f]
        %v2333 = vld [vmem:[%s2324 + $0x80] sm:$0x7f]
        %v2334 = vld [vmem:[%s2324 + $0x88] sm:$0x7f]
        %v2335 = vld [vmem:[%s2324 + $0xa0] sm:$0x7f]
        %v2336 = vld [vmem:[%s2324 + $0xa8] sm:$0x7f]
        %v2337 = vld [vmem:[%s2324 + $0xc0] sm:$0x7f]
        %v2338 = vld [vmem:[%s2324 + $0xc8] sm:$0x7f]
        %v2339 = vperm.slane %v605, 1
        %v2340 = vperm.slane %v606, 1
        %v2341 = vmul.f32 %v2325, %v2339
        %v2342 = vmul.f32 %v2326, %v2340
        %v2343 = vmul.f32 %v2327, %v2339
        %v2344 = vmul.f32 %v2328, %v2340
        %v2345 = vmul.f32 %v2329, %v2339
        %v2346 = vmul.f32 %v2330, %v2340
        %v2347 = vmul.f32 %v2331, %v2339
        %v2348 = vmul.f32 %v2332, %v2340
        %v2349 = vmul.f32 %v2333, %v2339
        %v2350 = vmul.f32 %v2334, %v2340
        %v2351 = vmul.f32 %v2335, %v2339
        %v2352 = vmul.f32 %v2336, %v2340
        %v2353 = vmul.f32 %v2337, %v2339
        %v2354 = vmul.f32 %v2338, %v2340
        %v2355 = vadd.f32 %v2310, %v2341
        %v2356 = vadd.f32 %v2311, %v2342
        %v2357 = vadd.f32 %v2312, %v2343
        %v2358 = vadd.f32 %v2313, %v2344
        %v2359 = vadd.f32 %v2314, %v2345
        %v2360 = vadd.f32 %v2315, %v2346
        %v2361 = vadd.f32 %v2316, %v2347
        %v2362 = vadd.f32 %v2317, %v2348
        %v2363 = vadd.f32 %v2318, %v2349
        %v2364 = vadd.f32 %v2319, %v2350
        %v2365 = vadd.f32 %v2320, %v2351
        %v2366 = vadd.f32 %v2321, %v2352
        %v2367 = vadd.f32 %v2322, %v2353
        %v2368 = vadd.f32 %v2323, %v2354
        %v2369 = vld [vmem:[%s2279] sm:$0xfe]
        %v2370 = vld [vmem:[%s2279 + $0x8] sm:$0xfe]
        %v2371 = vld [vmem:[%s2279 + $0x20] sm:$0xfe]
        %v2372 = vld [vmem:[%s2279 + $0x28] sm:$0xfe]
        %v2373 = vld [vmem:[%s2279 + $0x40] sm:$0xfe]
        %v2374 = vld [vmem:[%s2279 + $0x48] sm:$0xfe]
        %v2375 = vld [vmem:[%s2279 + $0x60] sm:$0xfe]
        %v2376 = vld [vmem:[%s2279 + $0x68] sm:$0xfe]
        %v2377 = vld [vmem:[%s2279 + $0x80] sm:$0xfe]
        %v2378 = vld [vmem:[%s2279 + $0x88] sm:$0xfe]
        %v2379 = vld [vmem:[%s2279 + $0xa0] sm:$0xfe]
        %v2380 = vld [vmem:[%s2279 + $0xa8] sm:$0xfe]
        %v2381 = vld [vmem:[%s2279 + $0xc0] sm:$0xfe]
        %v2382 = vld [vmem:[%s2279 + $0xc8] sm:$0xfe]
        %v2383 = vperm.slane %v605, 2
        %v2384 = vperm.slane %v606, 2
        %v2385 = vmul.f32 %v2369, %v2383
        %v2386 = vmul.f32 %v2370, %v2384
        %v2387 = vmul.f32 %v2371, %v2383
        %v2388 = vmul.f32 %v2372, %v2384
        %v2389 = vmul.f32 %v2373, %v2383
        %v2390 = vmul.f32 %v2374, %v2384
        %v2391 = vmul.f32 %v2375, %v2383
        %v2392 = vmul.f32 %v2376, %v2384
        %v2393 = vmul.f32 %v2377, %v2383
        %v2394 = vmul.f32 %v2378, %v2384
        %v2395 = vmul.f32 %v2379, %v2383
        %v2396 = vmul.f32 %v2380, %v2384
        %v2397 = vmul.f32 %v2381, %v2383
        %v2398 = vmul.f32 %v2382, %v2384
        %v2413 = vrot.slane %v2385, 1
        %v2414 = vrot.slane %v2386, 1
        %v2415 = vrot.slane %v2387, 1
        %v2416 = vrot.slane %v2388, 1
        %v2417 = vrot.slane %v2389, 1
        %v2418 = vrot.slane %v2390, 1
        %v2419 = vrot.slane %v2391, 1
        %v2420 = vrot.slane %v2392, 1
        %v2421 = vrot.slane %v2393, 1
        %v2422 = vrot.slane %v2394, 1
        %v2423 = vrot.slane %v2395, 1
        %v2424 = vrot.slane %v2396, 1
        %v2425 = vrot.slane %v2397, 1
        %v2426 = vrot.slane %v2398, 1
        %v2441 = vadd.f32 %v2355, %v2413
        %v2442 = vadd.f32 %v2356, %v2414
        %v2443 = vadd.f32 %v2357, %v2415
        %v2444 = vadd.f32 %v2358, %v2416
        %v2445 = vadd.f32 %v2359, %v2417
        %v2446 = vadd.f32 %v2360, %v2418
        %v2447 = vadd.f32 %v2361, %v2419
        %v2448 = vadd.f32 %v2362, %v2420
        %v2449 = vadd.f32 %v2363, %v2421
        %v2450 = vadd.f32 %v2364, %v2422
        %v2451 = vadd.f32 %v2365, %v2423
        %v2452 = vadd.f32 %v2366, %v2424
        %v2453 = vadd.f32 %v2367, %v2425
        %v2454 = vadd.f32 %v2368, %v2426
        %v2455 = vld [vmem:[%s2324] sm:$0xfe]
        %v2456 = vld [vmem:[%s2324 + $0x8] sm:$0xfe]
        %v2457 = vld [vmem:[%s2324 + $0x20] sm:$0xfe]
        %v2458 = vld [vmem:[%s2324 + $0x28] sm:$0xfe]
        %v2459 = vld [vmem:[%s2324 + $0x40] sm:$0xfe]
        %v2460 = vld [vmem:[%s2324 + $0x48] sm:$0xfe]
        %v2461 = vld [vmem:[%s2324 + $0x60] sm:$0xfe]
        %v2462 = vld [vmem:[%s2324 + $0x68] sm:$0xfe]
        %v2463 = vld [vmem:[%s2324 + $0x80] sm:$0xfe]
        %v2464 = vld [vmem:[%s2324 + $0x88] sm:$0xfe]
        %v2465 = vld [vmem:[%s2324 + $0xa0] sm:$0xfe]
        %v2466 = vld [vmem:[%s2324 + $0xa8] sm:$0xfe]
        %v2467 = vld [vmem:[%s2324 + $0xc0] sm:$0xfe]
        %v2468 = vld [vmem:[%s2324 + $0xc8] sm:$0xfe]
        %v2469 = vperm.slane %v605, 3
        %v2470 = vperm.slane %v606, 3
        %v2471 = vmul.f32 %v2455, %v2469
        %v2472 = vmul.f32 %v2456, %v2470
        %v2473 = vmul.f32 %v2457, %v2469
        %v2474 = vmul.f32 %v2458, %v2470
        %v2475 = vmul.f32 %v2459, %v2469
        %v2476 = vmul.f32 %v2460, %v2470
        %v2477 = vmul.f32 %v2461, %v2469
        %v2478 = vmul.f32 %v2462, %v2470
        %v2479 = vmul.f32 %v2463, %v2469
        %v2480 = vmul.f32 %v2464, %v2470
        %v2481 = vmul.f32 %v2465, %v2469
        %v2482 = vmul.f32 %v2466, %v2470
        %v2483 = vmul.f32 %v2467, %v2469
        %v2484 = vmul.f32 %v2468, %v2470
        %v2499 = vrot.slane %v2471, 1
        %v2500 = vrot.slane %v2472, 1
        %v2501 = vrot.slane %v2473, 1
        %v2502 = vrot.slane %v2474, 1
        %v2503 = vrot.slane %v2475, 1
        %v2504 = vrot.slane %v2476, 1
        %v2505 = vrot.slane %v2477, 1
        %v2506 = vrot.slane %v2478, 1
        %v2507 = vrot.slane %v2479, 1
        %v2508 = vrot.slane %v2480, 1
        %v2509 = vrot.slane %v2481, 1
        %v2510 = vrot.slane %v2482, 1
        %v2511 = vrot.slane %v2483, 1
        %v2512 = vrot.slane %v2484, 1
        %v2527 = vadd.f32 %v2441, %v2499
        %v2528 = vadd.f32 %v2442, %v2500
        %v2529 = vadd.f32 %v2443, %v2501
        %v2530 = vadd.f32 %v2444, %v2502
        %v2531 = vadd.f32 %v2445, %v2503
        %v2532 = vadd.f32 %v2446, %v2504
        %v2533 = vadd.f32 %v2447, %v2505
        %v2534 = vadd.f32 %v2448, %v2506
        %v2535 = vadd.f32 %v2449, %v2507
        %v2536 = vadd.f32 %v2450, %v2508
        %v2537 = vadd.f32 %v2451, %v2509
        %v2538 = vadd.f32 %v2452, %v2510
        %v2539 = vadd.f32 %v2453, %v2511
        %v2540 = vadd.f32 %v2454, %v2512
        %v2541 = vld [vmem:[%s2279] sm:$0xfc]
        %v2542 = vld [vmem:[%s2279 + $0x8] sm:$0xfc]
        %v2543 = vld [vmem:[%s2279 + $0x10] sm:$0x1]
        %v2544 = vld [vmem:[%s2279 + $0x18] sm:$0x1]
        %v2545 = vld [vmem:[%s2279 + $0x20] sm:$0xfc]
        %v2546 = vld [vmem:[%s2279 + $0x28] sm:$0xfc]
        %v2547 = vld [vmem:[%s2279 + $0x30] sm:$0x1]
        %v2548 = vld [vmem:[%s2279 + $0x38] sm:$0x1]
        %v2549 = vld [vmem:[%s2279 + $0x40] sm:$0xfc]
        %v2550 = vld [vmem:[%s2279 + $0x48] sm:$0xfc]
        %v2551 = vld [vmem:[%s2279 + $0x50] sm:$0x1]
        %v2552 = vld [vmem:[%s2279 + $0x58] sm:$0x1]
        %v2553 = vld [vmem:[%s2279 + $0x60] sm:$0xfc]
        %v2554 = vld [vmem:[%s2279 + $0x68] sm:$0xfc]
        %v2555 = vld [vmem:[%s2279 + $0x70] sm:$0x1]
        %v2556 = vld [vmem:[%s2279 + $0x78] sm:$0x1]
        %v2557 = vld [vmem:[%s2279 + $0x80] sm:$0xfc]
        %v2558 = vld [vmem:[%s2279 + $0x88] sm:$0xfc]
        %v2559 = vld [vmem:[%s2279 + $0x90] sm:$0x1]
        %v2560 = vld [vmem:[%s2279 + $0x98] sm:$0x1]
        %v2561 = vld [vmem:[%s2279 + $0xa0] sm:$0xfc]
        %v2562 = vld [vmem:[%s2279 + $0xa8] sm:$0xfc]
        %v2563 = vld [vmem:[%s2279 + $0xb0] sm:$0x1]
        %v2564 = vld [vmem:[%s2279 + $0xb8] sm:$0x1]
        %v2565 = vld [vmem:[%s2279 + $0xc0] sm:$0xfc]
        %v2566 = vld [vmem:[%s2279 + $0xc8] sm:$0xfc]
        %v2567 = vld [vmem:[%s2279 + $0xd0] sm:$0x1]
        %v2568 = vld [vmem:[%s2279 + $0xd8] sm:$0x1]
        %v2569 = vperm.slane %v605, 4
        %v2570 = vperm.slane %v606, 4
        %v2571 = vmul.f32 %v2541, %v2569
        %v2572 = vmul.f32 %v2542, %v2570
        %v2573 = vmul.f32 %v2543, %v2569
        %v2574 = vmul.f32 %v2544, %v2570
        %v2575 = vmul.f32 %v2545, %v2569
        %v2576 = vmul.f32 %v2546, %v2570
        %v2577 = vmul.f32 %v2547, %v2569
        %v2578 = vmul.f32 %v2548, %v2570
        %v2579 = vmul.f32 %v2549, %v2569
        %v2580 = vmul.f32 %v2550, %v2570
        %v2581 = vmul.f32 %v2551, %v2569
        %v2582 = vmul.f32 %v2552, %v2570
        %v2583 = vmul.f32 %v2553, %v2569
        %v2584 = vmul.f32 %v2554, %v2570
        %v2585 = vmul.f32 %v2555, %v2569
        %v2586 = vmul.f32 %v2556, %v2570
        %v2587 = vmul.f32 %v2557, %v2569
        %v2588 = vmul.f32 %v2558, %v2570
        %v2589 = vmul.f32 %v2559, %v2569
        %v2590 = vmul.f32 %v2560, %v2570
        %v2591 = vmul.f32 %v2561, %v2569
        %v2592 = vmul.f32 %v2562, %v2570
        %v2593 = vmul.f32 %v2563, %v2569
        %v2594 = vmul.f32 %v2564, %v2570
        %v2595 = vmul.f32 %v2565, %v2569
        %v2596 = vmul.f32 %v2566, %v2570
        %v2597 = vmul.f32 %v2567, %v2569
        %v2598 = vmul.f32 %v2568, %v2570
        %v2627 = vrot.slane %v2571, 2
        %v2628 = vrot.slane %v2573, 2
        %v2629 = vsel %vm954, %v2627, %v2628
        %v2630 = vrot.slane %v2572, 2
        %v2631 = vrot.slane %v2574, 2
        %v2632 = vsel %vm954, %v2630, %v2631
        %v2633 = vrot.slane %v2575, 2
        %v2634 = vrot.slane %v2577, 2
        %v2635 = vsel %vm954, %v2633, %v2634
        %v2636 = vrot.slane %v2576, 2
        %v2637 = vrot.slane %v2578, 2
        %v2638 = vsel %vm954, %v2636, %v2637
        %v2639 = vrot.slane %v2579, 2
        %v2640 = vrot.slane %v2581, 2
        %v2641 = vsel %vm954, %v2639, %v2640
        %v2642 = vrot.slane %v2580, 2
        %v2643 = vrot.slane %v2582, 2
        %v2644 = vsel %vm954, %v2642, %v2643
        %v2645 = vrot.slane %v2583, 2
        %v2646 = vrot.slane %v2585, 2
        %v2647 = vsel %vm954, %v2645, %v2646
        %v2648 = vrot.slane %v2584, 2
        %v2649 = vrot.slane %v2586, 2
        %v2650 = vsel %vm954, %v2648, %v2649
        %v2651 = vrot.slane %v2587, 2
        %v2652 = vrot.slane %v2589, 2
        %v2653 = vsel %vm954, %v2651, %v2652
        %v2654 = vrot.slane %v2588, 2
        %v2655 = vrot.slane %v2590, 2
        %v2656 = vsel %vm954, %v2654, %v2655
        %v2657 = vrot.slane %v2591, 2
        %v2658 = vrot.slane %v2593, 2
        %v2659 = vsel %vm954, %v2657, %v2658
        %v2660 = vrot.slane %v2592, 2
        %v2661 = vrot.slane %v2594, 2
        %v2662 = vsel %vm954, %v2660, %v2661
        %v2663 = vrot.slane %v2595, 2
        %v2664 = vrot.slane %v2597, 2
        %v2665 = vsel %vm954, %v2663, %v2664
        %v2666 = vrot.slane %v2596, 2
        %v2667 = vrot.slane %v2598, 2
        %v2668 = vsel %vm954, %v2666, %v2667
        %v2683 = vadd.f32 %v2527, %v2629
        %v2684 = vadd.f32 %v2528, %v2632
        %v2685 = vadd.f32 %v2529, %v2635
        %v2686 = vadd.f32 %v2530, %v2638
        %v2687 = vadd.f32 %v2531, %v2641
        %v2688 = vadd.f32 %v2532, %v2644
        %v2689 = vadd.f32 %v2533, %v2647
        %v2690 = vadd.f32 %v2534, %v2650
        %v2691 = vadd.f32 %v2535, %v2653
        %v2692 = vadd.f32 %v2536, %v2656
        %v2693 = vadd.f32 %v2537, %v2659
        %v2694 = vadd.f32 %v2538, %v2662
        %v2695 = vadd.f32 %v2539, %v2665
        %v2696 = vadd.f32 %v2540, %v2668
        %vm2697 = vcmask 1046528
        %v2698 = vsel %vm2697, %v2683, 0.0
        %v2699 = vsel %vm2697, %v2685, 0.0
        %v2700 = vadd.f32 %v2698, %v2699
        %v2701 = vsel %vm2697, %v2687, 0.0
        %v2702 = vadd.f32 %v2700, %v2701
        %v2703 = vsel %vm2697, %v2689, 0.0
        %v2704 = vadd.f32 %v2702, %v2703
        %v2705 = vsel %vm2697, %v2691, 0.0
        %v2706 = vadd.f32 %v2704, %v2705
        %v2707 = vsel %vm2697, %v2693, 0.0
        %v2708 = vadd.f32 %v2706, %v2707
        %v2709 = vsel %vm2697, %v2695, 0.0
        %v2710 = vadd.f32 %v2708, %v2709
        %v2711 = vrot.slane %v2710, 4
        %v2712 = vadd.f32 %v2710, %v2711
        %v2713 = vrot.slane %v2712, 2
        %v2714 = vadd.f32 %v2712, %v2713
        %v2715 = vrot.slane %v2714, 1
        %v2716 = vadd.f32 %v2714, %v2715
        %v2717 = vsel %vm2697, %v2684, 0.0
        %v2718 = vsel %vm2697, %v2686, 0.0
        %v2719 = vadd.f32 %v2717, %v2718
        %v2720 = vsel %vm2697, %v2688, 0.0
        %v2721 = vadd.f32 %v2719, %v2720
        %v2722 = vsel %vm2697, %v2690, 0.0
        %v2723 = vadd.f32 %v2721, %v2722
        %v2724 = vsel %vm2697, %v2692, 0.0
        %v2725 = vadd.f32 %v2723, %v2724
        %v2726 = vsel %vm2697, %v2694, 0.0
        %v2727 = vadd.f32 %v2725, %v2726
        %v2728 = vsel %vm2697, %v2696, 0.0
        %v2729 = vadd.f32 %v2727, %v2728
        %v2730 = vrot.slane %v2729, 4
        %v2731 = vadd.f32 %v2729, %v2730
        %v2732 = vrot.slane %v2731, 2
        %v2733 = vadd.f32 %v2731, %v2732
        %v2734 = vrot.slane %v2733, 1
        %v2735 = vadd.f32 %v2733, %v2734
        %v2736 = vmul.f32 %v2683, %v2683
        %v2737 = vmul.f32 %v2684, %v2684
        %v2738 = vmul.f32 %v2685, %v2685
        %v2739 = vmul.f32 %v2686, %v2686
        %v2740 = vmul.f32 %v2687, %v2687
        %v2741 = vmul.f32 %v2688, %v2688
        %v2742 = vmul.f32 %v2689, %v2689
        %v2743 = vmul.f32 %v2690, %v2690
        %v2744 = vmul.f32 %v2691, %v2691
        %v2745 = vmul.f32 %v2692, %v2692
        %v2746 = vmul.f32 %v2693, %v2693
        %v2747 = vmul.f32 %v2694, %v2694
        %v2748 = vmul.f32 %v2695, %v2695
        %v2749 = vmul.f32 %v2696, %v2696
        %v2750 = vsel %vm2697, %v2736, 0.0
        %v2751 = vsel %vm2697, %v2738, 0.0
        %v2752 = vadd.f32 %v2750, %v2751
        %v2753 = vsel %vm2697, %v2740, 0.0
        %v2754 = vadd.f32 %v2752, %v2753
        %v2755 = vsel %vm2697, %v2742, 0.0
        %v2756 = vadd.f32 %v2754, %v2755
        %v2757 = vsel %vm2697, %v2744, 0.0
        %v2758 = vadd.f32 %v2756, %v2757
        %v2759 = vsel %vm2697, %v2746, 0.0
        %v2760 = vadd.f32 %v2758, %v2759
        %v2761 = vsel %vm2697, %v2748, 0.0
        %v2762 = vadd.f32 %v2760, %v2761
        %v2763 = vrot.slane %v2762, 4
        %v2764 = vadd.f32 %v2762, %v2763
        %v2765 = vrot.slane %v2764, 2
        %v2766 = vadd.f32 %v2764, %v2765
        %v2767 = vrot.slane %v2766, 1
        %v2768 = vadd.f32 %v2766, %v2767
        %v2769 = vsel %vm2697, %v2737, 0.0
        %v2770 = vsel %vm2697, %v2739, 0.0
        %v2771 = vadd.f32 %v2769, %v2770
        %v2772 = vsel %vm2697, %v2741, 0.0
        %v2773 = vadd.f32 %v2771, %v2772
        %v2774 = vsel %vm2697, %v2743, 0.0
        %v2775 = vadd.f32 %v2773, %v2774
        %v2776 = vsel %vm2697, %v2745, 0.0
        %v2777 = vadd.f32 %v2775, %v2776
        %v2778 = vsel %vm2697, %v2747, 0.0
        %v2779 = vadd.f32 %v2777, %v2778
        %v2780 = vsel %vm2697, %v2749, 0.0
        %v2781 = vadd.f32 %v2779, %v2780
        %v2782 = vrot.slane %v2781, 4
        %v2783 = vadd.f32 %v2781, %v2782
        %v2784 = vrot.slane %v2783, 2
        %v2785 = vadd.f32 %v2783, %v2784
        %v2786 = vrot.slane %v2785, 1
        %v2787 = vadd.f32 %v2785, %v2786
        %v2788 = vmul.f32 %v2716, 0.020408163
        %v2789 = vmul.f32 %v2735, 0.020408163
        %v2790 = vmul.f32 %v2768, 0.020408163
        %v2791 = vmul.f32 %v2787, 0.020408163
        %v2792 = vmul.f32 %v2788, %v2788
        %v2793 = vmul.f32 %v2789, %v2789
        %v2794 = vsub.f32 %v2790, %v2792
        %v2795 = vsub.f32 %v2791, %v2793
        %v2796 = vmax.f32 %v2794, 0.0
        %v2797 = vmax.f32 %v2795, 0.0
        %v2798 = vld [vmem:[%s589] sm:$0x3]
        %v2799 = vld [vmem:[%s594] sm:$0x3]
        %v2800 = vadd.f32 %v2796, 1e-05
        %v2801 = vadd.f32 %v2797, 1e-05
        %v2802 = vrsqrt.pop %v2800
        %v2803 = vmul.f32 %v2802, %v2800
        %v2804 = vmul.f32 %v2803, %v2802
        %v2805 = vmul.f32 0.5, %v2804
        %v2806 = vsub.f32 1.5, %v2805
        %v2807 = vmul.f32 %v2802, %v2806
        %vm2808 = vweird.f32 %v2800
        %vm2809 = vweird.f32 %v2802
        %vm2810 = vmor %vm2808, %vm2809
        %v2811 = vsel %vm2810, %v2802, %v2807
        %v2812 = vrsqrt.pop %v2801
        %v2813 = vmul.f32 %v2812, %v2801
        %v2814 = vmul.f32 %v2813, %v2812
        %v2815 = vmul.f32 0.5, %v2814
        %v2816 = vsub.f32 1.5, %v2815
        %v2817 = vmul.f32 %v2812, %v2816
        %vm2818 = vweird.f32 %v2801
        %vm2819 = vweird.f32 %v2812
        %vm2820 = vmor %vm2818, %vm2819
        %v2821 = vsel %vm2820, %v2812, %v2817
        %v2824 = vrot.slane %v2821, 7
        %vm2825 = vcmask 1040384
        %v2826 = vsel %vm2825, %v2811, %v2824
        %v2828 = vmul.f32 %v2798, %v2826
        %v2830 = vperm.slane %v2828, 0
        %v2831 = vperm.slane %v2828, 1
        %v2834 = vmul.f32 %v2788, %v2830
        %v2835 = vmul.f32 %v2789, %v2831
        %v2838 = vrot.slane %v2835, 7
        %v2839 = vsel %vm2825, %v2834, %v2838
        %v2841 = vsub.f32 %v2799, %v2839
        %v2842 = vmul.f32 %v2683, %v2830
        %v2843 = vmul.f32 %v2684, %v2831
        %v2844 = vmul.f32 %v2685, %v2830
        %v2845 = vmul.f32 %v2686, %v2831
        %v2846 = vmul.f32 %v2687, %v2830
        %v2847 = vmul.f32 %v2688, %v2831
        %v2848 = vmul.f32 %v2689, %v2830
        %v2849 = vmul.f32 %v2690, %v2831
        %v2850 = vmul.f32 %v2691, %v2830
        %v2851 = vmul.f32 %v2692, %v2831
        %v2852 = vmul.f32 %v2693, %v2830
        %v2853 = vmul.f32 %v2694, %v2831
        %v2854 = vmul.f32 %v2695, %v2830
        %v2855 = vmul.f32 %v2696, %v2831
        %v2857 = vperm.slane %v2841, 0
        %v2858 = vperm.slane %v2841, 1
        %v2861 = vadd.f32 %v2842, %v2857
        %v2862 = vadd.f32 %v2843, %v2858
        %v2863 = vadd.f32 %v2844, %v2857
        %v2864 = vadd.f32 %v2845, %v2858
        %v2865 = vadd.f32 %v2846, %v2857
        %v2866 = vadd.f32 %v2847, %v2858
        %v2867 = vadd.f32 %v2848, %v2857
        %v2868 = vadd.f32 %v2849, %v2858
        %v2869 = vadd.f32 %v2850, %v2857
        %v2870 = vadd.f32 %v2851, %v2858
        %v2871 = vadd.f32 %v2852, %v2857
        %v2872 = vadd.f32 %v2853, %v2858
        %v2873 = vadd.f32 %v2854, %v2857
        %v2874 = vadd.f32 %v2855, %v2858
        %2875 = vst [vmem:[%s583] sm:$0x7f] %v2861
        %2876 = vst [vmem:[%s583 + $0x8] sm:$0x7f] %v2862
        %2877 = vst [vmem:[%s583 + $0x10] sm:$0x7f] %v2863
        %2878 = vst [vmem:[%s583 + $0x18] sm:$0x7f] %v2864
        %2879 = vst [vmem:[%s583 + $0x20] sm:$0x7f] %v2865
        %2880 = vst [vmem:[%s583 + $0x28] sm:$0x7f] %v2866
        %2881 = vst [vmem:[%s583 + $0x30] sm:$0x7f] %v2867
        %2882 = vst [vmem:[%s583 + $0x38] sm:$0x7f] %v2868
        %2883 = vst [vmem:[%s583 + $0x40] sm:$0x7f] %v2869
        %2884 = vst [vmem:[%s583 + $0x48] sm:$0x7f] %v2870
        %2885 = vst [vmem:[%s583 + $0x50] sm:$0x7f] %v2871
        %2886 = vst [vmem:[%s583 + $0x58] sm:$0x7f] %v2872
        %2887 = vst [vmem:[%s583 + $0x60] sm:$0x7f] %v2873
        %2888 = vst [vmem:[%s583 + $0x68] sm:$0x7f] %v2874
        %s2889 = sand.u32 %s127, 1
        %s2890 = sand.u32 %s127, 1
        %s2891 = smul.addr %s2890, 112
        %s2892 = scalar_lea.vmem [#allocation4], %s2891
        // Predicated region
        $region83: #{tpu_custom_call.1} parent=73 // pred_check
          %p2893 = pneg %p137
        $region84: #{tpu_custom_call.1} parent=73 // pred_check_branch
          %2895 = sbr.rel (%p2893) target = $region86
        $region85: #{tpu_custom_call.1} parent=73 // pred_region
          %s2896 = smul.u32 2, %s15
          %s2897 = smul.addr %s2896, 8
          %s2898 = scalar_lea.vmem %s4, %s2897
          // Predicated region
          $region87: #{tpu_custom_call.1} parent=85 // pred_check
            _
          $region88: #{tpu_custom_call.1} parent=85 // pred_check_branch
            %2900 = sbr.rel (0) target = $region90
          $region89: #{tpu_custom_call.1} parent=85 // pred_region
            // Predicated region
            $region91: #{tpu_custom_call.1} parent=89 // pred_check
              _
            $region92: #{tpu_custom_call.1} parent=89 // pred_check_branch
              %2902 = sbr.rel (0) target = $region94
            $region93: #{tpu_custom_call.1} parent=89 // pred_region
              loop: start=0, step=1, limit=1
              $region95: #{tpu_custom_call.1} parent=93 // loop_pre_header
                _
              $region96: #{tpu_custom_call.1} parent=93 // loop_header
                %s2904 = sphi 0, %s2908
                %p2905 = scmp.ge.s32.totalorder %s2904, 1
                %s2909 = sphi %s2892, %s2892
                %s2910 = sphi %s2898, %s2898
              $region97: #{tpu_custom_call.1} parent=93 // loop_header_branch
                %2907 = sbr.rel (%p2905) target = $region101
              $region98: #{tpu_custom_call.1} parent=93 // loop_body
                %v2911 = vld [vmem:[%s2909] sm:$0xff]
                %2912 = vst [vmem:[%s2910] sm:$0xff] %v2911
                %v2913 = vld [vmem:[%s2909 + $0x8] sm:$0xff]
                %2914 = vst [vmem:[%s2910 + $0x8] sm:$0xff] %v2913
                %v2915 = vld [vmem:[%s2909 + $0x10] sm:$0xff]
                %2916 = vst [vmem:[%s2910 + $0x40] sm:$0xff] %v2915
                %v2917 = vld [vmem:[%s2909 + $0x18] sm:$0xff]
                %2918 = vst [vmem:[%s2910 + $0x48] sm:$0xff] %v2917
                %v2919 = vld [vmem:[%s2909 + $0x20] sm:$0xff]
                %2920 = vst [vmem:[%s2910 + $0x80] sm:$0xff] %v2919
                %v2921 = vld [vmem:[%s2909 + $0x28] sm:$0xff]
                %2922 = vst [vmem:[%s2910 + $0x88] sm:$0xff] %v2921
                %v2923 = vld [vmem:[%s2909 + $0x30] sm:$0xff]
                %2924 = vst [vmem:[%s2910 + $0xc0] sm:$0xff] %v2923
                %v2925 = vld [vmem:[%s2909 + $0x38] sm:$0xff]
                %2926 = vst [vmem:[%s2910 + $0xc8] sm:$0xff] %v2925
                %v2927 = vld [vmem:[%s2909 + $0x40] sm:$0xff]
                %2928 = vst [vmem:[%s2910 + $0x100] sm:$0xff] %v2927
                %v2929 = vld [vmem:[%s2909 + $0x48] sm:$0xff]
                %2930 = vst [vmem:[%s2910 + $0x108] sm:$0xff] %v2929
                %v2931 = vld [vmem:[%s2909 + $0x50] sm:$0xff]
                %2932 = vst [vmem:[%s2910 + $0x140] sm:$0xff] %v2931
                %v2933 = vld [vmem:[%s2909 + $0x58] sm:$0xff]
                %2934 = vst [vmem:[%s2910 + $0x148] sm:$0xff] %v2933
                %v2935 = vld [vmem:[%s2909 + $0x60] sm:$0xff]
                %2936 = vst [vmem:[%s2910 + $0x180] sm:$0xff] %v2935
                %v2937 = vld [vmem:[%s2909 + $0x68] sm:$0xff]
                %2938 = vst [vmem:[%s2910 + $0x188] sm:$0xff] %v2937
              $region99: #{tpu_custom_call.1} parent=93 // loop_footer
                %s2908 = sadd.s32 1, %s2904
              $region100: #{tpu_custom_call.1} parent=93 // loop_footer_branch
                %2903 = sbr.rel target = $region96
              $region101: #{tpu_custom_call.1} parent=93 // loop_exit
                _
            $region94: #{tpu_custom_call.1} parent=89 // pred_fallthru
              _
            // Predicated region
            $region102: #{tpu_custom_call.1} parent=89 // pred_check
              _
            $region103: #{tpu_custom_call.1} parent=89 // pred_check_branch
              %2940 = sbr.rel target = $region105
            $region104: #{tpu_custom_call.1} parent=89 // pred_region
              _
            $region105: #{tpu_custom_call.1} parent=89 // pred_fallthru
              _
          $region90: #{tpu_custom_call.1} parent=85 // pred_fallthru
            _
          %2941 = vnop
        $region86: #{tpu_custom_call.1} parent=73 // pred_fallthru
          _
      $region74: #{tpu_custom_call.1} parent=5 // pred_fallthru
        _
      %p2942 = scmp.le.s32.totalorder 2, %s10
      // Predicated region
      $region106: #{tpu_custom_call.1} parent=5 // pred_check
        %p2943 = pneg %p2942
      $region107: #{tpu_custom_call.1} parent=5 // pred_check_branch
        %2945 = sbr.rel (%p2943) target = $region109
      $region108: #{tpu_custom_call.1} parent=5 // pred_region
        %s2946 = ssub.s32 %s10, 2
        // Predicated region
        $region110: #{tpu_custom_call.1} parent=108 // pred_check
          %p2947 = pneg %p143
        $region111: #{tpu_custom_call.1} parent=108 // pred_check_branch
          %2949 = sbr.rel (%p2947) target = $region113
        $region112: #{tpu_custom_call.1} parent=108 // pred_region
          %s2950 = sand.u32 %s128, 1
          %s2951 = sand.u32 %s128, 1
          %s2952 = smul.addr %s2951, 112
          %s2953 = scalar_lea.vmem [#allocation4], %s2952
        $region113: #{tpu_custom_call.1} parent=108 // pred_fallthru
          _
      $region109: #{tpu_custom_call.1} parent=5 // pred_fallthru
        _
    $region6: #{tpu_custom_call.1} parent=1 // loop_footer
      %s14 = sadd.s32 1, %s10
    $region7: #{tpu_custom_call.1} parent=1 // loop_footer_branch
      %9 = sbr.rel target = $region3
    $region8: #{tpu_custom_call.1} parent=1 // loop_exit
      _

</llo_original>
